<compile_context>
chip_gen: v6e
topology: v6e:2x2x1
jax: 0.10.0
libtpu: 0.0.40
codegen_flags: <defaults>
</compile_context>

<pallas_src>
import jax
import jax.numpy as jnp
from jax.experimental import pallas as pl
from jax.experimental.pallas import tpu as pltpu

EPS = 1e-5
L = 27          # spatial length of the 1-D signal
OUT_PAD = 128   # lane-dense padded width of the final (N, 4) output


def _round_up(x, m):
    return (x + m - 1) // m * m


# ------------------------------ Pallas kernel ------------------------------ #
def _cnn_fused_kernel(x_ref,
                      w1_ref, s1_ref, w2_ref, s2_ref, w3_ref, s3_ref,
                      w4_ref, s4_ref, w5_ref, s5_ref, w6_ref, s6_ref,
                      o_ref):
    """Whole CNN forward for one row tile; activations never leave VMEM."""

    def layer(h, w_ref, s_ref):
        y = jnp.dot(h.astype(jnp.bfloat16), w_ref[...],
                    preferred_element_type=jnp.float32)
        return jnp.maximum(y + s_ref[...], 0.0)

    h = x_ref[...]                      # (TM, 27) f32
    h = layer(h, w1_ref, s1_ref)        # conv1 (banded matmul)   -> (TM, 216)
    h = layer(h, w2_ref, s2_ref)        # conv2                   -> (TM, 432)
    h = layer(h, w3_ref, s3_ref)        # conv3                   -> (TM, 864)
    h = layer(h, w4_ref, s4_ref)        # fc1 + BN + ReLU         -> (TM, 512)
    h = layer(h, w5_ref, s5_ref)        # fc2 + BN + ReLU         -> (TM, 512)
    h = layer(h, w6_ref, s6_ref)        # fc3 + ReLU (padded)     -> (TM, 128)
    o_ref[...] = h


def _fused_forward(x2d, mats, shifts):
    """x2d: (N, 27) f32. mats: 6 bf16 weight matrices. shifts: 6 (1,F) f32."""
    N = x2d.shape[0]
    TM = 256 if N >= 256 else _round_up(max(N, 1), 8)
    Mp = _round_up(N, TM)
    x_p = jnp.pad(x2d, ((0, Mp - N), (0, 0)))

    in_specs = [pl.BlockSpec((TM, L), lambda i: (i, 0))]
    args = [x_p]
    for w, s in zip(mats, shifts):
        in_specs.append(pl.BlockSpec(w.shape, lambda i: (0, 0)))  # resident
        in_specs.append(pl.BlockSpec(s.shape, lambda i: (0, 0)))
        args += [w, s]

    flops = 2 * Mp * sum(int(w.shape[0]) * int(w.shape[1]) for w in mats)
    bytes_accessed = (x_p.size * 4
                      + sum(int(w.size) * 2 for w in mats)
                      + sum(int(s.size) * 4 for s in shifts)
                      + Mp * OUT_PAD * 4)

    out = pl.pallas_call(
        _cnn_fused_kernel,
        out_shape=jax.ShapeDtypeStruct((Mp, OUT_PAD), jnp.float32),
        grid=(Mp // TM,),
        in_specs=in_specs,
        out_specs=pl.BlockSpec((TM, OUT_PAD), lambda i: (i, 0)),
        compiler_params=pltpu.CompilerParams(
            dimension_semantics=("parallel",),
            vmem_limit_bytes=32 * 1024 * 1024),
        cost_estimate=pl.CostEstimate(flops=flops, transcendentals=0,
                                      bytes_accessed=bytes_accessed),
    )(*args)
    return out[:N, :]


# ------------------------ trace-time weight preparation --------------------- #
def _bn_fold(gamma, beta, mean, var, bias):
    scale = gamma / jnp.sqrt(var + EPS)
    shift = beta + (bias - mean) * scale
    return scale, shift


def _conv_band(w_oik, scale):
    """Conv1d(k=3, stride=1, pad=1) weight (Cout, Cin, 3), BN column scale ->
    exact banded matmul matrix of shape (L*Cin, L*Cout).
    Flat layout: row = l_in*Cin + ci, col = l_out*Cout + co (l-major, c-minor).
    """
    Cout, Cin, K = w_oik.shape
    li = jnp.arange(L)[:, None, None]
    lo = jnp.arange(L)[None, :, None]
    kk = jnp.arange(K)[None, None, :]
    sel = (li - lo + 1 == kk).astype(jnp.float32)        # (L, L, 3)
    w_s = w_oik * scale[:, None, None]                    # (Cout, Cin, 3)
    band = jnp.einsum('abk,oik->aibo', sel, w_s)          # (L, Cin, L, Cout)
    return band.reshape(L * Cin, L * Cout)


def prepare_weights(params):
    mats, shifts = [], []
    # conv stack: banded matmuls, BN scale folded into columns
    for p in params["conv"]:
        scale, shift = _bn_fold(p["gamma"], p["beta"], p["mean"], p["var"], p["b"])
        mats.append(_conv_band(p["w"], scale).astype(jnp.bfloat16))
        # per-column shift, broadcast over spatial positions (l-major layout)
        shifts.append(jnp.tile(shift, (L,)).reshape(1, -1).astype(jnp.float32))

    # fc1: fold BN scale into columns; permute input rows from PyTorch
    # flatten(1) order (c*27 + l) to our conv-output order (l*32 + c).
    p = params["fc"][0]
    scale, shift = _bn_fold(p["gamma"], p["beta"], p["mean"], p["var"], p["b"])
    w = p["w"] * scale[None, :]                            # (864, 512)
    w = w.reshape(32, L, -1).transpose(1, 0, 2).reshape(L * 32, -1)
    mats.append(w.astype(jnp.bfloat16))
    shifts.append(shift.reshape(1, -1).astype(jnp.float32))

    # fc2
    p = params["fc"][1]
    scale, shift = _bn_fold(p["gamma"], p["beta"], p["mean"], p["var"], p["b"])
    mats.append((p["w"] * scale[None, :]).astype(jnp.bfloat16))
    shifts.append(shift.reshape(1, -1).astype(jnp.float32))

    # fc3 (no BN): zero-pad 4 -> 128 output lanes for unmasked stores
    p = params["fc"][2]
    w = jnp.pad(p["w"], ((0, 0), (0, OUT_PAD - p["w"].shape[1])))
    b = jnp.pad(p["b"], (0, OUT_PAD - p["b"].shape[0]))
    mats.append(w.astype(jnp.bfloat16))
    shifts.append(b.reshape(1, -1).astype(jnp.float32))
    return mats, shifts


# ------------------------------ parameter init ------------------------------ #
def init_params(key):
    def bn(c):
        return dict(gamma=jnp.ones((c,), jnp.float32),
                    beta=jnp.zeros((c,), jnp.float32),
                    mean=jnp.zeros((c,), jnp.float32),
                    var=jnp.ones((c,), jnp.float32))

    keys = jax.random.split(key, 12)
    params = {"conv": [], "fc": []}
    conv_dims = [(1, 8), (8, 16), (16, 32)]
    for i, (cin, cout) in enumerate(conv_dims):
        w = 0.1 * jax.random.normal(keys[2 * i], (cout, cin, 3), jnp.float32)
        b = 0.01 * jax.random.normal(keys[2 * i + 1], (cout,), jnp.float32)
        params["conv"].append(dict(w=w, b=b, **bn(cout)))

    fc_dims = [(864, 512), (512, 512), (512, 4)]
    for i, (fin, fout) in enumerate(fc_dims):
        w = 0.05 * jax.random.normal(keys[6 + 2 * i], (fin, fout), jnp.float32)
        b = 0.01 * jax.random.normal(keys[7 + 2 * i], (fout,), jnp.float32)
        layer = dict(w=w, b=b)
        if i < 2:   # last Linear has no BatchNorm
            layer.update(bn(fout))
        params["fc"].append(layer)
    return params


# ------------------------------- forward pass -------------------------------- #
def _cnn_forward_impl(x_ncl, params):
    """x_ncl: (N, 1, 27) matching PyTorch NCW input. Returns (N, 4)."""
    n = x_ncl.shape[0]
    mats, shifts = prepare_weights(params)   # constant-folds under jit
    x2d = x_ncl.reshape(n, L)                # Cin == 1 -> flat layout is exact
    out = _fused_forward(x2d, mats, shifts)  # (N, 128)
    return out[:, :4]


cnn_forward = jax.jit(_cnn_forward_impl)


if __name__ == "__main__":
    key = jax.random.PRNGKey(0)
    pkey, xkey = jax.random.split(key)
    params = init_params(pkey)

    batch = 2
    x = jax.random.normal(xkey, (batch, 1, 27), jnp.float32)  # NCW like PyTorch

    out = cnn_forward(x, params)
    out = jax.block_until_ready(out)
    assert out.shape == (batch, 4), out.shape
    assert bool(jnp.all(out >= 0.0))  # final ReLU in the reference module
    print("KERNEL_OK")
</pallas_src>

<mosaic_0001>
module attributes {stable_mosaic.version = 11 : i64} {
  func.func @_cnn_fused_kernel(%arg0: i32, %arg1: memref<8x27xf32, #tpu.memory_space<vmem>>, %arg2: memref<27x216xbf16, #tpu.memory_space<vmem>>, %arg3: memref<1x216xf32, #tpu.memory_space<vmem>>, %arg4: memref<216x432xbf16, #tpu.memory_space<vmem>>, %arg5: memref<1x432xf32, #tpu.memory_space<vmem>>, %arg6: memref<432x864xbf16, #tpu.memory_space<vmem>>, %arg7: memref<1x864xf32, #tpu.memory_space<vmem>>, %arg8: memref<864x512xbf16, #tpu.memory_space<vmem>>, %arg9: memref<1x512xf32, #tpu.memory_space<vmem>>, %arg10: memref<512x512xbf16, #tpu.memory_space<vmem>>, %arg11: memref<1x512xf32, #tpu.memory_space<vmem>>, %arg12: memref<512x128xbf16, #tpu.memory_space<vmem>>, %arg13: memref<1x128xf32, #tpu.memory_space<vmem>>, %arg14: memref<8x128xf32, #tpu.memory_space<vmem>>) attributes {dimension_semantics = [#tpu.dimension_semantics<parallel>], iteration_bounds = array<i64: 1>, scalar_prefetch = 0 : i64, scratch_operands = 0 : i64, tpu.core_type = #tpu.core_type<tc>, window_params = [{transform_indices = @transform_0, window_bounds = array<i64: 8, 27>}, {pipeline_mode = #tpu.pipeline_mode<synchronous>, transform_indices = @transform_1, window_bounds = array<i64: 27, 216>}, {pipeline_mode = #tpu.pipeline_mode<synchronous>, transform_indices = @transform_2, window_bounds = array<i64: 1, 216>}, {pipeline_mode = #tpu.pipeline_mode<synchronous>, transform_indices = @transform_3, window_bounds = array<i64: 216, 432>}, {pipeline_mode = #tpu.pipeline_mode<synchronous>, transform_indices = @transform_4, window_bounds = array<i64: 1, 432>}, {pipeline_mode = #tpu.pipeline_mode<synchronous>, transform_indices = @transform_5, window_bounds = array<i64: 432, 864>}, {pipeline_mode = #tpu.pipeline_mode<synchronous>, transform_indices = @transform_6, window_bounds = array<i64: 1, 864>}, {pipeline_mode = #tpu.pipeline_mode<synchronous>, transform_indices = @transform_7, window_bounds = array<i64: 864, 512>}, {pipeline_mode = #tpu.pipeline_mode<synchronous>, transform_indices = @transform_8, window_bounds = array<i64: 1, 512>}, {pipeline_mode = #tpu.pipeline_mode<synchronous>, transform_indices = @transform_9, window_bounds = array<i64: 512, 512>}, {pipeline_mode = #tpu.pipeline_mode<synchronous>, transform_indices = @transform_10, window_bounds = array<i64: 1, 512>}, {pipeline_mode = #tpu.pipeline_mode<synchronous>, transform_indices = @transform_11, window_bounds = array<i64: 512, 128>}, {pipeline_mode = #tpu.pipeline_mode<synchronous>, transform_indices = @transform_12, window_bounds = array<i64: 1, 128>}, {transform_indices = @transform_13, window_bounds = array<i64: 8, 128>}]} {
    %c0 = arith.constant 0 : index
    %c0_0 = arith.constant 0 : index
    %0 = vector.load %arg1[%c0, %c0_0] : memref<8x27xf32, #tpu.memory_space<vmem>>, vector<8x27xf32>
    %1 = arith.truncf %0 : vector<8x27xf32> to vector<8x27xbf16>
    %c0_1 = arith.constant 0 : index
    %c0_2 = arith.constant 0 : index
    %2 = vector.load %arg2[%c0_1, %c0_2] : memref<27x216xbf16, #tpu.memory_space<vmem>>, vector<27x216xbf16>
    %cst = arith.constant dense<0.000000e+00> : vector<8x216xf32>
    %3 = tpu.matmul %1, %2, %cst {dimension_numbers = #tpu.dot_dimension_numbers<[1], [0], [0], [1], [0, 0, 1, 1], [], []>} : vector<8x27xbf16>, vector<27x216xbf16>, vector<8x216xf32> -> vector<8x216xf32>
    %c0_3 = arith.constant 0 : index
    %c0_4 = arith.constant 0 : index
    %4 = vector.load %arg3[%c0_3, %c0_4] : memref<1x216xf32, #tpu.memory_space<vmem>>, vector<1x216xf32>
    %5 = vector.broadcast %4 : vector<1x216xf32> to vector<8x216xf32>
    %6 = arith.addf %3, %5 : vector<8x216xf32>
    %cst_5 = arith.constant 0.000000e+00 : f32
    %7 = vector.broadcast %cst_5 : f32 to vector<8x216xf32>
    %8 = arith.maximumf %6, %7 : vector<8x216xf32>
    %9 = arith.truncf %8 : vector<8x216xf32> to vector<8x216xbf16>
    %c0_6 = arith.constant 0 : index
    %c0_7 = arith.constant 0 : index
    %10 = vector.load %arg4[%c0_6, %c0_7] : memref<216x432xbf16, #tpu.memory_space<vmem>>, vector<216x432xbf16>
    %cst_8 = arith.constant dense<0.000000e+00> : vector<8x432xf32>
    %11 = tpu.matmul %9, %10, %cst_8 {dimension_numbers = #tpu.dot_dimension_numbers<[1], [0], [0], [1], [0, 0, 1, 1], [], []>} : vector<8x216xbf16>, vector<216x432xbf16>, vector<8x432xf32> -> vector<8x432xf32>
    %c0_9 = arith.constant 0 : index
    %c0_10 = arith.constant 0 : index
    %12 = vector.load %arg5[%c0_9, %c0_10] : memref<1x432xf32, #tpu.memory_space<vmem>>, vector<1x432xf32>
    %13 = vector.broadcast %12 : vector<1x432xf32> to vector<8x432xf32>
    %14 = arith.addf %11, %13 : vector<8x432xf32>
    %cst_11 = arith.constant 0.000000e+00 : f32
    %15 = vector.broadcast %cst_11 : f32 to vector<8x432xf32>
    %16 = arith.maximumf %14, %15 : vector<8x432xf32>
    %17 = arith.truncf %16 : vector<8x432xf32> to vector<8x432xbf16>
    %c0_12 = arith.constant 0 : index
    %c0_13 = arith.constant 0 : index
    %18 = vector.load %arg6[%c0_12, %c0_13] : memref<432x864xbf16, #tpu.memory_space<vmem>>, vector<432x864xbf16>
    %cst_14 = arith.constant dense<0.000000e+00> : vector<8x864xf32>
    %19 = tpu.matmul %17, %18, %cst_14 {dimension_numbers = #tpu.dot_dimension_numbers<[1], [0], [0], [1], [0, 0, 1, 1], [], []>} : vector<8x432xbf16>, vector<432x864xbf16>, vector<8x864xf32> -> vector<8x864xf32>
    %c0_15 = arith.constant 0 : index
    %c0_16 = arith.constant 0 : index
    %20 = vector.load %arg7[%c0_15, %c0_16] : memref<1x864xf32, #tpu.memory_space<vmem>>, vector<1x864xf32>
    %21 = vector.broadcast %20 : vector<1x864xf32> to vector<8x864xf32>
    %22 = arith.addf %19, %21 : vector<8x864xf32>
    %cst_17 = arith.constant 0.000000e+00 : f32
    %23 = vector.broadcast %cst_17 : f32 to vector<8x864xf32>
    %24 = arith.maximumf %22, %23 : vector<8x864xf32>
    %25 = arith.truncf %24 : vector<8x864xf32> to vector<8x864xbf16>
    %c0_18 = arith.constant 0 : index
    %c0_19 = arith.constant 0 : index
    %26 = vector.load %arg8[%c0_18, %c0_19] : memref<864x512xbf16, #tpu.memory_space<vmem>>, vector<864x512xbf16>
    %cst_20 = arith.constant dense<0.000000e+00> : vector<8x512xf32>
    %27 = tpu.matmul %25, %26, %cst_20 {dimension_numbers = #tpu.dot_dimension_numbers<[1], [0], [0], [1], [0, 0, 1, 1], [], []>} : vector<8x864xbf16>, vector<864x512xbf16>, vector<8x512xf32> -> vector<8x512xf32>
    %c0_21 = arith.constant 0 : index
    %c0_22 = arith.constant 0 : index
    %28 = vector.load %arg9[%c0_21, %c0_22] : memref<1x512xf32, #tpu.memory_space<vmem>>, vector<1x512xf32>
    %29 = vector.broadcast %28 : vector<1x512xf32> to vector<8x512xf32>
    %30 = arith.addf %27, %29 : vector<8x512xf32>
    %cst_23 = arith.constant 0.000000e+00 : f32
    %31 = vector.broadcast %cst_23 : f32 to vector<8x512xf32>
    %32 = arith.maximumf %30, %31 : vector<8x512xf32>
    %33 = arith.truncf %32 : vector<8x512xf32> to vector<8x512xbf16>
    %c0_24 = arith.constant 0 : index
    %c0_25 = arith.constant 0 : index
    %34 = vector.load %arg10[%c0_24, %c0_25] : memref<512x512xbf16, #tpu.memory_space<vmem>>, vector<512x512xbf16>
    %cst_26 = arith.constant dense<0.000000e+00> : vector<8x512xf32>
    %35 = tpu.matmul %33, %34, %cst_26 {dimension_numbers = #tpu.dot_dimension_numbers<[1], [0], [0], [1], [0, 0, 1, 1], [], []>} : vector<8x512xbf16>, vector<512x512xbf16>, vector<8x512xf32> -> vector<8x512xf32>
    %c0_27 = arith.constant 0 : index
    %c0_28 = arith.constant 0 : index
    %36 = vector.load %arg11[%c0_27, %c0_28] : memref<1x512xf32, #tpu.memory_space<vmem>>, vector<1x512xf32>
    %37 = vector.broadcast %36 : vector<1x512xf32> to vector<8x512xf32>
    %38 = arith.addf %35, %37 : vector<8x512xf32>
    %cst_29 = arith.constant 0.000000e+00 : f32
    %39 = vector.broadcast %cst_29 : f32 to vector<8x512xf32>
    %40 = arith.maximumf %38, %39 : vector<8x512xf32>
    %41 = arith.truncf %40 : vector<8x512xf32> to vector<8x512xbf16>
    %c0_30 = arith.constant 0 : index
    %c0_31 = arith.constant 0 : index
    %42 = vector.load %arg12[%c0_30, %c0_31] : memref<512x128xbf16, #tpu.memory_space<vmem>>, vector<512x128xbf16>
    %cst_32 = arith.constant dense<0.000000e+00> : vector<8x128xf32>
    %43 = tpu.matmul %41, %42, %cst_32 {dimension_numbers = #tpu.dot_dimension_numbers<[1], [0], [0], [1], [0, 0, 1, 1], [], []>} : vector<8x512xbf16>, vector<512x128xbf16>, vector<8x128xf32> -> vector<8x128xf32>
    %c0_33 = arith.constant 0 : index
    %c0_34 = arith.constant 0 : index
    %44 = vector.load %arg13[%c0_33, %c0_34] : memref<1x128xf32, #tpu.memory_space<vmem>>, vector<1x128xf32>
    %45 = vector.broadcast %44 : vector<1x128xf32> to vector<8x128xf32>
    %46 = arith.addf %43, %45 : vector<8x128xf32>
    %cst_35 = arith.constant 0.000000e+00 : f32
    %47 = vector.broadcast %cst_35 : f32 to vector<8x128xf32>
    %48 = arith.maximumf %46, %47 : vector<8x128xf32>
    %c0_36 = arith.constant 0 : index
    %c0_37 = arith.constant 0 : index
    %49 = vector.load %arg14[%c0_36, %c0_37] : memref<8x128xf32, #tpu.memory_space<vmem>>, vector<8x128xf32>
    tpu.vector_store %arg14[%c0_36, %c0_37], %48 {strides = array<i32>} : memref<8x128xf32, #tpu.memory_space<vmem>>, vector<8x128xf32>,
    return
  }
  func.func @transform_0(%arg0: i32) -> (i32, i32) {
    %c0_i32 = arith.constant 0 : i32
    %c0_i32_0 = arith.constant 0 : i32
    return %arg0, %c0_i32 : i32, i32
  }
  func.func @transform_1(%arg0: i32) -> (i32, i32) {
    %c0_i32 = arith.constant 0 : i32
    %c0_i32_0 = arith.constant 0 : i32
    %c0_i32_1 = arith.constant 0 : i32
    return %c0_i32, %c0_i32_0 : i32, i32
  }
  func.func @transform_2(%arg0: i32) -> (i32, i32) {
    %c0_i32 = arith.constant 0 : i32
    %c0_i32_0 = arith.constant 0 : i32
    %c0_i32_1 = arith.constant 0 : i32
    return %c0_i32, %c0_i32_0 : i32, i32
  }
  func.func @transform_3(%arg0: i32) -> (i32, i32) {
    %c0_i32 = arith.constant 0 : i32
    %c0_i32_0 = arith.constant 0 : i32
    %c0_i32_1 = arith.constant 0 : i32
    return %c0_i32, %c0_i32_0 : i32, i32
  }
  func.func @transform_4(%arg0: i32) -> (i32, i32) {
    %c0_i32 = arith.constant 0 : i32
    %c0_i32_0 = arith.constant 0 : i32
    %c0_i32_1 = arith.constant 0 : i32
    return %c0_i32, %c0_i32_0 : i32, i32
  }
  func.func @transform_5(%arg0: i32) -> (i32, i32) {
    %c0_i32 = arith.constant 0 : i32
    %c0_i32_0 = arith.constant 0 : i32
    %c0_i32_1 = arith.constant 0 : i32
    return %c0_i32, %c0_i32_0 : i32, i32
  }
  func.func @transform_6(%arg0: i32) -> (i32, i32) {
    %c0_i32 = arith.constant 0 : i32
    %c0_i32_0 = arith.constant 0 : i32
    %c0_i32_1 = arith.constant 0 : i32
    return %c0_i32, %c0_i32_0 : i32, i32
  }
  func.func @transform_7(%arg0: i32) -> (i32, i32) {
    %c0_i32 = arith.constant 0 : i32
    %c0_i32_0 = arith.constant 0 : i32
    %c0_i32_1 = arith.constant 0 : i32
    return %c0_i32, %c0_i32_0 : i32, i32
  }
  func.func @transform_8(%arg0: i32) -> (i32, i32) {
    %c0_i32 = arith.constant 0 : i32
    %c0_i32_0 = arith.constant 0 : i32
    %c0_i32_1 = arith.constant 0 : i32
    return %c0_i32, %c0_i32_0 : i32, i32
  }
  func.func @transform_9(%arg0: i32) -> (i32, i32) {
    %c0_i32 = arith.constant 0 : i32
    %c0_i32_0 = arith.constant 0 : i32
    %c0_i32_1 = arith.constant 0 : i32
    return %c0_i32, %c0_i32_0 : i32, i32
  }
  func.func @transform_10(%arg0: i32) -> (i32, i32) {
    %c0_i32 = arith.constant 0 : i32
    %c0_i32_0 = arith.constant 0 : i32
    %c0_i32_1 = arith.constant 0 : i32
    return %c0_i32, %c0_i32_0 : i32, i32
  }
  func.func @transform_11(%arg0: i32) -> (i32, i32) {
    %c0_i32 = arith.constant 0 : i32
    %c0_i32_0 = arith.constant 0 : i32
    %c0_i32_1 = arith.constant 0 : i32
    return %c0_i32, %c0_i32_0 : i32, i32
  }
  func.func @transform_12(%arg0: i32) -> (i32, i32) {
    %c0_i32 = arith.constant 0 : i32
    %c0_i32_0 = arith.constant 0 : i32
    %c0_i32_1 = arith.constant 0 : i32
    return %c0_i32, %c0_i32_0 : i32, i32
  }
  func.func @transform_13(%arg0: i32) -> (i32, i32) {
    %c0_i32 = arith.constant 0 : i32
    %c0_i32_0 = arith.constant 0 : i32
    return %arg0, %c0_i32 : i32, i32
  }
}

</mosaic_0001>

<llo_original>
// kernel: tile.28
$region0: #{tile.28}
  #allocation0 [shape = 's32[1]{0}', space=sflag, size = 0x4, scoped, tag = 'scoped memory for tile.28']
  %s0 = inlined_call_operand.vmem [shape: f32[32], index: 0, kind: input, shape index: {}]
  %s1 = inlined_call_operand.vmem [shape: f32[27,32], index: 1, kind: output, shape index: {}]
  // Predicated region
  $region2: #{tile.28} parent=0 // pred_check
    _
  $region3: #{tile.28} parent=0 // pred_check_branch
    %3 = sbr.rel (0) target = $region5
  $region4: #{tile.28} parent=0 // pred_region
    _
  $region5: #{tile.28} parent=0 // pred_fallthru
    _
  %v4 = vld [vmem:[%s0] ss:$0 sm:$0xff]
  %5 = vst [vmem:[%s1] sm:$0xff] %v4
  %s6 = scalar_lea.vmem %s1, 8
  %7 = vst [vmem:[%s6] sm:$0xff] %v4
  %s8 = scalar_lea.vmem %s1, 16
  %9 = vst [vmem:[%s8] sm:$0xff] %v4
  %s10 = scalar_lea.vmem %s1, 24
  %11 = vst [vmem:[%s10] sm:$0xff] %v4

// kernel: tile.29
$region0: #{tile.29}
  %s0 = inlined_call_operand.vmem [shape: f32[27,32], index: 0, kind: input, shape index: {}]
  %s1 = inlined_call_operand.vmem [shape: f32[1,864], index: 1, kind: output, shape index: {}]
  $region1: #{tile.29} parent=0
    #allocation0 [shape = 'u8[28672]{0}', space=vmem, size = 0x7000, scoped, tag = 'scoped mem for output reshape']
    %v2 = vld [vmem:[%s0] ss:$4 sm:$0x7f]
    %vm3 = vcmask 261120
    %4 = vst.msk [vmem:[#allocation0] ss:$8 sm:$0xf] %vm3, %v2
    %5 = vst.msk [vmem:[#allocation0] ss:$8 sm:$0x70] %vm3, %v2
    %s6 = scalar_lea.vmem %s0, 3
    %v7 = vld [vmem:[%s6] ss:$4 sm:$0x3f]
    %8 = vrot.lane.b32.xlu0 %v7, 96
    %v9 = vpop.permute.xlu0 %8
    %vm10 = vcmask 1048320
    %11 = vst.msk [vmem:[#allocation0] ss:$8 sm:$0xf] %vm10, %v9
    %12 = vst.msk [vmem:[#allocation0] ss:$8 sm:$0x30] %vm10, %v9
    %s13 = scalar_lea.vmem %s0, 2
    %v14 = vld [vmem:[%s13] ss:$4 sm:$0x7f]
    %15 = vrot.lane.b32.xlu0 %v14, 64
    %v16 = vpop.permute.xlu0 %15
    %vm17 = vcmask 785920
    %18 = vst.msk [vmem:[#allocation0] ss:$8 sm:$0xf] %vm17, %v16
    %19 = vst.msk [vmem:[#allocation0] ss:$8 sm:$0x70] %vm17, %v16
    %s20 = scalar_lea.vmem %s0, 1
    %v21 = vld [vmem:[%s20] ss:$4 sm:$0x7f]
    %22 = vrot.lane.b32.xlu0 %v21, 32
    %v23 = vpop.permute.xlu0 %22
    %vm24 = vcmask 523520
    %25 = vst.msk [vmem:[#allocation0] ss:$8 sm:$0xf] %vm24, %v23
    %26 = vst.msk [vmem:[#allocation0] ss:$8 sm:$0x70] %vm24, %v23
    %s28 = sshll.u32 1, 1
    %s29 = ssub.s32 %s28, 1
    %v31 = vld [vmem:[#allocation0] sm:%s29]
    %s32 = sshll.u32 1, 1
    %s33 = ssub.s32 %s32, 1
    %34 = vst [vmem:[%s1] sm:%s33] %v31
    %s35 = scalar_lea.vmem [#allocation0], 8
    %v36 = vld [vmem:[%s35] sm:%s29]
    %s37 = sshll.u32 1, 1
    %s38 = ssub.s32 %s37, 1
    %s39 = scalar_lea.vmem %s1, 1
    %40 = vst [vmem:[%s39] sm:%s38] %v36
    %s41 = scalar_lea.vmem [#allocation0], 16
    %v42 = vld [vmem:[%s41] sm:%s29]
    %s43 = sshll.u32 1, 1
    %s44 = ssub.s32 %s43, 1
    %s45 = smul.addr 1, 2
    %s46 = scalar_lea.vmem %s1, %s45
    %47 = vst [vmem:[%s46] sm:%s44] %v42
    %s48 = scalar_lea.vmem [#allocation0], 24
    %v49 = vld [vmem:[%s48] sm:%s29]
    %s50 = sshll.u32 1, 1
    %s51 = ssub.s32 %s50, 1
    %s52 = smul.addr 1, 3
    %s53 = scalar_lea.vmem %s1, %s52
    %54 = vst [vmem:[%s53] sm:%s51] %v49
    %s55 = scalar_lea.vmem [#allocation0], 32
    %v56 = vld [vmem:[%s55] sm:%s29]
    %s57 = sshll.u32 1, 1
    %s58 = ssub.s32 %s57, 1
    %s59 = smul.addr 1, 4
    %s60 = scalar_lea.vmem %s1, %s59
    %61 = vst [vmem:[%s60] sm:%s58] %v56
    %s62 = scalar_lea.vmem [#allocation0], 40
    %v63 = vld [vmem:[%s62] sm:%s29]
    %s64 = sshll.u32 1, 1
    %s65 = ssub.s32 %s64, 1
    %s66 = smul.addr 1, 5
    %s67 = scalar_lea.vmem %s1, %s66
    %68 = vst [vmem:[%s67] sm:%s65] %v63
    %s69 = scalar_lea.vmem [#allocation0], 48
    %v70 = vld [vmem:[%s69] sm:%s29]
    %s71 = sshll.u32 1, 1
    %s72 = ssub.s32 %s71, 1
    %s73 = smul.addr 1, 6
    %s74 = scalar_lea.vmem %s1, %s73
    %75 = vst [vmem:[%s74] sm:%s72] %v70

// kernel: tile.23
$region0: #{tile.23}
  #allocation0 [shape = 's32[1]{0}', space=sflag, size = 0x4, scoped, tag = 'scoped memory for tile.23']
  %s0 = inlined_call_operand.vmem [shape: f32[16], index: 0, kind: input, shape index: {}]
  %s1 = inlined_call_operand.vmem [shape: f32[27,16], index: 1, kind: output, shape index: {}]
  // Predicated region
  $region2: #{tile.23} parent=0 // pred_check
    _
  $region3: #{tile.23} parent=0 // pred_check_branch
    %3 = sbr.rel (0) target = $region5
  $region4: #{tile.23} parent=0 // pred_region
    _
  $region5: #{tile.23} parent=0 // pred_fallthru
    _
  %v4 = vld [vmem:[%s0] ss:$0 sm:$0xff]
  %5 = vst [vmem:[%s1] sm:$0xff] %v4
  %s6 = scalar_lea.vmem %s1, 8
  %7 = vst [vmem:[%s6] sm:$0xff] %v4
  %s8 = scalar_lea.vmem %s1, 16
  %9 = vst [vmem:[%s8] sm:$0xff] %v4
  %s10 = scalar_lea.vmem %s1, 24
  %11 = vst [vmem:[%s10] sm:$0xff] %v4

// kernel: tile.24
$region0: #{tile.24}
  %s0 = inlined_call_operand.vmem [shape: f32[27,16], index: 0, kind: input, shape index: {}]
  %s1 = inlined_call_operand.vmem [shape: f32[1,432], index: 1, kind: output, shape index: {}]
  $region1: #{tile.24} parent=0
    #allocation0 [shape = 'u8[16384]{0}', space=vmem, size = 0x4000, scoped, tag = 'scoped mem for output reshape']
    %v2 = vld [vmem:[%s0] ss:$8 sm:$0xf]
    %vm3 = vcmask 130048
    %4 = vst.msk [vmem:[#allocation0] ss:$8 sm:$0xf] %vm3, %v2
    %s5 = scalar_lea.vmem %s0, 7
    %v6 = vld [vmem:[%s5] ss:$8 sm:$0x7]
    %7 = vrot.lane.b32.xlu0 %v6, 112
    %v8 = vpop.permute.xlu0 %7
    %vm9 = vcmask 1048448
    %10 = vst.msk [vmem:[#allocation0] ss:$8 sm:$0x7] %vm9, %v8
    %s11 = scalar_lea.vmem %s0, 6
    %v12 = vld [vmem:[%s11] ss:$8 sm:$0x7]
    %13 = vrot.lane.b32.xlu0 %v12, 96
    %v14 = vpop.permute.xlu0 %13
    %vm15 = vcmask 917248
    %16 = vst.msk [vmem:[#allocation0] ss:$8 sm:$0x7] %vm15, %v14
    %s17 = scalar_lea.vmem %s0, 5
    %v18 = vld [vmem:[%s17] ss:$8 sm:$0x7]
    %19 = vrot.lane.b32.xlu0 %v18, 80
    %v20 = vpop.permute.xlu0 %19
    %vm21 = vcmask 786048
    %22 = vst.msk [vmem:[#allocation0] ss:$8 sm:$0x7] %vm21, %v20
    %s23 = scalar_lea.vmem %s0, 4
    %v24 = vld [vmem:[%s23] ss:$8 sm:$0x7]
    %25 = vrot.lane.b32.xlu0 %v24, 64
    %v26 = vpop.permute.xlu0 %25
    %vm27 = vcmask 654848
    %28 = vst.msk [vmem:[#allocation0] ss:$8 sm:$0x7] %vm27, %v26
    %s29 = scalar_lea.vmem %s0, 3
    %v30 = vld [vmem:[%s29] ss:$8 sm:$0x7]
    %31 = vrot.lane.b32.xlu0 %v30, 48
    %v32 = vpop.permute.xlu0 %31
    %vm33 = vcmask 523648
    %34 = vst.msk [vmem:[#allocation0] ss:$8 sm:$0x7] %vm33, %v32
    %s35 = scalar_lea.vmem %s0, 2
    %v36 = vld [vmem:[%s35] ss:$8 sm:$0xf]
    %37 = vrot.lane.b32.xlu0 %v36, 32
    %v38 = vpop.permute.xlu0 %37
    %vm39 = vcmask 392448
    %40 = vst.msk [vmem:[#allocation0] ss:$8 sm:$0xf] %vm39, %v38
    %s41 = scalar_lea.vmem %s0, 1
    %v42 = vld [vmem:[%s41] ss:$8 sm:$0xf]
    %43 = vrot.lane.b32.xlu0 %v42, 16
    %v44 = vpop.permute.xlu0 %43
    %vm45 = vcmask 261248
    %46 = vst.msk [vmem:[#allocation0] ss:$8 sm:$0xf] %vm45, %v44
    %s48 = sshll.u32 1, 1
    %s49 = ssub.s32 %s48, 1
    %v51 = vld [vmem:[#allocation0] sm:%s49]
    %s52 = sshll.u32 1, 1
    %s53 = ssub.s32 %s52, 1
    %54 = vst [vmem:[%s1] sm:%s53] %v51
    %s55 = scalar_lea.vmem [#allocation0], 8
    %v56 = vld [vmem:[%s55] sm:%s49]
    %s57 = sshll.u32 1, 1
    %s58 = ssub.s32 %s57, 1
    %s59 = scalar_lea.vmem %s1, 1
    %60 = vst [vmem:[%s59] sm:%s58] %v56
    %s61 = scalar_lea.vmem [#allocation0], 16
    %v62 = vld [vmem:[%s61] sm:%s49]
    %s63 = sshll.u32 1, 1
    %s64 = ssub.s32 %s63, 1
    %s65 = smul.addr 1, 2
    %s66 = scalar_lea.vmem %s1, %s65
    %67 = vst [vmem:[%s66] sm:%s64] %v62
    %s68 = scalar_lea.vmem [#allocation0], 24
    %v69 = vld [vmem:[%s68] sm:%s49]
    %s70 = sshll.u32 1, 1
    %s71 = ssub.s32 %s70, 1
    %s72 = smul.addr 1, 3
    %s73 = scalar_lea.vmem %s1, %s72
    %74 = vst [vmem:[%s73] sm:%s71] %v69

// kernel: tile.18
$region0: #{tile.18}
  #allocation0 [shape = 's32[1]{0}', space=sflag, size = 0x4, scoped, tag = 'scoped memory for tile.18']
  %s0 = inlined_call_operand.vmem [shape: f32[8], index: 0, kind: input, shape index: {}]
  %s1 = inlined_call_operand.vmem [shape: f32[27,8], index: 1, kind: output, shape index: {}]
  // Predicated region
  $region2: #{tile.18} parent=0 // pred_check
    _
  $region3: #{tile.18} parent=0 // pred_check_branch
    %3 = sbr.rel (0) target = $region5
  $region4: #{tile.18} parent=0 // pred_region
    _
  $region5: #{tile.18} parent=0 // pred_fallthru
    _
  %v4 = vld [vmem:[%s0] ss:$0 sm:$0xff]
  %5 = vst [vmem:[%s1] sm:$0xff] %v4
  %s6 = scalar_lea.vmem %s1, 8
  %7 = vst [vmem:[%s6] sm:$0xff] %v4
  %s8 = scalar_lea.vmem %s1, 16
  %9 = vst [vmem:[%s8] sm:$0xff] %v4
  %s10 = scalar_lea.vmem %s1, 24
  %11 = vst [vmem:[%s10] sm:$0xff] %v4

// kernel: tile.19
$region0: #{tile.19}
  %s0 = inlined_call_operand.vmem [shape: f32[27,8], index: 0, kind: input, shape index: {}]
  %s1 = inlined_call_operand.vmem [shape: f32[1,216], index: 1, kind: output, shape index: {}]
  $region1: #{tile.19} parent=0
    #allocation0 [shape = 'u8[8192]{0}', space=vmem, size = 0x2000, scoped, tag = 'scoped mem for output reshape']
    %s2 = smov 3
    %v3 = vld [vmem:[%s0] ss:$16 sm:%s2]
    %vm4 = vcmask 64512
    %5 = vst.msk [vmem:[#allocation0] ss:$8 sm:$0x3] %vm4, %v3
    %s6 = scalar_lea.vmem %s0, 15
    %v7 = vld [vmem:[%s6] sm:$0x1]
    %8 = vrot.lane.b32.xlu0 %v7, 120
    %v9 = vpop.permute.xlu0 %8
    %vm10 = vcmask 1048512
    %11 = vst.msk [vmem:[#allocation0] sm:$0x1] %vm10, %v9
    %s12 = scalar_lea.vmem %s0, 14
    %v13 = vld [vmem:[%s12] sm:$0x1]
    %14 = vrot.lane.b32.xlu0 %v13, 112
    %v15 = vpop.permute.xlu0 %14
    %vm16 = vcmask 982912
    %17 = vst.msk [vmem:[#allocation0] sm:$0x1] %vm16, %v15
    %s18 = scalar_lea.vmem %s0, 13
    %v19 = vld [vmem:[%s18] sm:$0x1]
    %20 = vrot.lane.b32.xlu0 %v19, 104
    %v21 = vpop.permute.xlu0 %20
    %vm22 = vcmask 917312
    %23 = vst.msk [vmem:[#allocation0] sm:$0x1] %vm22, %v21
    %s24 = scalar_lea.vmem %s0, 12
    %v25 = vld [vmem:[%s24] sm:$0x1]
    %26 = vrot.lane.b32.xlu0 %v25, 96
    %v27 = vpop.permute.xlu0 %26
    %vm28 = vcmask 851712
    %29 = vst.msk [vmem:[#allocation0] sm:$0x1] %vm28, %v27
    %s30 = scalar_lea.vmem %s0, 11
    %v31 = vld [vmem:[%s30] sm:$0x1]
    %32 = vrot.lane.b32.xlu0 %v31, 88
    %v33 = vpop.permute.xlu0 %32
    %vm34 = vcmask 786112
    %35 = vst.msk [vmem:[#allocation0] sm:$0x1] %vm34, %v33
    %s36 = scalar_lea.vmem %s0, 10
    %s37 = smov 3
    %v38 = vld [vmem:[%s36] ss:$16 sm:%s37]
    %39 = vrot.lane.b32.xlu0 %v38, 80
    %v40 = vpop.permute.xlu0 %39
    %vm41 = vcmask 720512
    %42 = vst.msk [vmem:[#allocation0] ss:$8 sm:$0x3] %vm41, %v40
    %s43 = scalar_lea.vmem %s0, 9
    %s44 = smov 3
    %v45 = vld [vmem:[%s43] ss:$16 sm:%s44]
    %46 = vrot.lane.b32.xlu0 %v45, 72
    %v47 = vpop.permute.xlu0 %46
    %vm48 = vcmask 654912
    %49 = vst.msk [vmem:[#allocation0] ss:$8 sm:$0x3] %vm48, %v47
    %s50 = scalar_lea.vmem %s0, 8
    %s51 = smov 3
    %v52 = vld [vmem:[%s50] ss:$16 sm:%s51]
    %53 = vrot.lane.b32.xlu0 %v52, 64
    %v54 = vpop.permute.xlu0 %53
    %vm55 = vcmask 589312
    %56 = vst.msk [vmem:[#allocation0] ss:$8 sm:$0x3] %vm55, %v54
    %s57 = scalar_lea.vmem %s0, 7
    %s58 = smov 3
    %v59 = vld [vmem:[%s57] ss:$16 sm:%s58]
    %60 = vrot.lane.b32.xlu0 %v59, 56
    %v61 = vpop.permute.xlu0 %60
    %vm62 = vcmask 523712
    %63 = vst.msk [vmem:[#allocation0] ss:$8 sm:$0x3] %vm62, %v61
    %s64 = scalar_lea.vmem %s0, 6
    %s65 = smov 3
    %v66 = vld [vmem:[%s64] ss:$16 sm:%s65]
    %67 = vrot.lane.b32.xlu0 %v66, 48
    %v68 = vpop.permute.xlu0 %67
    %vm69 = vcmask 458112
    %70 = vst.msk [vmem:[#allocation0] ss:$8 sm:$0x3] %vm69, %v68
    %s71 = scalar_lea.vmem %s0, 5
    %s72 = smov 3
    %v73 = vld [vmem:[%s71] ss:$16 sm:%s72]
    %74 = vrot.lane.b32.xlu0 %v73, 40
    %v75 = vpop.permute.xlu0 %74
    %vm76 = vcmask 392512
    %77 = vst.msk [vmem:[#allocation0] ss:$8 sm:$0x3] %vm76, %v75
    %s78 = scalar_lea.vmem %s0, 4
    %s79 = smov 3
    %v80 = vld [vmem:[%s78] ss:$16 sm:%s79]
    %81 = vrot.lane.b32.xlu0 %v80, 32
    %v82 = vpop.permute.xlu0 %81
    %vm83 = vcmask 326912
    %84 = vst.msk [vmem:[#allocation0] ss:$8 sm:$0x3] %vm83, %v82
    %s85 = scalar_lea.vmem %s0, 3
    %s86 = smov 3
    %v87 = vld [vmem:[%s85] ss:$16 sm:%s86]
    %88 = vrot.lane.b32.xlu0 %v87, 24
    %v89 = vpop.permute.xlu0 %88
    %vm90 = vcmask 261312
    %91 = vst.msk [vmem:[#allocation0] ss:$8 sm:$0x3] %vm90, %v89
    %s92 = scalar_lea.vmem %s0, 2
    %s93 = smov 3
    %v94 = vld [vmem:[%s92] ss:$16 sm:%s93]
    %95 = vrot.lane.b32.xlu0 %v94, 16
    %v96 = vpop.permute.xlu0 %95
    %vm97 = vcmask 195712
    %98 = vst.msk [vmem:[#allocation0] ss:$8 sm:$0x3] %vm97, %v96
    %s99 = scalar_lea.vmem %s0, 1
    %s100 = smov 3
    %v101 = vld [vmem:[%s99] ss:$16 sm:%s100]
    %102 = vrot.lane.b32.xlu0 %v101, 8
    %v103 = vpop.permute.xlu0 %102
    %vm104 = vcmask 130112
    %105 = vst.msk [vmem:[#allocation0] ss:$8 sm:$0x3] %vm104, %v103
    %s107 = sshll.u32 1, 1
    %s108 = ssub.s32 %s107, 1
    %v110 = vld [vmem:[#allocation0] sm:%s108]
    %s111 = sshll.u32 1, 1
    %s112 = ssub.s32 %s111, 1
    %113 = vst [vmem:[%s1] sm:%s112] %v110
    %s114 = scalar_lea.vmem [#allocation0], 8
    %v115 = vld [vmem:[%s114] sm:%s108]
    %s116 = sshll.u32 1, 1
    %s117 = ssub.s32 %s116, 1
    %s118 = scalar_lea.vmem %s1, 1
    %119 = vst [vmem:[%s118] sm:%s117] %v115

// kernel: _cnn_forward_impl.1
$region0: #{_cnn_forward_impl.1}
  #allocation0 [shape = 'u32[]', space=smem, size = 0x4, offset = 0x4, fixed_abs, tag = 'smem constant byte address 0x4 - core index']
  #allocation1 [shape = 'u32[144,128]{1,0:T(1,128)}', space=vmem, size = 0x12000, scoped, tag = 'internal scratch']
  %s0 = inlined_call_operand.vmem [shape: f32[8,27], index: 0, kind: input, shape index: {}]
  %s1 = inlined_call_operand.vmem [shape: bf16[27,216], index: 1, kind: input, shape index: {}]
  %s2 = inlined_call_operand.vmem [shape: f32[1,216], index: 2, kind: input, shape index: {}]
  %s3 = inlined_call_operand.vmem [shape: bf16[216,432], index: 3, kind: input, shape index: {}]
  %s4 = inlined_call_operand.vmem [shape: f32[1,432], index: 4, kind: input, shape index: {}]
  %s5 = inlined_call_operand.vmem [shape: bf16[432,864], index: 5, kind: input, shape index: {}]
  %s6 = inlined_call_operand.vmem [shape: f32[1,864], index: 6, kind: input, shape index: {}]
  %s7 = inlined_call_operand.vmem [shape: bf16[864,512], index: 7, kind: input, shape index: {}]
  %s8 = inlined_call_operand.vmem [shape: f32[1,512], index: 8, kind: input, shape index: {}]
  %s9 = inlined_call_operand.vmem [shape: bf16[512,512], index: 9, kind: input, shape index: {}]
  %s10 = inlined_call_operand.vmem [shape: f32[1,512], index: 10, kind: input, shape index: {}]
  %s11 = inlined_call_operand.vmem [shape: bf16[512,128], index: 11, kind: input, shape index: {}]
  %s12 = inlined_call_operand.vmem [shape: f32[1,128], index: 12, kind: input, shape index: {}]
  %s13 = inlined_call_operand.vmem [shape: f32[8,128], index: 13, kind: output, shape index: {}]
  %s14 = sld [smem:[#allocation0]]
  $region62: #{_cnn_forward_impl.1} parent=0
    _
  %s16 = ssub.s32 1, %s14
  %s17 = scalar_select 0, %s16, %s14
  // Predicated region
  $region2: #{_cnn_forward_impl.1} parent=0 // pred_check
    _
  $region3: #{_cnn_forward_impl.1} parent=0 // pred_check_branch
    %19 = sbr.rel (0) target = $region5
  $region4: #{_cnn_forward_impl.1} parent=0 // pred_region
    _
  $region5: #{_cnn_forward_impl.1} parent=0 // pred_fallthru
    _
  // Predicated region
  $region6: #{_cnn_forward_impl.1} parent=0 // pred_check
    _
  $region7: #{_cnn_forward_impl.1} parent=0 // pred_check_branch
    %21 = sbr.rel (0) target = $region9
  $region8: #{_cnn_forward_impl.1} parent=0 // pred_region
    _
  $region9: #{_cnn_forward_impl.1} parent=0 // pred_fallthru
    _
  // Predicated region
  $region10: #{_cnn_forward_impl.1} parent=0 // pred_check
    _
  $region11: #{_cnn_forward_impl.1} parent=0 // pred_check_branch
    %23 = sbr.rel (0) target = $region13
  $region12: #{_cnn_forward_impl.1} parent=0 // pred_region
    _
  $region13: #{_cnn_forward_impl.1} parent=0 // pred_fallthru
    _
  // Predicated region
  $region14: #{_cnn_forward_impl.1} parent=0 // pred_check
    _
  $region15: #{_cnn_forward_impl.1} parent=0 // pred_check_branch
    %25 = sbr.rel (0) target = $region17
  $region16: #{_cnn_forward_impl.1} parent=0 // pred_region
    _
  $region17: #{_cnn_forward_impl.1} parent=0 // pred_fallthru
    _
  // Predicated region
  $region18: #{_cnn_forward_impl.1} parent=0 // pred_check
    _
  $region19: #{_cnn_forward_impl.1} parent=0 // pred_check_branch
    %27 = sbr.rel (0) target = $region21
  $region20: #{_cnn_forward_impl.1} parent=0 // pred_region
    _
  $region21: #{_cnn_forward_impl.1} parent=0 // pred_fallthru
    _
  // Predicated region
  $region22: #{_cnn_forward_impl.1} parent=0 // pred_check
    _
  $region23: #{_cnn_forward_impl.1} parent=0 // pred_check_branch
    %29 = sbr.rel (0) target = $region25
  $region24: #{_cnn_forward_impl.1} parent=0 // pred_region
    _
  $region25: #{_cnn_forward_impl.1} parent=0 // pred_fallthru
    _
  // Predicated region
  $region26: #{_cnn_forward_impl.1} parent=0 // pred_check
    _
  $region27: #{_cnn_forward_impl.1} parent=0 // pred_check_branch
    %31 = sbr.rel (0) target = $region29
  $region28: #{_cnn_forward_impl.1} parent=0 // pred_region
    _
  $region29: #{_cnn_forward_impl.1} parent=0 // pred_fallthru
    _
  // Predicated region
  $region30: #{_cnn_forward_impl.1} parent=0 // pred_check
    _
  $region31: #{_cnn_forward_impl.1} parent=0 // pred_check_branch
    %33 = sbr.rel (0) target = $region33
  $region32: #{_cnn_forward_impl.1} parent=0 // pred_region
    _
  $region33: #{_cnn_forward_impl.1} parent=0 // pred_fallthru
    _
  // Predicated region
  $region34: #{_cnn_forward_impl.1} parent=0 // pred_check
    _
  $region35: #{_cnn_forward_impl.1} parent=0 // pred_check_branch
    %35 = sbr.rel (0) target = $region37
  $region36: #{_cnn_forward_impl.1} parent=0 // pred_region
    _
  $region37: #{_cnn_forward_impl.1} parent=0 // pred_fallthru
    _
  // Predicated region
  $region38: #{_cnn_forward_impl.1} parent=0 // pred_check
    _
  $region39: #{_cnn_forward_impl.1} parent=0 // pred_check_branch
    %37 = sbr.rel (0) target = $region41
  $region40: #{_cnn_forward_impl.1} parent=0 // pred_region
    _
  $region41: #{_cnn_forward_impl.1} parent=0 // pred_fallthru
    _
  // Predicated region
  $region42: #{_cnn_forward_impl.1} parent=0 // pred_check
    _
  $region43: #{_cnn_forward_impl.1} parent=0 // pred_check_branch
    %39 = sbr.rel (0) target = $region45
  $region44: #{_cnn_forward_impl.1} parent=0 // pred_region
    _
  $region45: #{_cnn_forward_impl.1} parent=0 // pred_fallthru
    _
  // Predicated region
  $region46: #{_cnn_forward_impl.1} parent=0 // pred_check
    _
  $region47: #{_cnn_forward_impl.1} parent=0 // pred_check_branch
    %41 = sbr.rel (0) target = $region49
  $region48: #{_cnn_forward_impl.1} parent=0 // pred_region
    _
  $region49: #{_cnn_forward_impl.1} parent=0 // pred_fallthru
    _
  // Predicated region
  $region50: #{_cnn_forward_impl.1} parent=0 // pred_check
    _
  $region51: #{_cnn_forward_impl.1} parent=0 // pred_check_branch
    %43 = sbr.rel (0) target = $region53
  $region52: #{_cnn_forward_impl.1} parent=0 // pred_region
    _
  $region53: #{_cnn_forward_impl.1} parent=0 // pred_fallthru
    _
  %v45 = vld [vmem:[%s0] sm:$0xff]
  %v46 = vpack.c.bf16 %v45, %v45
  %v47 = vld [vmem:[%s1] sm:$0xff]
  %v48 = vld [vmem:[%s1 + $0x8] sm:$0xff]
  %v49 = vld [vmem:[%s1 + $0x10] sm:$0xff]
  %v50 = vld [vmem:[%s1 + $0x18] sm:$0x33]
  %v51 = vld [vmem:[%s2] sm:$0x3]
  %v53 = vlaneseq
  %v54 = vshrl.u32 %v53, 7
  %v55 = vsub.s32 0, %v54
  %v56 = vrot.slane %v51, %v55
  %v57 = vlaneseq
  %v58 = vshrl.u32 %v57, 7
  %v59 = vsub.s32 1, %v58
  %v60 = vrot.slane %v51, %v59
  %v67 = vunpack.c.l.b16 %v47
  %v68 = vunpack.c.h.b16 %v47
  %v69 = vunpack.c.l.b16 %v48
  %v70 = vunpack.c.h.b16 %v48
  %v71 = vunpack.c.l.b16 %v49
  %v72 = vunpack.c.h.b16 %v49
  %v73 = vunpack.c.l.b16 %v50
  %v74 = vunpack.c.h.b16 %v50
  %v75 = vpack.c.b16 %v69, %v67
  %v76 = vpack.c.b16 %v70, %v68
  %v77 = vpack.c.b16 %v73, %v71
  %v78 = vpack.c.b16 %v74, %v72
  %vm81 = vcmask 220160
  %v83 = vsel %vm81, %v46, 0
  %vm85 = vcmask 1044480
  %vm86 = vcmask 1045504
  %v87 = vsel %vm85, 4294967295, 65535
  %v88 = vsel %vm86, %v87, 0
  %v90 = vand.u32 %v77, %v88
  %v93 = vand.u32 %v78, %v88
  %95 = vmatprep.subr.bf16.mxu0 0
  %96 = vmatpush1.bf16.msra.mxu0 0
  %97 = vmatprep.subr.bf16.mxu0 0
  %98 = vmatpush1.bf16.msra.mxu0 0
  %99 = vmatprep.subr.bf16.mxu0 0
  %100 = vmatpush1.bf16.msra.mxu0 0
  %101 = vmatprep.subr.bf16.mxu0 0
  %102 = vmatpush1.bf16.msra.mxu0 0
  %103 = vmatprep.subr.bf16.mxu0 0
  %104 = vmatpush1.bf16.msra.mxu0 0
  %105 = vmatprep.subr.bf16.mxu0 0
  %106 = vmatpush1.bf16.msra.mxu0 0
  %107 = vmatprep.subr.bf16.mxu0 %v93
  %108 = vmatpush1.bf16.msra.mxu0 %v90
  %109 = vmatprep.subr.bf16.mxu0 %v76
  %110 = vmatpush1.bf16.msra.mxu0 %v75
  %111 = vmatprep.subr.bf16.mxu0 0
  %112 = vmatpush2.bf16.msra.mxu0 0
  %113 = vmatprep.subr.bf16.mxu0 0
  %114 = vmatpush2.bf16.msra.mxu0 0
  %115 = vmatprep.subr.bf16.mxu0 0
  %116 = vmatpush2.bf16.msra.mxu0 0
  %117 = vmatprep.subr.bf16.mxu0 0
  %118 = vmatpush2.bf16.msra.mxu0 0
  %119 = vmatprep.subr.bf16.mxu0 0
  %120 = vmatpush2.bf16.msra.mxu0 0
  %121 = vmatprep.subr.bf16.mxu0 0
  %122 = vmatpush2.bf16.msra.mxu0 0
  %123 = vmatprep.subr.bf16.mxu0 0
  %124 = vmatpush2.bf16.msra.mxu0 0
  %125 = vmatprep.subr.bf16.mxu0 0
  %126 = vmatpush2.bf16.msra.mxu0 0
  %127 = vmatprep.mubr.bf16.mxu0 0
  %128 = vmatmul.mubr.bf16.gmra.mxu0 %v83
  %v129 = vpop.f32.mrf.mxu0
  %v130 = vadd.f32 %v56, %v129
  %v131 = vpop.f32.mrf.mxu0
  %v132 = vadd.f32 %v60, %v131
  %v133 = vpop.f32.mrf.mxu0
  %v134 = vpop.f32.mrf.mxu0
  %135 = vdwg.mxu0
  %v136 = vmax.f32 %v130, 0.0
  %v137 = vmax.f32 %v132, 0.0
  %v138 = vpack.c.bf16 %v136, %v136
  %v139 = vpack.c.bf16 %v137, %v137
  %v140 = vld [vmem:[%s3] sm:$0xff]
  %v141 = vld [vmem:[%s3 + $0x8] sm:$0xff]
  %v142 = vld [vmem:[%s3 + $0x10] sm:$0xff]
  %v143 = vld [vmem:[%s3 + $0x18] sm:$0xff]
  %v144 = vld [vmem:[%s3 + $0x20] sm:$0xff]
  %v145 = vld [vmem:[%s3 + $0x28] sm:$0xff]
  %v146 = vld [vmem:[%s3 + $0x30] sm:$0xff]
  %v147 = vld [vmem:[%s3 + $0x38] sm:$0xff]
  %v148 = vld [vmem:[%s3 + $0x40] sm:$0xff]
  %v149 = vld [vmem:[%s3 + $0x48] sm:$0xff]
  %v150 = vld [vmem:[%s3 + $0x50] sm:$0xff]
  %v151 = vld [vmem:[%s3 + $0x58] sm:$0xff]
  %v152 = vld [vmem:[%s3 + $0x60] sm:$0xff]
  %v153 = vld [vmem:[%s3 + $0x68] sm:$0xff]
  %v154 = vld [vmem:[%s3 + $0x70] sm:$0xff]
  %v155 = vld [vmem:[%s3 + $0x78] sm:$0xff]
  %v156 = vld [vmem:[%s3 + $0x80] sm:$0xff]
  %v157 = vld [vmem:[%s3 + $0x88] sm:$0xff]
  %v158 = vld [vmem:[%s3 + $0x90] sm:$0xff]
  %v159 = vld [vmem:[%s3 + $0x98] sm:$0xff]
  %v160 = vld [vmem:[%s3 + $0xa0] sm:$0xff]
  %v161 = vld [vmem:[%s3 + $0xa8] sm:$0xff]
  %v162 = vld [vmem:[%s3 + $0xb0] sm:$0xff]
  %v163 = vld [vmem:[%s3 + $0xb8] sm:$0xff]
  %v164 = vld [vmem:[%s3 + $0xc0] sm:$0xff]
  %v165 = vld [vmem:[%s3 + $0xc8] sm:$0xff]
  %v166 = vld [vmem:[%s3 + $0xd0] sm:$0xff]
  %v167 = vld [vmem:[%s3 + $0xd8] sm:$0xff]
  %v168 = vld [vmem:[%s3 + $0xe0] sm:$0xff]
  %v169 = vld [vmem:[%s3 + $0xe8] sm:$0xff]
  %v170 = vld [vmem:[%s3 + $0xf0] sm:$0xff]
  %v171 = vld [vmem:[%s3 + $0xf8] sm:$0xff]
  %v172 = vld [vmem:[%s3 + $0x100] sm:$0xff]
  %v173 = vld [vmem:[%s3 + $0x108] sm:$0xff]
  %v174 = vld [vmem:[%s3 + $0x110] sm:$0xff]
  %v175 = vld [vmem:[%s3 + $0x118] sm:$0xff]
  %v176 = vld [vmem:[%s3 + $0x120] sm:$0xff]
  %v177 = vld [vmem:[%s3 + $0x128] sm:$0xff]
  %v178 = vld [vmem:[%s3 + $0x130] sm:$0xff]
  %v179 = vld [vmem:[%s3 + $0x138] sm:$0xff]
  %v180 = vld [vmem:[%s3 + $0x140] sm:$0xff]
  %v181 = vld [vmem:[%s3 + $0x148] sm:$0xff]
  %v182 = vld [vmem:[%s3 + $0x150] sm:$0xff]
  %v183 = vld [vmem:[%s3 + $0x158] sm:$0xff]
  %v184 = vld [vmem:[%s3 + $0x160] sm:$0xff]
  %v185 = vld [vmem:[%s3 + $0x168] sm:$0xff]
  %v186 = vld [vmem:[%s3 + $0x170] sm:$0xff]
  %v187 = vld [vmem:[%s3 + $0x178] sm:$0xff]
  %v188 = vld [vmem:[%s3 + $0x180] sm:$0xff]
  %v189 = vld [vmem:[%s3 + $0x188] sm:$0xff]
  %v190 = vld [vmem:[%s3 + $0x190] sm:$0xff]
  %v191 = vld [vmem:[%s3 + $0x198] sm:$0xff]
  %v192 = vld [vmem:[%s3 + $0x1a0] sm:$0xff]
  %v193 = vld [vmem:[%s3 + $0x1a8] sm:$0xff]
  %v194 = vld [vmem:[%s4] sm:$0xf]
  %v196 = vlaneseq
  %v197 = vshrl.u32 %v196, 7
  %v198 = vsub.s32 0, %v197
  %v199 = vrot.slane %v194, %v198
  %v200 = vlaneseq
  %v201 = vshrl.u32 %v200, 7
  %v202 = vsub.s32 1, %v201
  %v203 = vrot.slane %v194, %v202
  %v204 = vlaneseq
  %v205 = vshrl.u32 %v204, 7
  %v206 = vsub.s32 2, %v205
  %v207 = vrot.slane %v194, %v206
  %v208 = vlaneseq
  %v209 = vshrl.u32 %v208, 7
  %v210 = vsub.s32 3, %v209
  %v211 = vrot.slane %v194, %v210
  %v270 = vunpack.c.l.b16 %v140
  %v271 = vunpack.c.h.b16 %v140
  %v272 = vunpack.c.l.b16 %v141
  %v273 = vunpack.c.h.b16 %v141
  %v274 = vunpack.c.l.b16 %v142
  %v275 = vunpack.c.h.b16 %v142
  %v276 = vunpack.c.l.b16 %v143
  %v277 = vunpack.c.h.b16 %v143
  %v278 = vunpack.c.l.b16 %v144
  %v279 = vunpack.c.h.b16 %v144
  %v280 = vunpack.c.l.b16 %v145
  %v281 = vunpack.c.h.b16 %v145
  %v282 = vunpack.c.l.b16 %v146
  %v283 = vunpack.c.h.b16 %v146
  %v284 = vunpack.c.l.b16 %v147
  %v285 = vunpack.c.h.b16 %v147
  %v286 = vunpack.c.l.b16 %v148
  %v287 = vunpack.c.h.b16 %v148
  %v288 = vunpack.c.l.b16 %v149
  %v289 = vunpack.c.h.b16 %v149
  %v290 = vunpack.c.l.b16 %v150
  %v291 = vunpack.c.h.b16 %v150
  %v292 = vunpack.c.l.b16 %v151
  %v293 = vunpack.c.h.b16 %v151
  %v294 = vunpack.c.l.b16 %v152
  %v295 = vunpack.c.h.b16 %v152
  %v296 = vunpack.c.l.b16 %v153
  %v297 = vunpack.c.h.b16 %v153
  %v298 = vunpack.c.l.b16 %v154
  %v299 = vunpack.c.h.b16 %v154
  %v300 = vunpack.c.l.b16 %v155
  %v301 = vunpack.c.h.b16 %v155
  %v302 = vunpack.c.l.b16 %v156
  %v303 = vunpack.c.h.b16 %v156
  %v304 = vunpack.c.l.b16 %v157
  %v305 = vunpack.c.h.b16 %v157
  %v306 = vunpack.c.l.b16 %v158
  %v307 = vunpack.c.h.b16 %v158
  %v308 = vunpack.c.l.b16 %v159
  %v309 = vunpack.c.h.b16 %v159
  %v310 = vunpack.c.l.b16 %v160
  %v311 = vunpack.c.h.b16 %v160
  %v312 = vunpack.c.l.b16 %v161
  %v313 = vunpack.c.h.b16 %v161
  %v314 = vunpack.c.l.b16 %v162
  %v315 = vunpack.c.h.b16 %v162
  %v316 = vunpack.c.l.b16 %v163
  %v317 = vunpack.c.h.b16 %v163
  %v318 = vunpack.c.l.b16 %v164
  %v319 = vunpack.c.h.b16 %v164
  %v320 = vunpack.c.l.b16 %v165
  %v321 = vunpack.c.h.b16 %v165
  %v322 = vunpack.c.l.b16 %v166
  %v323 = vunpack.c.h.b16 %v166
  %v324 = vunpack.c.l.b16 %v167
  %v325 = vunpack.c.h.b16 %v167
  %v326 = vunpack.c.l.b16 %v168
  %v327 = vunpack.c.h.b16 %v168
  %v328 = vunpack.c.l.b16 %v169
  %v329 = vunpack.c.h.b16 %v169
  %v330 = vunpack.c.l.b16 %v170
  %v331 = vunpack.c.h.b16 %v170
  %v332 = vunpack.c.l.b16 %v171
  %v333 = vunpack.c.h.b16 %v171
  %v334 = vunpack.c.l.b16 %v172
  %v335 = vunpack.c.h.b16 %v172
  %v336 = vunpack.c.l.b16 %v173
  %v337 = vunpack.c.h.b16 %v173
  %v338 = vunpack.c.l.b16 %v174
  %v339 = vunpack.c.h.b16 %v174
  %v340 = vunpack.c.l.b16 %v175
  %v341 = vunpack.c.h.b16 %v175
  %v342 = vunpack.c.l.b16 %v176
  %v343 = vunpack.c.h.b16 %v176
  %v344 = vunpack.c.l.b16 %v177
  %v345 = vunpack.c.h.b16 %v177
  %v346 = vunpack.c.l.b16 %v178
  %v347 = vunpack.c.h.b16 %v178
  %v348 = vunpack.c.l.b16 %v179
  %v349 = vunpack.c.h.b16 %v179
  %v350 = vunpack.c.l.b16 %v180
  %v351 = vunpack.c.h.b16 %v180
  %v352 = vunpack.c.l.b16 %v181
  %v353 = vunpack.c.h.b16 %v181
  %v354 = vunpack.c.l.b16 %v182
  %v355 = vunpack.c.h.b16 %v182
  %v356 = vunpack.c.l.b16 %v183
  %v357 = vunpack.c.h.b16 %v183
  %v358 = vunpack.c.l.b16 %v184
  %v359 = vunpack.c.h.b16 %v184
  %v360 = vunpack.c.l.b16 %v185
  %v361 = vunpack.c.h.b16 %v185
  %v362 = vunpack.c.l.b16 %v186
  %v363 = vunpack.c.h.b16 %v186
  %v364 = vunpack.c.l.b16 %v187
  %v365 = vunpack.c.h.b16 %v187
  %v366 = vunpack.c.l.b16 %v188
  %v367 = vunpack.c.h.b16 %v188
  %v368 = vunpack.c.l.b16 %v189
  %v369 = vunpack.c.h.b16 %v189
  %v370 = vunpack.c.l.b16 %v190
  %v371 = vunpack.c.h.b16 %v190
  %v372 = vunpack.c.l.b16 %v191
  %v373 = vunpack.c.h.b16 %v191
  %v374 = vunpack.c.l.b16 %v192
  %v375 = vunpack.c.h.b16 %v192
  %v376 = vunpack.c.l.b16 %v193
  %v377 = vunpack.c.h.b16 %v193
  %v378 = vpack.c.b16 %v274, %v270
  %v379 = vpack.c.b16 %v275, %v271
  %v380 = vpack.c.b16 %v276, %v272
  %v381 = vpack.c.b16 %v277, %v273
  %v382 = vpack.c.b16 %v282, %v278
  %v383 = vpack.c.b16 %v283, %v279
  %v384 = vpack.c.b16 %v284, %v280
  %v385 = vpack.c.b16 %v285, %v281
  %v386 = vpack.c.b16 %v290, %v286
  %v387 = vpack.c.b16 %v291, %v287
  %v388 = vpack.c.b16 %v292, %v288
  %v389 = vpack.c.b16 %v293, %v289
  %v390 = vpack.c.b16 %v298, %v294
  %v391 = vpack.c.b16 %v299, %v295
  %v392 = vpack.c.b16 %v300, %v296
  %v393 = vpack.c.b16 %v301, %v297
  %v394 = vpack.c.b16 %v306, %v302
  %v395 = vpack.c.b16 %v307, %v303
  %v396 = vpack.c.b16 %v308, %v304
  %v397 = vpack.c.b16 %v309, %v305
  %v398 = vpack.c.b16 %v314, %v310
  %v399 = vpack.c.b16 %v315, %v311
  %v400 = vpack.c.b16 %v316, %v312
  %v401 = vpack.c.b16 %v317, %v313
  %v402 = vpack.c.b16 %v322, %v318
  %v403 = vpack.c.b16 %v323, %v319
  %v404 = vpack.c.b16 %v324, %v320
  %v405 = vpack.c.b16 %v325, %v321
  %v406 = vpack.c.b16 %v330, %v326
  %v407 = vpack.c.b16 %v331, %v327
  %v408 = vpack.c.b16 %v332, %v328
  %v409 = vpack.c.b16 %v333, %v329
  %v410 = vpack.c.b16 %v338, %v334
  %v411 = vpack.c.b16 %v339, %v335
  %v412 = vpack.c.b16 %v340, %v336
  %v413 = vpack.c.b16 %v341, %v337
  %v414 = vpack.c.b16 %v346, %v342
  %v415 = vpack.c.b16 %v347, %v343
  %v416 = vpack.c.b16 %v348, %v344
  %v417 = vpack.c.b16 %v349, %v345
  %v418 = vpack.c.b16 %v354, %v350
  %v419 = vpack.c.b16 %v355, %v351
  %v420 = vpack.c.b16 %v356, %v352
  %v421 = vpack.c.b16 %v357, %v353
  %v422 = vpack.c.b16 %v362, %v358
  %v423 = vpack.c.b16 %v363, %v359
  %v424 = vpack.c.b16 %v364, %v360
  %v425 = vpack.c.b16 %v365, %v361
  %v426 = vpack.c.b16 %v370, %v366
  %v427 = vpack.c.b16 %v371, %v367
  %v428 = vpack.c.b16 %v372, %v368
  %v429 = vpack.c.b16 %v373, %v369
  %v430 = vpack.c.b16 %v374, %v374
  %v431 = vpack.c.b16 %v375, %v375
  %v432 = vpack.c.b16 %v376, %v376
  %v433 = vpack.c.b16 %v377, %v377
  %vm486 = vcmask 719872
  %v488 = vsel %vm486, %v139, 0
  %vm490 = vcmask 1043456
  %v492 = vsel %vm490, %v430, 0
  %v495 = vsel %vm490, %v431, 0
  %v498 = vsel %vm490, %v432, 0
  %v501 = vsel %vm490, %v433, 0
  %503 = vmatprep.subr.bf16.mxu0 %v407
  %504 = vmatpush1.bf16.msra.mxu0 %v406
  %505 = vmatprep.subr.bf16.mxu0 %v403
  %506 = vmatpush1.bf16.msra.mxu0 %v402
  %507 = vmatprep.subr.bf16.mxu0 %v399
  %508 = vmatpush1.bf16.msra.mxu0 %v398
  %509 = vmatprep.subr.bf16.mxu0 %v395
  %510 = vmatpush1.bf16.msra.mxu0 %v394
  %511 = vmatprep.subr.bf16.mxu0 %v391
  %512 = vmatpush1.bf16.msra.mxu0 %v390
  %513 = vmatprep.subr.bf16.mxu0 %v387
  %514 = vmatpush1.bf16.msra.mxu0 %v386
  %515 = vmatprep.subr.bf16.mxu0 %v383
  %516 = vmatpush1.bf16.msra.mxu0 %v382
  %517 = vmatprep.subr.bf16.mxu0 %v379
  %518 = vmatpush1.bf16.msra.mxu0 %v378
  %519 = vmatprep.subr.bf16.mxu0 0
  %520 = vmatpush2.bf16.msra.mxu0 0
  %521 = vmatprep.subr.bf16.mxu0 0
  %522 = vmatpush2.bf16.msra.mxu0 0
  %523 = vmatprep.subr.bf16.mxu0 %v495
  %524 = vmatpush2.bf16.msra.mxu0 %v492
  %525 = vmatprep.subr.bf16.mxu0 %v427
  %526 = vmatpush2.bf16.msra.mxu0 %v426
  %527 = vmatprep.subr.bf16.mxu0 %v423
  %528 = vmatpush2.bf16.msra.mxu0 %v422
  %529 = vmatprep.subr.bf16.mxu0 %v419
  %530 = vmatpush2.bf16.msra.mxu0 %v418
  %531 = vmatprep.subr.bf16.mxu0 %v415
  %532 = vmatpush2.bf16.msra.mxu0 %v414
  %533 = vmatprep.subr.bf16.mxu0 %v411
  %534 = vmatpush2.bf16.msra.mxu0 %v410
  %535 = vmatprep.mubr.bf16.mxu0 %v488
  %536 = vmatmul.mubr.bf16.gmra.mxu0 %v138
  %v537 = vpop.f32.mrf.mxu0
  %v538 = vadd.f32 %v199, %v537
  %v539 = vpop.f32.mrf.mxu0
  %v540 = vadd.f32 %v203, %v539
  %v541 = vpop.f32.mrf.mxu0
  %v542 = vpop.f32.mrf.mxu0
  %543 = vdwg.mxu0
  %544 = vmatprep.subr.bf16.mxu0 %v409
  %545 = vmatpush1.bf16.msra.mxu0 %v408
  %546 = vmatprep.subr.bf16.mxu0 %v405
  %547 = vmatpush1.bf16.msra.mxu0 %v404
  %548 = vmatprep.subr.bf16.mxu0 %v401
  %549 = vmatpush1.bf16.msra.mxu0 %v400
  %550 = vmatprep.subr.bf16.mxu0 %v397
  %551 = vmatpush1.bf16.msra.mxu0 %v396
  %552 = vmatprep.subr.bf16.mxu0 %v393
  %553 = vmatpush1.bf16.msra.mxu0 %v392
  %554 = vmatprep.subr.bf16.mxu0 %v389
  %555 = vmatpush1.bf16.msra.mxu0 %v388
  %556 = vmatprep.subr.bf16.mxu0 %v385
  %557 = vmatpush1.bf16.msra.mxu0 %v384
  %558 = vmatprep.subr.bf16.mxu0 %v381
  %559 = vmatpush1.bf16.msra.mxu0 %v380
  %560 = vmatprep.subr.bf16.mxu0 0
  %561 = vmatpush2.bf16.msra.mxu0 0
  %562 = vmatprep.subr.bf16.mxu0 0
  %563 = vmatpush2.bf16.msra.mxu0 0
  %564 = vmatprep.subr.bf16.mxu0 %v501
  %565 = vmatpush2.bf16.msra.mxu0 %v498
  %566 = vmatprep.subr.bf16.mxu0 %v429
  %567 = vmatpush2.bf16.msra.mxu0 %v428
  %568 = vmatprep.subr.bf16.mxu0 %v425
  %569 = vmatpush2.bf16.msra.mxu0 %v424
  %570 = vmatprep.subr.bf16.mxu0 %v421
  %571 = vmatpush2.bf16.msra.mxu0 %v420
  %572 = vmatprep.subr.bf16.mxu0 %v417
  %573 = vmatpush2.bf16.msra.mxu0 %v416
  %574 = vmatprep.subr.bf16.mxu0 %v413
  %575 = vmatpush2.bf16.msra.mxu0 %v412
  %576 = vmatprep.mubr.bf16.mxu0 %v488
  %577 = vmatmul.mubr.bf16.gmra.mxu0 %v138
  %v578 = vpop.f32.mrf.mxu0
  %v579 = vadd.f32 %v207, %v578
  %v580 = vpop.f32.mrf.mxu0
  %v581 = vadd.f32 %v211, %v580
  %v582 = vpop.f32.mrf.mxu0
  %v583 = vpop.f32.mrf.mxu0
  %584 = vdwg.mxu0
  %v585 = vmax.f32 %v538, 0.0
  %v586 = vmax.f32 %v540, 0.0
  %v587 = vmax.f32 %v579, 0.0
  %v588 = vmax.f32 %v581, 0.0
  %v589 = vpack.c.bf16 %v585, %v585
  %v590 = vpack.c.bf16 %v586, %v586
  %v591 = vpack.c.bf16 %v587, %v587
  %v592 = vpack.c.bf16 %v588, %v588
  %v593 = vld [vmem:[%s5] sm:$0xff]
  %v594 = vld [vmem:[%s5 + $0x8] sm:$0xff]
  %v595 = vld [vmem:[%s5 + $0x10] sm:$0xff]
  %v596 = vld [vmem:[%s5 + $0x18] sm:$0xf]
  %v597 = vld [vmem:[%s5 + $0x1c] sm:$0xff]
  %v598 = vld [vmem:[%s5 + $0x24] sm:$0xff]
  %v599 = vld [vmem:[%s5 + $0x2c] sm:$0xff]
  %v600 = vld [vmem:[%s5 + $0x34] sm:$0xf]
  %v601 = vld [vmem:[%s5 + $0x38] sm:$0xff]
  %v602 = vld [vmem:[%s5 + $0x40] sm:$0xff]
  %v603 = vld [vmem:[%s5 + $0x48] sm:$0xff]
  %v604 = vld [vmem:[%s5 + $0x50] sm:$0xf]
  %v605 = vld [vmem:[%s5 + $0x54] sm:$0xff]
  %v606 = vld [vmem:[%s5 + $0x5c] sm:$0xff]
  %v607 = vld [vmem:[%s5 + $0x64] sm:$0xff]
  %v608 = vld [vmem:[%s5 + $0x6c] sm:$0xf]
  %v609 = vld [vmem:[%s5 + $0x70] sm:$0xff]
  %v610 = vld [vmem:[%s5 + $0x78] sm:$0xff]
  %v611 = vld [vmem:[%s5 + $0x80] sm:$0xff]
  %v612 = vld [vmem:[%s5 + $0x88] sm:$0xf]
  %v613 = vld [vmem:[%s5 + $0x8c] sm:$0xff]
  %v614 = vld [vmem:[%s5 + $0x94] sm:$0xff]
  %v615 = vld [vmem:[%s5 + $0x9c] sm:$0xff]
  %v616 = vld [vmem:[%s5 + $0xa4] sm:$0xf]
  %v617 = vld [vmem:[%s5 + $0xa8] sm:$0xff]
  %v618 = vld [vmem:[%s5 + $0xb0] sm:$0xff]
  %v619 = vld [vmem:[%s5 + $0xb8] sm:$0xff]
  %v620 = vld [vmem:[%s5 + $0xc0] sm:$0xf]
  %v621 = vld [vmem:[%s5 + $0xc4] sm:$0xff]
  %v622 = vld [vmem:[%s5 + $0xcc] sm:$0xff]
  %v623 = vld [vmem:[%s5 + $0xd4] sm:$0xff]
  %v624 = vld [vmem:[%s5 + $0xdc] sm:$0xf]
  %v625 = vld [vmem:[%s5 + $0xe0] sm:$0xff]
  %v626 = vld [vmem:[%s5 + $0xe8] sm:$0xff]
  %v627 = vld [vmem:[%s5 + $0xf0] sm:$0xff]
  %v628 = vld [vmem:[%s5 + $0xf8] sm:$0xf]
  %v629 = vld [vmem:[%s5 + $0xfc] sm:$0xff]
  %v630 = vld [vmem:[%s5 + $0x104] sm:$0xff]
  %v631 = vld [vmem:[%s5 + $0x10c] sm:$0xff]
  %v632 = vld [vmem:[%s5 + $0x114] sm:$0xf]
  %v633 = vld [vmem:[%s5 + $0x118] sm:$0xff]
  %v634 = vld [vmem:[%s5 + $0x120] sm:$0xff]
  %v635 = vld [vmem:[%s5 + $0x128] sm:$0xff]
  %v636 = vld [vmem:[%s5 + $0x130] sm:$0xf]
  %v637 = vld [vmem:[%s5 + $0x134] sm:$0xff]
  %v638 = vld [vmem:[%s5 + $0x13c] sm:$0xff]
  %v639 = vld [vmem:[%s5 + $0x144] sm:$0xff]
  %v640 = vld [vmem:[%s5 + $0x14c] sm:$0xf]
  %v641 = vld [vmem:[%s5 + $0x150] sm:$0xff]
  %v642 = vld [vmem:[%s5 + $0x158] sm:$0xff]
  %v643 = vld [vmem:[%s5 + $0x160] sm:$0xff]
  %v644 = vld [vmem:[%s5 + $0x168] sm:$0xf]
  %v645 = vld [vmem:[%s5 + $0x16c] sm:$0xff]
  %v646 = vld [vmem:[%s5 + $0x174] sm:$0xff]
  %v647 = vld [vmem:[%s5 + $0x17c] sm:$0xff]
  %v648 = vld [vmem:[%s5 + $0x184] sm:$0xf]
  %v649 = vld [vmem:[%s5 + $0x188] sm:$0xff]
  %v650 = vld [vmem:[%s5 + $0x190] sm:$0xff]
  %v651 = vld [vmem:[%s5 + $0x198] sm:$0xff]
  %v652 = vld [vmem:[%s5 + $0x1a0] sm:$0xf]
  %v653 = vld [vmem:[%s5 + $0x1a4] sm:$0xff]
  %v654 = vld [vmem:[%s5 + $0x1ac] sm:$0xff]
  %v655 = vld [vmem:[%s5 + $0x1b4] sm:$0xff]
  %v656 = vld [vmem:[%s5 + $0x1bc] sm:$0xf]
  %v657 = vld [vmem:[%s5 + $0x1c0] sm:$0xff]
  %v658 = vld [vmem:[%s5 + $0x1c8] sm:$0xff]
  %v659 = vld [vmem:[%s5 + $0x1d0] sm:$0xff]
  %v660 = vld [vmem:[%s5 + $0x1d8] sm:$0xf]
  %v661 = vld [vmem:[%s5 + $0x1dc] sm:$0xff]
  %v662 = vld [vmem:[%s5 + $0x1e4] sm:$0xff]
  %v663 = vld [vmem:[%s5 + $0x1ec] sm:$0xff]
  %v664 = vld [vmem:[%s5 + $0x1f4] sm:$0xf]
  %v665 = vld [vmem:[%s5 + $0x1f8] sm:$0xff]
  %v666 = vld [vmem:[%s5 + $0x200] sm:$0xff]
  %v667 = vld [vmem:[%s5 + $0x208] sm:$0xff]
  %v668 = vld [vmem:[%s5 + $0x210] sm:$0xf]
  %v669 = vld [vmem:[%s5 + $0x214] sm:$0xff]
  %v670 = vld [vmem:[%s5 + $0x21c] sm:$0xff]
  %v671 = vld [vmem:[%s5 + $0x224] sm:$0xff]
  %v672 = vld [vmem:[%s5 + $0x22c] sm:$0xf]
  %v673 = vld [vmem:[%s5 + $0x230] sm:$0xff]
  %v674 = vld [vmem:[%s5 + $0x238] sm:$0xff]
  %v675 = vld [vmem:[%s5 + $0x240] sm:$0xff]
  %v676 = vld [vmem:[%s5 + $0x248] sm:$0xf]
  %v677 = vld [vmem:[%s5 + $0x24c] sm:$0xff]
  %v678 = vld [vmem:[%s5 + $0x254] sm:$0xff]
  %v679 = vld [vmem:[%s5 + $0x25c] sm:$0xff]
  %v680 = vld [vmem:[%s5 + $0x264] sm:$0xf]
  %v681 = vld [vmem:[%s5 + $0x268] sm:$0xff]
  %v682 = vld [vmem:[%s5 + $0x270] sm:$0xff]
  %v683 = vld [vmem:[%s5 + $0x278] sm:$0xff]
  %v684 = vld [vmem:[%s5 + $0x280] sm:$0xf]
  %v685 = vld [vmem:[%s5 + $0x284] sm:$0xff]
  %v686 = vld [vmem:[%s5 + $0x28c] sm:$0xff]
  %v687 = vld [vmem:[%s5 + $0x294] sm:$0xff]
  %v688 = vld [vmem:[%s5 + $0x29c] sm:$0xf]
  %v689 = vld [vmem:[%s5 + $0x2a0] sm:$0xff]
  %v690 = vld [vmem:[%s5 + $0x2a8] sm:$0xff]
  %v691 = vld [vmem:[%s5 + $0x2b0] sm:$0xff]
  %v692 = vld [vmem:[%s5 + $0x2b8] sm:$0xf]
  %v693 = vld [vmem:[%s5 + $0x2bc] sm:$0xff]
  %v694 = vld [vmem:[%s5 + $0x2c4] sm:$0xff]
  %v695 = vld [vmem:[%s5 + $0x2cc] sm:$0xff]
  %v696 = vld [vmem:[%s5 + $0x2d4] sm:$0xf]
  %v697 = vld [vmem:[%s5 + $0x2d8] sm:$0xff]
  %v698 = vld [vmem:[%s5 + $0x2e0] sm:$0xff]
  %v699 = vld [vmem:[%s5 + $0x2e8] sm:$0xff]
  %v700 = vld [vmem:[%s5 + $0x2f0] sm:$0xf]
  %v701 = vld [vmem:[%s5 + $0x2f4] sm:$0xff]
  %v702 = vld [vmem:[%s5 + $0x2fc] sm:$0xff]
  %v703 = vld [vmem:[%s5 + $0x304] sm:$0xff]
  %v704 = vld [vmem:[%s5 + $0x30c] sm:$0xf]
  %v705 = vld [vmem:[%s5 + $0x310] sm:$0xff]
  %v706 = vld [vmem:[%s5 + $0x318] sm:$0xff]
  %v707 = vld [vmem:[%s5 + $0x320] sm:$0xff]
  %v708 = vld [vmem:[%s5 + $0x328] sm:$0xf]
  %v709 = vld [vmem:[%s5 + $0x32c] sm:$0xff]
  %v710 = vld [vmem:[%s5 + $0x334] sm:$0xff]
  %v711 = vld [vmem:[%s5 + $0x33c] sm:$0xff]
  %v712 = vld [vmem:[%s5 + $0x344] sm:$0xf]
  %v713 = vld [vmem:[%s5 + $0x348] sm:$0xff]
  %v714 = vld [vmem:[%s5 + $0x350] sm:$0xff]
  %v715 = vld [vmem:[%s5 + $0x358] sm:$0xff]
  %v716 = vld [vmem:[%s5 + $0x360] sm:$0xf]
  %v717 = vld [vmem:[%s5 + $0x364] sm:$0xff]
  %v718 = vld [vmem:[%s5 + $0x36c] sm:$0xff]
  %v719 = vld [vmem:[%s5 + $0x374] sm:$0xff]
  %v720 = vld [vmem:[%s5 + $0x37c] sm:$0xf]
  %v721 = vld [vmem:[%s5 + $0x380] sm:$0xff]
  %v722 = vld [vmem:[%s5 + $0x388] sm:$0xff]
  %v723 = vld [vmem:[%s5 + $0x390] sm:$0xff]
  %v724 = vld [vmem:[%s5 + $0x398] sm:$0xf]
  %v725 = vld [vmem:[%s5 + $0x39c] sm:$0xff]
  %v726 = vld [vmem:[%s5 + $0x3a4] sm:$0xff]
  %v727 = vld [vmem:[%s5 + $0x3ac] sm:$0xff]
  %v728 = vld [vmem:[%s5 + $0x3b4] sm:$0xf]
  %v729 = vld [vmem:[%s5 + $0x3b8] sm:$0xff]
  %v730 = vld [vmem:[%s5 + $0x3c0] sm:$0xff]
  %v731 = vld [vmem:[%s5 + $0x3c8] sm:$0xff]
  %v732 = vld [vmem:[%s5 + $0x3d0] sm:$0xf]
  %v733 = vld [vmem:[%s5 + $0x3d4] sm:$0xff]
  %v734 = vld [vmem:[%s5 + $0x3dc] sm:$0xff]
  %v735 = vld [vmem:[%s5 + $0x3e4] sm:$0xff]
  %v736 = vld [vmem:[%s5 + $0x3ec] sm:$0xf]
  %v737 = vld [vmem:[%s5 + $0x3f0] sm:$0xff]
  %v738 = vld [vmem:[%s5 + $0x3f8] sm:$0xff]
  %v739 = vld [vmem:[%s5 + $0x400] sm:$0xff]
  %v740 = vld [vmem:[%s5 + $0x408] sm:$0xf]
  %v741 = vld [vmem:[%s5 + $0x40c] sm:$0xff]
  %v742 = vld [vmem:[%s5 + $0x414] sm:$0xff]
  %v743 = vld [vmem:[%s5 + $0x41c] sm:$0xff]
  %v744 = vld [vmem:[%s5 + $0x424] sm:$0xf]
  %v745 = vld [vmem:[%s5 + $0x428] sm:$0xff]
  %v746 = vld [vmem:[%s5 + $0x430] sm:$0xff]
  %v747 = vld [vmem:[%s5 + $0x438] sm:$0xff]
  %v748 = vld [vmem:[%s5 + $0x440] sm:$0xf]
  %v749 = vld [vmem:[%s5 + $0x444] sm:$0xff]
  %v750 = vld [vmem:[%s5 + $0x44c] sm:$0xff]
  %v751 = vld [vmem:[%s5 + $0x454] sm:$0xff]
  %v752 = vld [vmem:[%s5 + $0x45c] sm:$0xf]
  %v753 = vld [vmem:[%s5 + $0x460] sm:$0xff]
  %v754 = vld [vmem:[%s5 + $0x468] sm:$0xff]
  %v755 = vld [vmem:[%s5 + $0x470] sm:$0xff]
  %v756 = vld [vmem:[%s5 + $0x478] sm:$0xf]
  %v757 = vld [vmem:[%s5 + $0x47c] sm:$0xff]
  %v758 = vld [vmem:[%s5 + $0x484] sm:$0xff]
  %v759 = vld [vmem:[%s5 + $0x48c] sm:$0xff]
  %v760 = vld [vmem:[%s5 + $0x494] sm:$0xf]
  %v761 = vld [vmem:[%s5 + $0x498] sm:$0xff]
  %v762 = vld [vmem:[%s5 + $0x4a0] sm:$0xff]
  %v763 = vld [vmem:[%s5 + $0x4a8] sm:$0xff]
  %v764 = vld [vmem:[%s5 + $0x4b0] sm:$0xf]
  %v765 = vld [vmem:[%s5 + $0x4b4] sm:$0xff]
  %v766 = vld [vmem:[%s5 + $0x4bc] sm:$0xff]
  %v767 = vld [vmem:[%s5 + $0x4c4] sm:$0xff]
  %v768 = vld [vmem:[%s5 + $0x4cc] sm:$0xf]
  %v769 = vld [vmem:[%s5 + $0x4d0] sm:$0xff]
  %v770 = vld [vmem:[%s5 + $0x4d8] sm:$0xff]
  %v771 = vld [vmem:[%s5 + $0x4e0] sm:$0xff]
  %v772 = vld [vmem:[%s5 + $0x4e8] sm:$0xf]
  %v773 = vld [vmem:[%s5 + $0x4ec] sm:$0xff]
  %v774 = vld [vmem:[%s5 + $0x4f4] sm:$0xff]
  %v775 = vld [vmem:[%s5 + $0x4fc] sm:$0xff]
  %v776 = vld [vmem:[%s5 + $0x504] sm:$0xf]
  %v777 = vld [vmem:[%s5 + $0x508] sm:$0xff]
  %v778 = vld [vmem:[%s5 + $0x510] sm:$0xff]
  %v779 = vld [vmem:[%s5 + $0x518] sm:$0xff]
  %v780 = vld [vmem:[%s5 + $0x520] sm:$0xf]
  %v781 = vld [vmem:[%s5 + $0x524] sm:$0xff]
  %v782 = vld [vmem:[%s5 + $0x52c] sm:$0xff]
  %v783 = vld [vmem:[%s5 + $0x534] sm:$0xff]
  %v784 = vld [vmem:[%s5 + $0x53c] sm:$0xf]
  %v785 = vld [vmem:[%s5 + $0x540] sm:$0xff]
  %v786 = vld [vmem:[%s5 + $0x548] sm:$0xff]
  %v787 = vld [vmem:[%s5 + $0x550] sm:$0xff]
  %v788 = vld [vmem:[%s5 + $0x558] sm:$0xf]
  %v789 = vld [vmem:[%s5 + $0x55c] sm:$0xff]
  %v790 = vld [vmem:[%s5 + $0x564] sm:$0xff]
  %v791 = vld [vmem:[%s5 + $0x56c] sm:$0xff]
  %v792 = vld [vmem:[%s5 + $0x574] sm:$0xf]
  %v793 = vld [vmem:[%s5 + $0x578] sm:$0xff]
  %v794 = vld [vmem:[%s5 + $0x580] sm:$0xff]
  %v795 = vld [vmem:[%s5 + $0x588] sm:$0xff]
  %v796 = vld [vmem:[%s5 + $0x590] sm:$0xf]
  %v797 = vld [vmem:[%s5 + $0x594] sm:$0xff]
  %v798 = vld [vmem:[%s5 + $0x59c] sm:$0xff]
  %v799 = vld [vmem:[%s5 + $0x5a4] sm:$0xff]
  %v800 = vld [vmem:[%s5 + $0x5ac] sm:$0xf]
  %v801 = vld [vmem:[%s5 + $0x5b0] sm:$0xff]
  %v802 = vld [vmem:[%s5 + $0x5b8] sm:$0xff]
  %v803 = vld [vmem:[%s5 + $0x5c0] sm:$0xff]
  %v804 = vld [vmem:[%s5 + $0x5c8] sm:$0xf]
  %v805 = vld [vmem:[%s5 + $0x5cc] sm:$0xff]
  %v806 = vld [vmem:[%s5 + $0x5d4] sm:$0xff]
  %v807 = vld [vmem:[%s5 + $0x5dc] sm:$0xff]
  %v808 = vld [vmem:[%s5 + $0x5e4] sm:$0xf]
  %v809 = vld [vmem:[%s6] sm:$0x7f]
  %v811 = vlaneseq
  %v812 = vshrl.u32 %v811, 7
  %v813 = vsub.s32 0, %v812
  %v814 = vrot.slane %v809, %v813
  %v815 = vlaneseq
  %v816 = vshrl.u32 %v815, 7
  %v817 = vsub.s32 1, %v816
  %v818 = vrot.slane %v809, %v817
  %v819 = vlaneseq
  %v820 = vshrl.u32 %v819, 7
  %v821 = vsub.s32 2, %v820
  %v822 = vrot.slane %v809, %v821
  %v823 = vlaneseq
  %v824 = vshrl.u32 %v823, 7
  %v825 = vsub.s32 3, %v824
  %v826 = vrot.slane %v809, %v825
  %v827 = vlaneseq
  %v828 = vshrl.u32 %v827, 7
  %v829 = vsub.s32 4, %v828
  %v830 = vrot.slane %v809, %v829
  %v831 = vlaneseq
  %v832 = vshrl.u32 %v831, 7
  %v833 = vsub.s32 5, %v832
  %v834 = vrot.slane %v809, %v833
  %v835 = vlaneseq
  %v836 = vshrl.u32 %v835, 7
  %v837 = vsub.s32 6, %v836
  %v838 = vrot.slane %v809, %v837
  %v1062 = vunpack.c.l.b16 %v593
  %v1063 = vunpack.c.h.b16 %v593
  %v1064 = vunpack.c.l.b16 %v594
  %v1065 = vunpack.c.h.b16 %v594
  %v1066 = vunpack.c.l.b16 %v595
  %v1067 = vunpack.c.h.b16 %v595
  %v1068 = vunpack.c.l.b16 %v596
  %v1069 = vunpack.c.l.b16 %v597
  %v1070 = vunpack.c.h.b16 %v597
  %v1071 = vunpack.c.l.b16 %v598
  %v1072 = vunpack.c.h.b16 %v598
  %v1073 = vunpack.c.l.b16 %v599
  %v1074 = vunpack.c.h.b16 %v599
  %v1075 = vunpack.c.l.b16 %v600
  %v1076 = vunpack.c.l.b16 %v601
  %v1077 = vunpack.c.h.b16 %v601
  %v1078 = vunpack.c.l.b16 %v602
  %v1079 = vunpack.c.h.b16 %v602
  %v1080 = vunpack.c.l.b16 %v603
  %v1081 = vunpack.c.h.b16 %v603
  %v1082 = vunpack.c.l.b16 %v604
  %v1083 = vunpack.c.l.b16 %v605
  %v1084 = vunpack.c.h.b16 %v605
  %v1085 = vunpack.c.l.b16 %v606
  %v1086 = vunpack.c.h.b16 %v606
  %v1087 = vunpack.c.l.b16 %v607
  %v1088 = vunpack.c.h.b16 %v607
  %v1089 = vunpack.c.l.b16 %v608
  %v1090 = vunpack.c.l.b16 %v609
  %v1091 = vunpack.c.h.b16 %v609
  %v1092 = vunpack.c.l.b16 %v610
  %v1093 = vunpack.c.h.b16 %v610
  %v1094 = vunpack.c.l.b16 %v611
  %v1095 = vunpack.c.h.b16 %v611
  %v1096 = vunpack.c.l.b16 %v612
  %v1097 = vunpack.c.l.b16 %v613
  %v1098 = vunpack.c.h.b16 %v613
  %v1099 = vunpack.c.l.b16 %v614
  %v1100 = vunpack.c.h.b16 %v614
  %v1101 = vunpack.c.l.b16 %v615
  %v1102 = vunpack.c.h.b16 %v615
  %v1103 = vunpack.c.l.b16 %v616
  %v1104 = vunpack.c.l.b16 %v617
  %v1105 = vunpack.c.h.b16 %v617
  %v1106 = vunpack.c.l.b16 %v618
  %v1107 = vunpack.c.h.b16 %v618
  %v1108 = vunpack.c.l.b16 %v619
  %v1109 = vunpack.c.h.b16 %v619
  %v1110 = vunpack.c.l.b16 %v620
  %v1111 = vunpack.c.l.b16 %v621
  %v1112 = vunpack.c.h.b16 %v621
  %v1113 = vunpack.c.l.b16 %v622
  %v1114 = vunpack.c.h.b16 %v622
  %v1115 = vunpack.c.l.b16 %v623
  %v1116 = vunpack.c.h.b16 %v623
  %v1117 = vunpack.c.l.b16 %v624
  %v1118 = vunpack.c.l.b16 %v625
  %v1119 = vunpack.c.h.b16 %v625
  %v1120 = vunpack.c.l.b16 %v626
  %v1121 = vunpack.c.h.b16 %v626
  %v1122 = vunpack.c.l.b16 %v627
  %v1123 = vunpack.c.h.b16 %v627
  %v1124 = vunpack.c.l.b16 %v628
  %v1125 = vunpack.c.l.b16 %v629
  %v1126 = vunpack.c.h.b16 %v629
  %v1127 = vunpack.c.l.b16 %v630
  %v1128 = vunpack.c.h.b16 %v630
  %v1129 = vunpack.c.l.b16 %v631
  %v1130 = vunpack.c.h.b16 %v631
  %v1131 = vunpack.c.l.b16 %v632
  %v1132 = vunpack.c.l.b16 %v633
  %v1133 = vunpack.c.h.b16 %v633
  %v1134 = vunpack.c.l.b16 %v634
  %v1135 = vunpack.c.h.b16 %v634
  %v1136 = vunpack.c.l.b16 %v635
  %v1137 = vunpack.c.h.b16 %v635
  %v1138 = vunpack.c.l.b16 %v636
  %v1139 = vunpack.c.l.b16 %v637
  %v1140 = vunpack.c.h.b16 %v637
  %v1141 = vunpack.c.l.b16 %v638
  %v1142 = vunpack.c.h.b16 %v638
  %v1143 = vunpack.c.l.b16 %v639
  %v1144 = vunpack.c.h.b16 %v639
  %v1145 = vunpack.c.l.b16 %v640
  %v1146 = vunpack.c.l.b16 %v641
  %v1147 = vunpack.c.h.b16 %v641
  %v1148 = vunpack.c.l.b16 %v642
  %v1149 = vunpack.c.h.b16 %v642
  %v1150 = vunpack.c.l.b16 %v643
  %v1151 = vunpack.c.h.b16 %v643
  %v1152 = vunpack.c.l.b16 %v644
  %v1153 = vunpack.c.l.b16 %v645
  %v1154 = vunpack.c.h.b16 %v645
  %v1155 = vunpack.c.l.b16 %v646
  %v1156 = vunpack.c.h.b16 %v646
  %v1157 = vunpack.c.l.b16 %v647
  %v1158 = vunpack.c.h.b16 %v647
  %v1159 = vunpack.c.l.b16 %v648
  %v1160 = vunpack.c.l.b16 %v649
  %v1161 = vunpack.c.h.b16 %v649
  %v1162 = vunpack.c.l.b16 %v650
  %v1163 = vunpack.c.h.b16 %v650
  %v1164 = vunpack.c.l.b16 %v651
  %v1165 = vunpack.c.h.b16 %v651
  %v1166 = vunpack.c.l.b16 %v652
  %v1167 = vunpack.c.l.b16 %v653
  %v1168 = vunpack.c.h.b16 %v653
  %v1169 = vunpack.c.l.b16 %v654
  %v1170 = vunpack.c.h.b16 %v654
  %v1171 = vunpack.c.l.b16 %v655
  %v1172 = vunpack.c.h.b16 %v655
  %v1173 = vunpack.c.l.b16 %v656
  %v1174 = vunpack.c.l.b16 %v657
  %v1175 = vunpack.c.h.b16 %v657
  %v1176 = vunpack.c.l.b16 %v658
  %v1177 = vunpack.c.h.b16 %v658
  %v1178 = vunpack.c.l.b16 %v659
  %v1179 = vunpack.c.h.b16 %v659
  %v1180 = vunpack.c.l.b16 %v660
  %v1181 = vunpack.c.l.b16 %v661
  %v1182 = vunpack.c.h.b16 %v661
  %v1183 = vunpack.c.l.b16 %v662
  %v1184 = vunpack.c.h.b16 %v662
  %v1185 = vunpack.c.l.b16 %v663
  %v1186 = vunpack.c.h.b16 %v663
  %v1187 = vunpack.c.l.b16 %v664
  %v1188 = vunpack.c.l.b16 %v665
  %v1189 = vunpack.c.h.b16 %v665
  %v1190 = vunpack.c.l.b16 %v666
  %v1191 = vunpack.c.h.b16 %v666
  %v1192 = vunpack.c.l.b16 %v667
  %v1193 = vunpack.c.h.b16 %v667
  %v1194 = vunpack.c.l.b16 %v668
  %v1195 = vunpack.c.l.b16 %v669
  %v1196 = vunpack.c.h.b16 %v669
  %v1197 = vunpack.c.l.b16 %v670
  %v1198 = vunpack.c.h.b16 %v670
  %v1199 = vunpack.c.l.b16 %v671
  %v1200 = vunpack.c.h.b16 %v671
  %v1201 = vunpack.c.l.b16 %v672
  %v1202 = vunpack.c.l.b16 %v673
  %v1203 = vunpack.c.h.b16 %v673
  %v1204 = vunpack.c.l.b16 %v674
  %v1205 = vunpack.c.h.b16 %v674
  %v1206 = vunpack.c.l.b16 %v675
  %v1207 = vunpack.c.h.b16 %v675
  %v1208 = vunpack.c.l.b16 %v676
  %v1209 = vunpack.c.l.b16 %v677
  %v1210 = vunpack.c.h.b16 %v677
  %v1211 = vunpack.c.l.b16 %v678
  %v1212 = vunpack.c.h.b16 %v678
  %v1213 = vunpack.c.l.b16 %v679
  %v1214 = vunpack.c.h.b16 %v679
  %v1215 = vunpack.c.l.b16 %v680
  %v1216 = vunpack.c.l.b16 %v681
  %v1217 = vunpack.c.h.b16 %v681
  %v1218 = vunpack.c.l.b16 %v682
  %v1219 = vunpack.c.h.b16 %v682
  %v1220 = vunpack.c.l.b16 %v683
  %v1221 = vunpack.c.h.b16 %v683
  %v1222 = vunpack.c.l.b16 %v684
  %v1223 = vunpack.c.l.b16 %v685
  %v1224 = vunpack.c.h.b16 %v685
  %v1225 = vunpack.c.l.b16 %v686
  %v1226 = vunpack.c.h.b16 %v686
  %v1227 = vunpack.c.l.b16 %v687
  %v1228 = vunpack.c.h.b16 %v687
  %v1229 = vunpack.c.l.b16 %v688
  %v1230 = vunpack.c.l.b16 %v689
  %v1231 = vunpack.c.h.b16 %v689
  %v1232 = vunpack.c.l.b16 %v690
  %v1233 = vunpack.c.h.b16 %v690
  %v1234 = vunpack.c.l.b16 %v691
  %v1235 = vunpack.c.h.b16 %v691
  %v1236 = vunpack.c.l.b16 %v692
  %v1237 = vunpack.c.l.b16 %v693
  %v1238 = vunpack.c.h.b16 %v693
  %v1239 = vunpack.c.l.b16 %v694
  %v1240 = vunpack.c.h.b16 %v694
  %v1241 = vunpack.c.l.b16 %v695
  %v1242 = vunpack.c.h.b16 %v695
  %v1243 = vunpack.c.l.b16 %v696
  %v1244 = vunpack.c.l.b16 %v697
  %v1245 = vunpack.c.h.b16 %v697
  %v1246 = vunpack.c.l.b16 %v698
  %v1247 = vunpack.c.h.b16 %v698
  %v1248 = vunpack.c.l.b16 %v699
  %v1249 = vunpack.c.h.b16 %v699
  %v1250 = vunpack.c.l.b16 %v700
  %v1251 = vunpack.c.l.b16 %v701
  %v1252 = vunpack.c.h.b16 %v701
  %v1253 = vunpack.c.l.b16 %v702
  %v1254 = vunpack.c.h.b16 %v702
  %v1255 = vunpack.c.l.b16 %v703
  %v1256 = vunpack.c.h.b16 %v703
  %v1257 = vunpack.c.l.b16 %v704
  %v1258 = vunpack.c.l.b16 %v705
  %v1259 = vunpack.c.h.b16 %v705
  %v1260 = vunpack.c.l.b16 %v706
  %v1261 = vunpack.c.h.b16 %v706
  %v1262 = vunpack.c.l.b16 %v707
  %v1263 = vunpack.c.h.b16 %v707
  %v1264 = vunpack.c.l.b16 %v708
  %v1265 = vunpack.c.l.b16 %v709
  %v1266 = vunpack.c.h.b16 %v709
  %v1267 = vunpack.c.l.b16 %v710
  %v1268 = vunpack.c.h.b16 %v710
  %v1269 = vunpack.c.l.b16 %v711
  %v1270 = vunpack.c.h.b16 %v711
  %v1271 = vunpack.c.l.b16 %v712
  %v1272 = vunpack.c.l.b16 %v713
  %v1273 = vunpack.c.h.b16 %v713
  %v1274 = vunpack.c.l.b16 %v714
  %v1275 = vunpack.c.h.b16 %v714
  %v1276 = vunpack.c.l.b16 %v715
  %v1277 = vunpack.c.h.b16 %v715
  %v1278 = vunpack.c.l.b16 %v716
  %v1279 = vunpack.c.l.b16 %v717
  %v1280 = vunpack.c.h.b16 %v717
  %v1281 = vunpack.c.l.b16 %v718
  %v1282 = vunpack.c.h.b16 %v718
  %v1283 = vunpack.c.l.b16 %v719
  %v1284 = vunpack.c.h.b16 %v719
  %v1285 = vunpack.c.l.b16 %v720
  %v1286 = vunpack.c.l.b16 %v721
  %v1287 = vunpack.c.h.b16 %v721
  %v1288 = vunpack.c.l.b16 %v722
  %v1289 = vunpack.c.h.b16 %v722
  %v1290 = vunpack.c.l.b16 %v723
  %v1291 = vunpack.c.h.b16 %v723
  %v1292 = vunpack.c.l.b16 %v724
  %v1293 = vunpack.c.l.b16 %v725
  %v1294 = vunpack.c.h.b16 %v725
  %v1295 = vunpack.c.l.b16 %v726
  %v1296 = vunpack.c.h.b16 %v726
  %v1297 = vunpack.c.l.b16 %v727
  %v1298 = vunpack.c.h.b16 %v727
  %v1299 = vunpack.c.l.b16 %v728
  %v1300 = vunpack.c.l.b16 %v729
  %v1301 = vunpack.c.h.b16 %v729
  %v1302 = vunpack.c.l.b16 %v730
  %v1303 = vunpack.c.h.b16 %v730
  %v1304 = vunpack.c.l.b16 %v731
  %v1305 = vunpack.c.h.b16 %v731
  %v1306 = vunpack.c.l.b16 %v732
  %v1307 = vunpack.c.l.b16 %v733
  %v1308 = vunpack.c.h.b16 %v733
  %v1309 = vunpack.c.l.b16 %v734
  %v1310 = vunpack.c.h.b16 %v734
  %v1311 = vunpack.c.l.b16 %v735
  %v1312 = vunpack.c.h.b16 %v735
  %v1313 = vunpack.c.l.b16 %v736
  %v1314 = vunpack.c.l.b16 %v737
  %v1315 = vunpack.c.h.b16 %v737
  %v1316 = vunpack.c.l.b16 %v738
  %v1317 = vunpack.c.h.b16 %v738
  %v1318 = vunpack.c.l.b16 %v739
  %v1319 = vunpack.c.h.b16 %v739
  %v1320 = vunpack.c.l.b16 %v740
  %v1321 = vunpack.c.l.b16 %v741
  %v1322 = vunpack.c.h.b16 %v741
  %v1323 = vunpack.c.l.b16 %v742
  %v1324 = vunpack.c.h.b16 %v742
  %v1325 = vunpack.c.l.b16 %v743
  %v1326 = vunpack.c.h.b16 %v743
  %v1327 = vunpack.c.l.b16 %v744
  %v1328 = vunpack.c.l.b16 %v745
  %v1329 = vunpack.c.h.b16 %v745
  %v1330 = vunpack.c.l.b16 %v746
  %v1331 = vunpack.c.h.b16 %v746
  %v1332 = vunpack.c.l.b16 %v747
  %v1333 = vunpack.c.h.b16 %v747
  %v1334 = vunpack.c.l.b16 %v748
  %v1335 = vunpack.c.l.b16 %v749
  %v1336 = vunpack.c.h.b16 %v749
  %v1337 = vunpack.c.l.b16 %v750
  %v1338 = vunpack.c.h.b16 %v750
  %v1339 = vunpack.c.l.b16 %v751
  %v1340 = vunpack.c.h.b16 %v751
  %v1341 = vunpack.c.l.b16 %v752
  %v1342 = vunpack.c.l.b16 %v753
  %v1343 = vunpack.c.h.b16 %v753
  %v1344 = vunpack.c.l.b16 %v754
  %v1345 = vunpack.c.h.b16 %v754
  %v1346 = vunpack.c.l.b16 %v755
  %v1347 = vunpack.c.h.b16 %v755
  %v1348 = vunpack.c.l.b16 %v756
  %v1349 = vunpack.c.l.b16 %v757
  %v1350 = vunpack.c.h.b16 %v757
  %v1351 = vunpack.c.l.b16 %v758
  %v1352 = vunpack.c.h.b16 %v758
  %v1353 = vunpack.c.l.b16 %v759
  %v1354 = vunpack.c.h.b16 %v759
  %v1355 = vunpack.c.l.b16 %v760
  %v1356 = vunpack.c.l.b16 %v761
  %v1357 = vunpack.c.h.b16 %v761
  %v1358 = vunpack.c.l.b16 %v762
  %v1359 = vunpack.c.h.b16 %v762
  %v1360 = vunpack.c.l.b16 %v763
  %v1361 = vunpack.c.h.b16 %v763
  %v1362 = vunpack.c.l.b16 %v764
  %v1363 = vunpack.c.l.b16 %v765
  %v1364 = vunpack.c.h.b16 %v765
  %v1365 = vunpack.c.l.b16 %v766
  %v1366 = vunpack.c.h.b16 %v766
  %v1367 = vunpack.c.l.b16 %v767
  %v1368 = vunpack.c.h.b16 %v767
  %v1369 = vunpack.c.l.b16 %v768
  %v1370 = vunpack.c.l.b16 %v769
  %v1371 = vunpack.c.h.b16 %v769
  %v1372 = vunpack.c.l.b16 %v770
  %v1373 = vunpack.c.h.b16 %v770
  %v1374 = vunpack.c.l.b16 %v771
  %v1375 = vunpack.c.h.b16 %v771
  %v1376 = vunpack.c.l.b16 %v772
  %v1377 = vunpack.c.l.b16 %v773
  %v1378 = vunpack.c.h.b16 %v773
  %v1379 = vunpack.c.l.b16 %v774
  %v1380 = vunpack.c.h.b16 %v774
  %v1381 = vunpack.c.l.b16 %v775
  %v1382 = vunpack.c.h.b16 %v775
  %v1383 = vunpack.c.l.b16 %v776
  %v1384 = vunpack.c.l.b16 %v777
  %v1385 = vunpack.c.h.b16 %v777
  %v1386 = vunpack.c.l.b16 %v778
  %v1387 = vunpack.c.h.b16 %v778
  %v1388 = vunpack.c.l.b16 %v779
  %v1389 = vunpack.c.h.b16 %v779
  %v1390 = vunpack.c.l.b16 %v780
  %v1391 = vunpack.c.l.b16 %v781
  %v1392 = vunpack.c.h.b16 %v781
  %v1393 = vunpack.c.l.b16 %v782
  %v1394 = vunpack.c.h.b16 %v782
  %v1395 = vunpack.c.l.b16 %v783
  %v1396 = vunpack.c.h.b16 %v783
  %v1397 = vunpack.c.l.b16 %v784
  %v1398 = vunpack.c.l.b16 %v785
  %v1399 = vunpack.c.h.b16 %v785
  %v1400 = vunpack.c.l.b16 %v786
  %v1401 = vunpack.c.h.b16 %v786
  %v1402 = vunpack.c.l.b16 %v787
  %v1403 = vunpack.c.h.b16 %v787
  %v1404 = vunpack.c.l.b16 %v788
  %v1405 = vunpack.c.l.b16 %v789
  %v1406 = vunpack.c.h.b16 %v789
  %v1407 = vunpack.c.l.b16 %v790
  %v1408 = vunpack.c.h.b16 %v790
  %v1409 = vunpack.c.l.b16 %v791
  %v1410 = vunpack.c.h.b16 %v791
  %v1411 = vunpack.c.l.b16 %v792
  %v1412 = vunpack.c.l.b16 %v793
  %v1413 = vunpack.c.h.b16 %v793
  %v1414 = vunpack.c.l.b16 %v794
  %v1415 = vunpack.c.h.b16 %v794
  %v1416 = vunpack.c.l.b16 %v795
  %v1417 = vunpack.c.h.b16 %v795
  %v1418 = vunpack.c.l.b16 %v796
  %v1419 = vunpack.c.l.b16 %v797
  %v1420 = vunpack.c.h.b16 %v797
  %v1421 = vunpack.c.l.b16 %v798
  %v1422 = vunpack.c.h.b16 %v798
  %v1423 = vunpack.c.l.b16 %v799
  %v1424 = vunpack.c.h.b16 %v799
  %v1425 = vunpack.c.l.b16 %v800
  %v1426 = vunpack.c.l.b16 %v801
  %v1427 = vunpack.c.h.b16 %v801
  %v1428 = vunpack.c.l.b16 %v802
  %v1429 = vunpack.c.h.b16 %v802
  %v1430 = vunpack.c.l.b16 %v803
  %v1431 = vunpack.c.h.b16 %v803
  %v1432 = vunpack.c.l.b16 %v804
  %v1433 = vunpack.c.l.b16 %v805
  %v1434 = vunpack.c.h.b16 %v805
  %v1435 = vunpack.c.l.b16 %v806
  %v1436 = vunpack.c.h.b16 %v806
  %v1437 = vunpack.c.l.b16 %v807
  %v1438 = vunpack.c.h.b16 %v807
  %v1439 = vunpack.c.l.b16 %v808
  %v1440 = vpack.c.b16 %v1069, %v1062
  %v1441 = vpack.c.b16 %v1070, %v1063
  %v1442 = vpack.c.b16 %v1071, %v1064
  %v1443 = vpack.c.b16 %v1072, %v1065
  %v1444 = vpack.c.b16 %v1073, %v1066
  %v1445 = vpack.c.b16 %v1074, %v1067
  %v1446 = vpack.c.b16 %v1075, %v1068
  %v1447 = vpack.c.b16 %v1083, %v1076
  %v1448 = vpack.c.b16 %v1084, %v1077
  %v1449 = vpack.c.b16 %v1085, %v1078
  %v1450 = vpack.c.b16 %v1086, %v1079
  %v1451 = vpack.c.b16 %v1087, %v1080
  %v1452 = vpack.c.b16 %v1088, %v1081
  %v1453 = vpack.c.b16 %v1089, %v1082
  %v1454 = vpack.c.b16 %v1097, %v1090
  %v1455 = vpack.c.b16 %v1098, %v1091
  %v1456 = vpack.c.b16 %v1099, %v1092
  %v1457 = vpack.c.b16 %v1100, %v1093
  %v1458 = vpack.c.b16 %v1101, %v1094
  %v1459 = vpack.c.b16 %v1102, %v1095
  %v1460 = vpack.c.b16 %v1103, %v1096
  %v1461 = vpack.c.b16 %v1111, %v1104
  %v1462 = vpack.c.b16 %v1112, %v1105
  %v1463 = vpack.c.b16 %v1113, %v1106
  %v1464 = vpack.c.b16 %v1114, %v1107
  %v1465 = vpack.c.b16 %v1115, %v1108
  %v1466 = vpack.c.b16 %v1116, %v1109
  %v1467 = vpack.c.b16 %v1117, %v1110
  %v1468 = vpack.c.b16 %v1125, %v1118
  %v1469 = vpack.c.b16 %v1126, %v1119
  %v1470 = vpack.c.b16 %v1127, %v1120
  %v1471 = vpack.c.b16 %v1128, %v1121
  %v1472 = vpack.c.b16 %v1129, %v1122
  %v1473 = vpack.c.b16 %v1130, %v1123
  %v1474 = vpack.c.b16 %v1131, %v1124
  %v1475 = vpack.c.b16 %v1139, %v1132
  %v1476 = vpack.c.b16 %v1140, %v1133
  %v1477 = vpack.c.b16 %v1141, %v1134
  %v1478 = vpack.c.b16 %v1142, %v1135
  %v1479 = vpack.c.b16 %v1143, %v1136
  %v1480 = vpack.c.b16 %v1144, %v1137
  %v1481 = vpack.c.b16 %v1145, %v1138
  %v1482 = vpack.c.b16 %v1153, %v1146
  %v1483 = vpack.c.b16 %v1154, %v1147
  %v1484 = vpack.c.b16 %v1155, %v1148
  %v1485 = vpack.c.b16 %v1156, %v1149
  %v1486 = vpack.c.b16 %v1157, %v1150
  %v1487 = vpack.c.b16 %v1158, %v1151
  %v1488 = vpack.c.b16 %v1159, %v1152
  %v1489 = vpack.c.b16 %v1167, %v1160
  %v1490 = vpack.c.b16 %v1168, %v1161
  %v1491 = vpack.c.b16 %v1169, %v1162
  %v1492 = vpack.c.b16 %v1170, %v1163
  %v1493 = vpack.c.b16 %v1171, %v1164
  %v1494 = vpack.c.b16 %v1172, %v1165
  %v1495 = vpack.c.b16 %v1173, %v1166
  %v1496 = vpack.c.b16 %v1181, %v1174
  %v1497 = vpack.c.b16 %v1182, %v1175
  %v1498 = vpack.c.b16 %v1183, %v1176
  %v1499 = vpack.c.b16 %v1184, %v1177
  %v1500 = vpack.c.b16 %v1185, %v1178
  %v1501 = vpack.c.b16 %v1186, %v1179
  %v1502 = vpack.c.b16 %v1187, %v1180
  %v1503 = vpack.c.b16 %v1195, %v1188
  %v1504 = vpack.c.b16 %v1196, %v1189
  %v1505 = vpack.c.b16 %v1197, %v1190
  %v1506 = vpack.c.b16 %v1198, %v1191
  %v1507 = vpack.c.b16 %v1199, %v1192
  %v1508 = vpack.c.b16 %v1200, %v1193
  %v1509 = vpack.c.b16 %v1201, %v1194
  %v1510 = vpack.c.b16 %v1209, %v1202
  %v1511 = vpack.c.b16 %v1210, %v1203
  %v1512 = vpack.c.b16 %v1211, %v1204
  %v1513 = vpack.c.b16 %v1212, %v1205
  %v1514 = vpack.c.b16 %v1213, %v1206
  %v1515 = vpack.c.b16 %v1214, %v1207
  %v1516 = vpack.c.b16 %v1215, %v1208
  %v1517 = vpack.c.b16 %v1223, %v1216
  %v1518 = vpack.c.b16 %v1224, %v1217
  %v1519 = vpack.c.b16 %v1225, %v1218
  %v1520 = vpack.c.b16 %v1226, %v1219
  %v1521 = vpack.c.b16 %v1227, %v1220
  %v1522 = vpack.c.b16 %v1228, %v1221
  %v1523 = vpack.c.b16 %v1229, %v1222
  %v1524 = vpack.c.b16 %v1237, %v1230
  %v1525 = vpack.c.b16 %v1238, %v1231
  %v1526 = vpack.c.b16 %v1239, %v1232
  %v1527 = vpack.c.b16 %v1240, %v1233
  %v1528 = vpack.c.b16 %v1241, %v1234
  %v1529 = vpack.c.b16 %v1242, %v1235
  %v1530 = vpack.c.b16 %v1243, %v1236
  %v1531 = vpack.c.b16 %v1251, %v1244
  %v1532 = vpack.c.b16 %v1252, %v1245
  %v1533 = vpack.c.b16 %v1253, %v1246
  %v1534 = vpack.c.b16 %v1254, %v1247
  %v1535 = vpack.c.b16 %v1255, %v1248
  %v1536 = vpack.c.b16 %v1256, %v1249
  %v1537 = vpack.c.b16 %v1257, %v1250
  %v1538 = vpack.c.b16 %v1265, %v1258
  %v1539 = vpack.c.b16 %v1266, %v1259
  %v1540 = vpack.c.b16 %v1267, %v1260
  %v1541 = vpack.c.b16 %v1268, %v1261
  %v1542 = vpack.c.b16 %v1269, %v1262
  %v1543 = vpack.c.b16 %v1270, %v1263
  %v1544 = vpack.c.b16 %v1271, %v1264
  %v1545 = vpack.c.b16 %v1279, %v1272
  %v1546 = vpack.c.b16 %v1280, %v1273
  %v1547 = vpack.c.b16 %v1281, %v1274
  %v1548 = vpack.c.b16 %v1282, %v1275
  %v1549 = vpack.c.b16 %v1283, %v1276
  %v1550 = vpack.c.b16 %v1284, %v1277
  %v1551 = vpack.c.b16 %v1285, %v1278
  %v1552 = vpack.c.b16 %v1293, %v1286
  %v1553 = vpack.c.b16 %v1294, %v1287
  %v1554 = vpack.c.b16 %v1295, %v1288
  %v1555 = vpack.c.b16 %v1296, %v1289
  %v1556 = vpack.c.b16 %v1297, %v1290
  %v1557 = vpack.c.b16 %v1298, %v1291
  %v1558 = vpack.c.b16 %v1299, %v1292
  %v1559 = vpack.c.b16 %v1307, %v1300
  %v1560 = vpack.c.b16 %v1308, %v1301
  %v1561 = vpack.c.b16 %v1309, %v1302
  %v1562 = vpack.c.b16 %v1310, %v1303
  %v1563 = vpack.c.b16 %v1311, %v1304
  %v1564 = vpack.c.b16 %v1312, %v1305
  %v1565 = vpack.c.b16 %v1313, %v1306
  %v1566 = vpack.c.b16 %v1321, %v1314
  %v1567 = vpack.c.b16 %v1322, %v1315
  %v1568 = vpack.c.b16 %v1323, %v1316
  %v1569 = vpack.c.b16 %v1324, %v1317
  %v1570 = vpack.c.b16 %v1325, %v1318
  %v1571 = vpack.c.b16 %v1326, %v1319
  %v1572 = vpack.c.b16 %v1327, %v1320
  %v1573 = vpack.c.b16 %v1335, %v1328
  %v1574 = vpack.c.b16 %v1336, %v1329
  %v1575 = vpack.c.b16 %v1337, %v1330
  %v1576 = vpack.c.b16 %v1338, %v1331
  %v1577 = vpack.c.b16 %v1339, %v1332
  %v1578 = vpack.c.b16 %v1340, %v1333
  %v1579 = vpack.c.b16 %v1341, %v1334
  %v1580 = vpack.c.b16 %v1349, %v1342
  %v1581 = vpack.c.b16 %v1350, %v1343
  %v1582 = vpack.c.b16 %v1351, %v1344
  %v1583 = vpack.c.b16 %v1352, %v1345
  %v1584 = vpack.c.b16 %v1353, %v1346
  %v1585 = vpack.c.b16 %v1354, %v1347
  %v1586 = vpack.c.b16 %v1355, %v1348
  %v1587 = vpack.c.b16 %v1363, %v1356
  %v1588 = vpack.c.b16 %v1364, %v1357
  %v1589 = vpack.c.b16 %v1365, %v1358
  %v1590 = vpack.c.b16 %v1366, %v1359
  %v1591 = vpack.c.b16 %v1367, %v1360
  %v1592 = vpack.c.b16 %v1368, %v1361
  %v1593 = vpack.c.b16 %v1369, %v1362
  %v1594 = vpack.c.b16 %v1377, %v1370
  %v1595 = vpack.c.b16 %v1378, %v1371
  %v1596 = vpack.c.b16 %v1379, %v1372
  %v1597 = vpack.c.b16 %v1380, %v1373
  %v1598 = vpack.c.b16 %v1381, %v1374
  %v1599 = vpack.c.b16 %v1382, %v1375
  %v1600 = vpack.c.b16 %v1383, %v1376
  %v1601 = vpack.c.b16 %v1391, %v1384
  %v1602 = vpack.c.b16 %v1392, %v1385
  %v1603 = vpack.c.b16 %v1393, %v1386
  %v1604 = vpack.c.b16 %v1394, %v1387
  %v1605 = vpack.c.b16 %v1395, %v1388
  %v1606 = vpack.c.b16 %v1396, %v1389
  %v1607 = vpack.c.b16 %v1397, %v1390
  %v1608 = vpack.c.b16 %v1405, %v1398
  %v1609 = vpack.c.b16 %v1406, %v1399
  %v1610 = vpack.c.b16 %v1407, %v1400
  %v1611 = vpack.c.b16 %v1408, %v1401
  %v1612 = vpack.c.b16 %v1409, %v1402
  %v1613 = vpack.c.b16 %v1410, %v1403
  %v1614 = vpack.c.b16 %v1411, %v1404
  %v1615 = vpack.c.b16 %v1419, %v1412
  %v1616 = vpack.c.b16 %v1420, %v1413
  %v1617 = vpack.c.b16 %v1421, %v1414
  %v1618 = vpack.c.b16 %v1422, %v1415
  %v1619 = vpack.c.b16 %v1423, %v1416
  %v1620 = vpack.c.b16 %v1424, %v1417
  %v1621 = vpack.c.b16 %v1425, %v1418
  %v1622 = vpack.c.b16 %v1433, %v1426
  %v1623 = vpack.c.b16 %v1434, %v1427
  %v1624 = vpack.c.b16 %v1435, %v1428
  %v1625 = vpack.c.b16 %v1436, %v1429
  %v1626 = vpack.c.b16 %v1437, %v1430
  %v1627 = vpack.c.b16 %v1438, %v1431
  %v1628 = vpack.c.b16 %v1439, %v1432
  %vm1818 = vcmask 392192
  %v1820 = vsel %vm1818, %v592, 0
  %1822 = vmatprep.subr.bf16.mxu0 %v1490
  %1823 = vmatpush1.bf16.msra.mxu0 %v1489
  %1824 = vmatprep.subr.bf16.mxu0 %v1483
  %1825 = vmatpush1.bf16.msra.mxu0 %v1482
  %1826 = vmatprep.subr.bf16.mxu0 %v1476
  %1827 = vmatpush1.bf16.msra.mxu0 %v1475
  %1828 = vmatprep.subr.bf16.mxu0 %v1469
  %1829 = vmatpush1.bf16.msra.mxu0 %v1468
  %1830 = vmatprep.subr.bf16.mxu0 %v1462
  %1831 = vmatpush1.bf16.msra.mxu0 %v1461
  %1832 = vmatprep.subr.bf16.mxu0 %v1455
  %1833 = vmatpush1.bf16.msra.mxu0 %v1454
  %1834 = vmatprep.subr.bf16.mxu0 %v1448
  %1835 = vmatpush1.bf16.msra.mxu0 %v1447
  %1836 = vmatprep.subr.bf16.mxu0 %v1441
  %1837 = vmatpush1.bf16.msra.mxu0 %v1440
  %1838 = vmatprep.subr.bf16.mxu0 %v1546
  %1839 = vmatpush2.bf16.msra.mxu0 %v1545
  %1840 = vmatprep.subr.bf16.mxu0 %v1539
  %1841 = vmatpush2.bf16.msra.mxu0 %v1538
  %1842 = vmatprep.subr.bf16.mxu0 %v1532
  %1843 = vmatpush2.bf16.msra.mxu0 %v1531
  %1844 = vmatprep.subr.bf16.mxu0 %v1525
  %1845 = vmatpush2.bf16.msra.mxu0 %v1524
  %1846 = vmatprep.subr.bf16.mxu0 %v1518
  %1847 = vmatpush2.bf16.msra.mxu0 %v1517
  %1848 = vmatprep.subr.bf16.mxu0 %v1511
  %1849 = vmatpush2.bf16.msra.mxu0 %v1510
  %1850 = vmatprep.subr.bf16.mxu0 %v1504
  %1851 = vmatpush2.bf16.msra.mxu0 %v1503
  %1852 = vmatprep.subr.bf16.mxu0 %v1497
  %1853 = vmatpush2.bf16.msra.mxu0 %v1496
  %1854 = vmatprep.mubr.bf16.mxu0 %v590
  %1855 = vmatmul.mubr.bf16.gmra.mxu0 %v589
  %v1856 = vpop.f32.mrf.mxu0
  %v1857 = vadd.f32 %v814, %v1856
  %v1858 = vpop.f32.mrf.mxu0
  %v1859 = vadd.f32 %v818, %v1858
  %v1860 = vpop.f32.mrf.mxu0
  %v1861 = vpop.f32.mrf.mxu0
  %1862 = vdwg.mxu0
  %1863 = vmatprep.subr.bf16.mxu0 %v1602
  %1864 = vmatpush1.bf16.msra.mxu0 %v1601
  %1865 = vmatprep.subr.bf16.mxu0 %v1595
  %1866 = vmatpush1.bf16.msra.mxu0 %v1594
  %1867 = vmatprep.subr.bf16.mxu0 %v1588
  %1868 = vmatpush1.bf16.msra.mxu0 %v1587
  %1869 = vmatprep.subr.bf16.mxu0 %v1581
  %1870 = vmatpush1.bf16.msra.mxu0 %v1580
  %1871 = vmatprep.subr.bf16.mxu0 %v1574
  %1872 = vmatpush1.bf16.msra.mxu0 %v1573
  %1873 = vmatprep.subr.bf16.mxu0 %v1567
  %1874 = vmatpush1.bf16.msra.mxu0 %v1566
  %1875 = vmatprep.subr.bf16.mxu0 %v1560
  %1876 = vmatpush1.bf16.msra.mxu0 %v1559
  %1877 = vmatprep.subr.bf16.mxu0 %v1553
  %1878 = vmatpush1.bf16.msra.mxu0 %v1552
  %1879 = vmatprep.subr.bf16.mxu0 0
  %1880 = vmatpush2.bf16.msra.mxu0 0
  %1881 = vmatprep.subr.bf16.mxu0 0
  %1882 = vmatpush2.bf16.msra.mxu0 0
  %1883 = vmatprep.subr.bf16.mxu0 0
  %1884 = vmatpush2.bf16.msra.mxu0 0
  %1885 = vmatprep.subr.bf16.mxu0 0
  %1886 = vmatpush2.bf16.msra.mxu0 0
  %1887 = vmatprep.subr.bf16.mxu0 0
  %1888 = vmatpush2.bf16.msra.mxu0 0
  %1889 = vmatprep.subr.bf16.mxu0 %v1623
  %1890 = vmatpush2.bf16.msra.mxu0 %v1622
  %1891 = vmatprep.subr.bf16.mxu0 %v1616
  %1892 = vmatpush2.bf16.msra.mxu0 %v1615
  %1893 = vmatprep.subr.bf16.mxu0 %v1609
  %1894 = vmatpush2.bf16.msra.mxu0 %v1608
  %1895 = vmatprep.mubr.bf16.mxu0 %v1820
  %1896 = vmatmul.mubr.bf16.gmra.mxu0 %v591
  %v1897 = vpop.f32.mrf.mxu0
  %v1898 = vadd.f32 %v1857, %v1897
  %v1899 = vpop.f32.mrf.mxu0
  %v1900 = vadd.f32 %v1859, %v1899
  %v1901 = vpop.f32.mrf.mxu0
  %v1902 = vpop.f32.mrf.mxu0
  %1903 = vdwg.mxu0
  %1904 = vmatprep.subr.bf16.mxu0 %v1492
  %1905 = vmatpush1.bf16.msra.mxu0 %v1491
  %1906 = vmatprep.subr.bf16.mxu0 %v1485
  %1907 = vmatpush1.bf16.msra.mxu0 %v1484
  %1908 = vmatprep.subr.bf16.mxu0 %v1478
  %1909 = vmatpush1.bf16.msra.mxu0 %v1477
  %1910 = vmatprep.subr.bf16.mxu0 %v1471
  %1911 = vmatpush1.bf16.msra.mxu0 %v1470
  %1912 = vmatprep.subr.bf16.mxu0 %v1464
  %1913 = vmatpush1.bf16.msra.mxu0 %v1463
  %1914 = vmatprep.subr.bf16.mxu0 %v1457
  %1915 = vmatpush1.bf16.msra.mxu0 %v1456
  %1916 = vmatprep.subr.bf16.mxu0 %v1450
  %1917 = vmatpush1.bf16.msra.mxu0 %v1449
  %1918 = vmatprep.subr.bf16.mxu0 %v1443
  %1919 = vmatpush1.bf16.msra.mxu0 %v1442
  %1920 = vmatprep.subr.bf16.mxu0 %v1548
  %1921 = vmatpush2.bf16.msra.mxu0 %v1547
  %1922 = vmatprep.subr.bf16.mxu0 %v1541
  %1923 = vmatpush2.bf16.msra.mxu0 %v1540
  %1924 = vmatprep.subr.bf16.mxu0 %v1534
  %1925 = vmatpush2.bf16.msra.mxu0 %v1533
  %1926 = vmatprep.subr.bf16.mxu0 %v1527
  %1927 = vmatpush2.bf16.msra.mxu0 %v1526
  %1928 = vmatprep.subr.bf16.mxu0 %v1520
  %1929 = vmatpush2.bf16.msra.mxu0 %v1519
  %1930 = vmatprep.subr.bf16.mxu0 %v1513
  %1931 = vmatpush2.bf16.msra.mxu0 %v1512
  %1932 = vmatprep.subr.bf16.mxu0 %v1506
  %1933 = vmatpush2.bf16.msra.mxu0 %v1505
  %1934 = vmatprep.subr.bf16.mxu0 %v1499
  %1935 = vmatpush2.bf16.msra.mxu0 %v1498
  %1936 = vmatprep.mubr.bf16.mxu0 %v590
  %1937 = vmatmul.mubr.bf16.gmra.mxu0 %v589
  %v1938 = vpop.f32.mrf.mxu0
  %v1939 = vadd.f32 %v822, %v1938
  %v1940 = vpop.f32.mrf.mxu0
  %v1941 = vadd.f32 %v826, %v1940
  %v1942 = vpop.f32.mrf.mxu0
  %v1943 = vpop.f32.mrf.mxu0
  %1944 = vdwg.mxu0
  %1945 = vmatprep.subr.bf16.mxu0 %v1604
  %1946 = vmatpush1.bf16.msra.mxu0 %v1603
  %1947 = vmatprep.subr.bf16.mxu0 %v1597
  %1948 = vmatpush1.bf16.msra.mxu0 %v1596
  %1949 = vmatprep.subr.bf16.mxu0 %v1590
  %1950 = vmatpush1.bf16.msra.mxu0 %v1589
  %1951 = vmatprep.subr.bf16.mxu0 %v1583
  %1952 = vmatpush1.bf16.msra.mxu0 %v1582
  %1953 = vmatprep.subr.bf16.mxu0 %v1576
  %1954 = vmatpush1.bf16.msra.mxu0 %v1575
  %1955 = vmatprep.subr.bf16.mxu0 %v1569
  %1956 = vmatpush1.bf16.msra.mxu0 %v1568
  %1957 = vmatprep.subr.bf16.mxu0 %v1562
  %1958 = vmatpush1.bf16.msra.mxu0 %v1561
  %1959 = vmatprep.subr.bf16.mxu0 %v1555
  %1960 = vmatpush1.bf16.msra.mxu0 %v1554
  %1961 = vmatprep.subr.bf16.mxu0 0
  %1962 = vmatpush2.bf16.msra.mxu0 0
  %1963 = vmatprep.subr.bf16.mxu0 0
  %1964 = vmatpush2.bf16.msra.mxu0 0
  %1965 = vmatprep.subr.bf16.mxu0 0
  %1966 = vmatpush2.bf16.msra.mxu0 0
  %1967 = vmatprep.subr.bf16.mxu0 0
  %1968 = vmatpush2.bf16.msra.mxu0 0
  %1969 = vmatprep.subr.bf16.mxu0 0
  %1970 = vmatpush2.bf16.msra.mxu0 0
  %1971 = vmatprep.subr.bf16.mxu0 %v1625
  %1972 = vmatpush2.bf16.msra.mxu0 %v1624
  %1973 = vmatprep.subr.bf16.mxu0 %v1618
  %1974 = vmatpush2.bf16.msra.mxu0 %v1617
  %1975 = vmatprep.subr.bf16.mxu0 %v1611
  %1976 = vmatpush2.bf16.msra.mxu0 %v1610
  %1977 = vmatprep.mubr.bf16.mxu0 %v1820
  %1978 = vmatmul.mubr.bf16.gmra.mxu0 %v591
  %v1979 = vpop.f32.mrf.mxu0
  %v1980 = vadd.f32 %v1939, %v1979
  %v1981 = vpop.f32.mrf.mxu0
  %v1982 = vadd.f32 %v1941, %v1981
  %v1983 = vpop.f32.mrf.mxu0
  %v1984 = vpop.f32.mrf.mxu0
  %1985 = vdwg.mxu0
  %1986 = vmatprep.subr.bf16.mxu0 %v1494
  %1987 = vmatpush1.bf16.msra.mxu0 %v1493
  %1988 = vmatprep.subr.bf16.mxu0 %v1487
  %1989 = vmatpush1.bf16.msra.mxu0 %v1486
  %1990 = vmatprep.subr.bf16.mxu0 %v1480
  %1991 = vmatpush1.bf16.msra.mxu0 %v1479
  %1992 = vmatprep.subr.bf16.mxu0 %v1473
  %1993 = vmatpush1.bf16.msra.mxu0 %v1472
  %1994 = vmatprep.subr.bf16.mxu0 %v1466
  %1995 = vmatpush1.bf16.msra.mxu0 %v1465
  %1996 = vmatprep.subr.bf16.mxu0 %v1459
  %1997 = vmatpush1.bf16.msra.mxu0 %v1458
  %1998 = vmatprep.subr.bf16.mxu0 %v1452
  %1999 = vmatpush1.bf16.msra.mxu0 %v1451
  %2000 = vmatprep.subr.bf16.mxu0 %v1445
  %2001 = vmatpush1.bf16.msra.mxu0 %v1444
  %2002 = vmatprep.subr.bf16.mxu0 %v1550
  %2003 = vmatpush2.bf16.msra.mxu0 %v1549
  %2004 = vmatprep.subr.bf16.mxu0 %v1543
  %2005 = vmatpush2.bf16.msra.mxu0 %v1542
  %2006 = vmatprep.subr.bf16.mxu0 %v1536
  %2007 = vmatpush2.bf16.msra.mxu0 %v1535
  %2008 = vmatprep.subr.bf16.mxu0 %v1529
  %2009 = vmatpush2.bf16.msra.mxu0 %v1528
  %2010 = vmatprep.subr.bf16.mxu0 %v1522
  %2011 = vmatpush2.bf16.msra.mxu0 %v1521
  %2012 = vmatprep.subr.bf16.mxu0 %v1515
  %2013 = vmatpush2.bf16.msra.mxu0 %v1514
  %2014 = vmatprep.subr.bf16.mxu0 %v1508
  %2015 = vmatpush2.bf16.msra.mxu0 %v1507
  %2016 = vmatprep.subr.bf16.mxu0 %v1501
  %2017 = vmatpush2.bf16.msra.mxu0 %v1500
  %2018 = vmatprep.mubr.bf16.mxu0 %v590
  %2019 = vmatmul.mubr.bf16.gmra.mxu0 %v589
  %v2020 = vpop.f32.mrf.mxu0
  %v2021 = vadd.f32 %v830, %v2020
  %v2022 = vpop.f32.mrf.mxu0
  %v2023 = vadd.f32 %v834, %v2022
  %v2024 = vpop.f32.mrf.mxu0
  %v2025 = vpop.f32.mrf.mxu0
  %2026 = vdwg.mxu0
  %2027 = vmatprep.subr.bf16.mxu0 %v1606
  %2028 = vmatpush1.bf16.msra.mxu0 %v1605
  %2029 = vmatprep.subr.bf16.mxu0 %v1599
  %2030 = vmatpush1.bf16.msra.mxu0 %v1598
  %2031 = vmatprep.subr.bf16.mxu0 %v1592
  %2032 = vmatpush1.bf16.msra.mxu0 %v1591
  %2033 = vmatprep.subr.bf16.mxu0 %v1585
  %2034 = vmatpush1.bf16.msra.mxu0 %v1584
  %2035 = vmatprep.subr.bf16.mxu0 %v1578
  %2036 = vmatpush1.bf16.msra.mxu0 %v1577
  %2037 = vmatprep.subr.bf16.mxu0 %v1571
  %2038 = vmatpush1.bf16.msra.mxu0 %v1570
  %2039 = vmatprep.subr.bf16.mxu0 %v1564
  %2040 = vmatpush1.bf16.msra.mxu0 %v1563
  %2041 = vmatprep.subr.bf16.mxu0 %v1557
  %2042 = vmatpush1.bf16.msra.mxu0 %v1556
  %2043 = vmatprep.subr.bf16.mxu0 0
  %2044 = vmatpush2.bf16.msra.mxu0 0
  %2045 = vmatprep.subr.bf16.mxu0 0
  %2046 = vmatpush2.bf16.msra.mxu0 0
  %2047 = vmatprep.subr.bf16.mxu0 0
  %2048 = vmatpush2.bf16.msra.mxu0 0
  %2049 = vmatprep.subr.bf16.mxu0 0
  %2050 = vmatpush2.bf16.msra.mxu0 0
  %2051 = vmatprep.subr.bf16.mxu0 0
  %2052 = vmatpush2.bf16.msra.mxu0 0
  %2053 = vmatprep.subr.bf16.mxu0 %v1627
  %2054 = vmatpush2.bf16.msra.mxu0 %v1626
  %2055 = vmatprep.subr.bf16.mxu0 %v1620
  %2056 = vmatpush2.bf16.msra.mxu0 %v1619
  %2057 = vmatprep.subr.bf16.mxu0 %v1613
  %2058 = vmatpush2.bf16.msra.mxu0 %v1612
  %2059 = vmatprep.mubr.bf16.mxu0 %v1820
  %2060 = vmatmul.mubr.bf16.gmra.mxu0 %v591
  %v2061 = vpop.f32.mrf.mxu0
  %v2062 = vadd.f32 %v2021, %v2061
  %v2063 = vpop.f32.mrf.mxu0
  %v2064 = vadd.f32 %v2023, %v2063
  %v2065 = vpop.f32.mrf.mxu0
  %v2066 = vpop.f32.mrf.mxu0
  %2067 = vdwg.mxu0
  %2068 = vmatprep.subr.bf16.mxu0 0
  %2069 = vmatpush1.bf16.msra.mxu0 %v1495
  %2070 = vmatprep.subr.bf16.mxu0 0
  %2071 = vmatpush1.bf16.msra.mxu0 %v1488
  %2072 = vmatprep.subr.bf16.mxu0 0
  %2073 = vmatpush1.bf16.msra.mxu0 %v1481
  %2074 = vmatprep.subr.bf16.mxu0 0
  %2075 = vmatpush1.bf16.msra.mxu0 %v1474
  %2076 = vmatprep.subr.bf16.mxu0 0
  %2077 = vmatpush1.bf16.msra.mxu0 %v1467
  %2078 = vmatprep.subr.bf16.mxu0 0
  %2079 = vmatpush1.bf16.msra.mxu0 %v1460
  %2080 = vmatprep.subr.bf16.mxu0 0
  %2081 = vmatpush1.bf16.msra.mxu0 %v1453
  %2082 = vmatprep.subr.bf16.mxu0 0
  %2083 = vmatpush1.bf16.msra.mxu0 %v1446
  %2084 = vmatprep.subr.bf16.mxu0 0
  %2085 = vmatpush2.bf16.msra.mxu0 %v1551
  %2086 = vmatprep.subr.bf16.mxu0 0
  %2087 = vmatpush2.bf16.msra.mxu0 %v1544
  %2088 = vmatprep.subr.bf16.mxu0 0
  %2089 = vmatpush2.bf16.msra.mxu0 %v1537
  %2090 = vmatprep.subr.bf16.mxu0 0
  %2091 = vmatpush2.bf16.msra.mxu0 %v1530
  %2092 = vmatprep.subr.bf16.mxu0 0
  %2093 = vmatpush2.bf16.msra.mxu0 %v1523
  %2094 = vmatprep.subr.bf16.mxu0 0
  %2095 = vmatpush2.bf16.msra.mxu0 %v1516
  %2096 = vmatprep.subr.bf16.mxu0 0
  %2097 = vmatpush2.bf16.msra.mxu0 %v1509
  %2098 = vmatprep.subr.bf16.mxu0 0
  %2099 = vmatpush2.bf16.msra.mxu0 %v1502
  %2100 = vmatprep.mubr.bf16.mxu0 %v590
  %2101 = vmatmul.mubr.bf16.gmra.mxu0 %v589
  %v2102 = vpop.f32.mrf.mxu0
  %v2103 = vadd.f32 %v838, %v2102
  %v2104 = vpop.f32.mrf.mxu0
  %v2105 = vpop.f32.mrf.mxu0
  %v2106 = vpop.f32.mrf.mxu0
  %2107 = vdwg.mxu0
  %2108 = vmatprep.subr.bf16.mxu0 0
  %2109 = vmatpush1.bf16.msra.mxu0 %v1607
  %2110 = vmatprep.subr.bf16.mxu0 0
  %2111 = vmatpush1.bf16.msra.mxu0 %v1600
  %2112 = vmatprep.subr.bf16.mxu0 0
  %2113 = vmatpush1.bf16.msra.mxu0 %v1593
  %2114 = vmatprep.subr.bf16.mxu0 0
  %2115 = vmatpush1.bf16.msra.mxu0 %v1586
  %2116 = vmatprep.subr.bf16.mxu0 0
  %2117 = vmatpush1.bf16.msra.mxu0 %v1579
  %2118 = vmatprep.subr.bf16.mxu0 0
  %2119 = vmatpush1.bf16.msra.mxu0 %v1572
  %2120 = vmatprep.subr.bf16.mxu0 0
  %2121 = vmatpush1.bf16.msra.mxu0 %v1565
  %2122 = vmatprep.subr.bf16.mxu0 0
  %2123 = vmatpush1.bf16.msra.mxu0 %v1558
  %2124 = vmatprep.subr.bf16.mxu0 0
  %2125 = vmatpush2.bf16.msra.mxu0 0
  %2126 = vmatprep.subr.bf16.mxu0 0
  %2127 = vmatpush2.bf16.msra.mxu0 0
  %2128 = vmatprep.subr.bf16.mxu0 0
  %2129 = vmatpush2.bf16.msra.mxu0 0
  %2130 = vmatprep.subr.bf16.mxu0 0
  %2131 = vmatpush2.bf16.msra.mxu0 0
  %2132 = vmatprep.subr.bf16.mxu0 0
  %2133 = vmatpush2.bf16.msra.mxu0 0
  %2134 = vmatprep.subr.bf16.mxu0 0
  %2135 = vmatpush2.bf16.msra.mxu0 %v1628
  %2136 = vmatprep.subr.bf16.mxu0 0
  %2137 = vmatpush2.bf16.msra.mxu0 %v1621
  %2138 = vmatprep.subr.bf16.mxu0 0
  %2139 = vmatpush2.bf16.msra.mxu0 %v1614
  %2140 = vmatprep.mubr.bf16.mxu0 %v1820
  %2141 = vmatmul.mubr.bf16.gmra.mxu0 %v591
  %v2142 = vpop.f32.mrf.mxu0
  %v2143 = vadd.f32 %v2103, %v2142
  %v2144 = vpop.f32.mrf.mxu0
  %v2145 = vpop.f32.mrf.mxu0
  %v2146 = vpop.f32.mrf.mxu0
  %2147 = vdwg.mxu0
  %v2148 = vmax.f32 %v1898, 0.0
  %v2149 = vmax.f32 %v1900, 0.0
  %v2150 = vmax.f32 %v1980, 0.0
  %v2151 = vmax.f32 %v1982, 0.0
  %v2152 = vmax.f32 %v2062, 0.0
  %v2153 = vmax.f32 %v2064, 0.0
  %v2154 = vmax.f32 %v2143, 0.0
  %v2155 = vpack.c.bf16 %v2148, %v2148
  %v2156 = vpack.c.bf16 %v2149, %v2149
  %v2157 = vpack.c.bf16 %v2150, %v2150
  %v2158 = vpack.c.bf16 %v2151, %v2151
  %v2159 = vpack.c.bf16 %v2152, %v2152
  %v2160 = vpack.c.bf16 %v2153, %v2153
  %v2161 = vpack.c.bf16 %v2154, %v2154
  %v2162 = vld [vmem:[%s7] sm:$0xff]
  %v2163 = vld [vmem:[%s7 + $0x8] sm:$0xff]
  %v2164 = vld [vmem:[%s7 + $0x10] sm:$0xff]
  %v2165 = vld [vmem:[%s7 + $0x18] sm:$0xff]
  %v2166 = vld [vmem:[%s7 + $0x20] sm:$0xff]
  %v2167 = vld [vmem:[%s7 + $0x28] sm:$0xff]
  %v2168 = vld [vmem:[%s7 + $0x30] sm:$0xff]
  %v2169 = vld [vmem:[%s7 + $0x38] sm:$0xff]
  %v2170 = vld [vmem:[%s7 + $0x40] sm:$0xff]
  %v2171 = vld [vmem:[%s7 + $0x48] sm:$0xff]
  %v2172 = vld [vmem:[%s7 + $0x50] sm:$0xff]
  %v2173 = vld [vmem:[%s7 + $0x58] sm:$0xff]
  %v2174 = vld [vmem:[%s7 + $0x60] sm:$0xff]
  %v2175 = vld [vmem:[%s7 + $0x68] sm:$0xff]
  %v2176 = vld [vmem:[%s7 + $0x70] sm:$0xff]
  %v2177 = vld [vmem:[%s7 + $0x78] sm:$0xff]
  %v2178 = vld [vmem:[%s7 + $0x80] sm:$0xff]
  %v2179 = vld [vmem:[%s7 + $0x88] sm:$0xff]
  %v2180 = vld [vmem:[%s7 + $0x90] sm:$0xff]
  %v2181 = vld [vmem:[%s7 + $0x98] sm:$0xff]
  %v2182 = vld [vmem:[%s7 + $0xa0] sm:$0xff]
  %v2183 = vld [vmem:[%s7 + $0xa8] sm:$0xff]
  %v2184 = vld [vmem:[%s7 + $0xb0] sm:$0xff]
  %v2185 = vld [vmem:[%s7 + $0xb8] sm:$0xff]
  %v2186 = vld [vmem:[%s7 + $0xc0] sm:$0xff]
  %v2187 = vld [vmem:[%s7 + $0xc8] sm:$0xff]
  %v2188 = vld [vmem:[%s7 + $0xd0] sm:$0xff]
  %v2189 = vld [vmem:[%s7 + $0xd8] sm:$0xff]
  %v2190 = vld [vmem:[%s7 + $0xe0] sm:$0xff]
  %v2191 = vld [vmem:[%s7 + $0xe8] sm:$0xff]
  %v2192 = vld [vmem:[%s7 + $0xf0] sm:$0xff]
  %v2193 = vld [vmem:[%s7 + $0xf8] sm:$0xff]
  %v2194 = vld [vmem:[%s7 + $0x100] sm:$0xff]
  %v2195 = vld [vmem:[%s7 + $0x108] sm:$0xff]
  %v2196 = vld [vmem:[%s7 + $0x110] sm:$0xff]
  %v2197 = vld [vmem:[%s7 + $0x118] sm:$0xff]
  %v2198 = vld [vmem:[%s7 + $0x120] sm:$0xff]
  %v2199 = vld [vmem:[%s7 + $0x128] sm:$0xff]
  %v2200 = vld [vmem:[%s7 + $0x130] sm:$0xff]
  %v2201 = vld [vmem:[%s7 + $0x138] sm:$0xff]
  %v2202 = vld [vmem:[%s7 + $0x140] sm:$0xff]
  %v2203 = vld [vmem:[%s7 + $0x148] sm:$0xff]
  %v2204 = vld [vmem:[%s7 + $0x150] sm:$0xff]
  %v2205 = vld [vmem:[%s7 + $0x158] sm:$0xff]
  %v2206 = vld [vmem:[%s7 + $0x160] sm:$0xff]
  %v2207 = vld [vmem:[%s7 + $0x168] sm:$0xff]
  %v2208 = vld [vmem:[%s7 + $0x170] sm:$0xff]
  %v2209 = vld [vmem:[%s7 + $0x178] sm:$0xff]
  %v2210 = vld [vmem:[%s7 + $0x180] sm:$0xff]
  %v2211 = vld [vmem:[%s7 + $0x188] sm:$0xff]
  %v2212 = vld [vmem:[%s7 + $0x190] sm:$0xff]
  %v2213 = vld [vmem:[%s7 + $0x198] sm:$0xff]
  %v2214 = vld [vmem:[%s7 + $0x1a0] sm:$0xff]
  %v2215 = vld [vmem:[%s7 + $0x1a8] sm:$0xff]
  %v2216 = vld [vmem:[%s7 + $0x1b0] sm:$0xff]
  %v2217 = vld [vmem:[%s7 + $0x1b8] sm:$0xff]
  %v2218 = vld [vmem:[%s7 + $0x1c0] sm:$0xff]
  %v2219 = vld [vmem:[%s7 + $0x1c8] sm:$0xff]
  %v2220 = vld [vmem:[%s7 + $0x1d0] sm:$0xff]
  %v2221 = vld [vmem:[%s7 + $0x1d8] sm:$0xff]
  %v2222 = vld [vmem:[%s7 + $0x1e0] sm:$0xff]
  %v2223 = vld [vmem:[%s7 + $0x1e8] sm:$0xff]
  %v2224 = vld [vmem:[%s7 + $0x1f0] sm:$0xff]
  %v2225 = vld [vmem:[%s7 + $0x1f8] sm:$0xff]
  %v2226 = vld [vmem:[%s7 + $0x200] sm:$0xff]
  %v2227 = vld [vmem:[%s7 + $0x208] sm:$0xff]
  %v2228 = vld [vmem:[%s7 + $0x210] sm:$0xff]
  %v2229 = vld [vmem:[%s7 + $0x218] sm:$0xff]
  %v2230 = vld [vmem:[%s7 + $0x220] sm:$0xff]
  %v2231 = vld [vmem:[%s7 + $0x228] sm:$0xff]
  %v2232 = vld [vmem:[%s7 + $0x230] sm:$0xff]
  %v2233 = vld [vmem:[%s7 + $0x238] sm:$0xff]
  %v2234 = vld [vmem:[%s7 + $0x240] sm:$0xff]
  %v2235 = vld [vmem:[%s7 + $0x248] sm:$0xff]
  %v2236 = vld [vmem:[%s7 + $0x250] sm:$0xff]
  %v2237 = vld [vmem:[%s7 + $0x258] sm:$0xff]
  %v2238 = vld [vmem:[%s7 + $0x260] sm:$0xff]
  %v2239 = vld [vmem:[%s7 + $0x268] sm:$0xff]
  %v2240 = vld [vmem:[%s7 + $0x270] sm:$0xff]
  %v2241 = vld [vmem:[%s7 + $0x278] sm:$0xff]
  %v2242 = vld [vmem:[%s7 + $0x280] sm:$0xff]
  %v2243 = vld [vmem:[%s7 + $0x288] sm:$0xff]
  %v2244 = vld [vmem:[%s7 + $0x290] sm:$0xff]
  %v2245 = vld [vmem:[%s7 + $0x298] sm:$0xff]
  %v2246 = vld [vmem:[%s7 + $0x2a0] sm:$0xff]
  %v2247 = vld [vmem:[%s7 + $0x2a8] sm:$0xff]
  %v2248 = vld [vmem:[%s7 + $0x2b0] sm:$0xff]
  %v2249 = vld [vmem:[%s7 + $0x2b8] sm:$0xff]
  %v2250 = vld [vmem:[%s7 + $0x2c0] sm:$0xff]
  %v2251 = vld [vmem:[%s7 + $0x2c8] sm:$0xff]
  %v2252 = vld [vmem:[%s7 + $0x2d0] sm:$0xff]
  %v2253 = vld [vmem:[%s7 + $0x2d8] sm:$0xff]
  %v2254 = vld [vmem:[%s7 + $0x2e0] sm:$0xff]
  %v2255 = vld [vmem:[%s7 + $0x2e8] sm:$0xff]
  %v2256 = vld [vmem:[%s7 + $0x2f0] sm:$0xff]
  %v2257 = vld [vmem:[%s7 + $0x2f8] sm:$0xff]
  %v2258 = vld [vmem:[%s7 + $0x300] sm:$0xff]
  %v2259 = vld [vmem:[%s7 + $0x308] sm:$0xff]
  %v2260 = vld [vmem:[%s7 + $0x310] sm:$0xff]
  %v2261 = vld [vmem:[%s7 + $0x318] sm:$0xff]
  %v2262 = vld [vmem:[%s7 + $0x320] sm:$0xff]
  %v2263 = vld [vmem:[%s7 + $0x328] sm:$0xff]
  %v2264 = vld [vmem:[%s7 + $0x330] sm:$0xff]
  %v2265 = vld [vmem:[%s7 + $0x338] sm:$0xff]
  %v2266 = vld [vmem:[%s7 + $0x340] sm:$0xff]
  %v2267 = vld [vmem:[%s7 + $0x348] sm:$0xff]
  %v2268 = vld [vmem:[%s7 + $0x350] sm:$0xff]
  %v2269 = vld [vmem:[%s7 + $0x358] sm:$0xff]
  %v2270 = vld [vmem:[%s7 + $0x360] sm:$0xff]
  %v2271 = vld [vmem:[%s7 + $0x368] sm:$0xff]
  %v2272 = vld [vmem:[%s7 + $0x370] sm:$0xff]
  %v2273 = vld [vmem:[%s7 + $0x378] sm:$0xff]
  %v2274 = vld [vmem:[%s7 + $0x380] sm:$0xff]
  %v2275 = vld [vmem:[%s7 + $0x388] sm:$0xff]
  %v2276 = vld [vmem:[%s7 + $0x390] sm:$0xff]
  %v2277 = vld [vmem:[%s7 + $0x398] sm:$0xff]
  %v2278 = vld [vmem:[%s7 + $0x3a0] sm:$0xff]
  %v2279 = vld [vmem:[%s7 + $0x3a8] sm:$0xff]
  %v2280 = vld [vmem:[%s7 + $0x3b0] sm:$0xff]
  %v2281 = vld [vmem:[%s7 + $0x3b8] sm:$0xff]
  %v2282 = vld [vmem:[%s7 + $0x3c0] sm:$0xff]
  %v2283 = vld [vmem:[%s7 + $0x3c8] sm:$0xff]
  %v2284 = vld [vmem:[%s7 + $0x3d0] sm:$0xff]
  %v2285 = vld [vmem:[%s7 + $0x3d8] sm:$0xff]
  %v2286 = vld [vmem:[%s7 + $0x3e0] sm:$0xff]
  %v2287 = vld [vmem:[%s7 + $0x3e8] sm:$0xff]
  %v2288 = vld [vmem:[%s7 + $0x3f0] sm:$0xff]
  %v2289 = vld [vmem:[%s7 + $0x3f8] sm:$0xff]
  %v2290 = vld [vmem:[%s7 + $0x400] sm:$0xff]
  %v2291 = vld [vmem:[%s7 + $0x408] sm:$0xff]
  %v2292 = vld [vmem:[%s7 + $0x410] sm:$0xff]
  %v2293 = vld [vmem:[%s7 + $0x418] sm:$0xff]
  %v2294 = vld [vmem:[%s7 + $0x420] sm:$0xff]
  %v2295 = vld [vmem:[%s7 + $0x428] sm:$0xff]
  %v2296 = vld [vmem:[%s7 + $0x430] sm:$0xff]
  %v2297 = vld [vmem:[%s7 + $0x438] sm:$0xff]
  %v2298 = vld [vmem:[%s7 + $0x440] sm:$0xff]
  %v2299 = vld [vmem:[%s7 + $0x448] sm:$0xff]
  %v2300 = vld [vmem:[%s7 + $0x450] sm:$0xff]
  %v2301 = vld [vmem:[%s7 + $0x458] sm:$0xff]
  %v2302 = vld [vmem:[%s7 + $0x460] sm:$0xff]
  %v2303 = vld [vmem:[%s7 + $0x468] sm:$0xff]
  %v2304 = vld [vmem:[%s7 + $0x470] sm:$0xff]
  %v2305 = vld [vmem:[%s7 + $0x478] sm:$0xff]
  %v2306 = vld [vmem:[%s7 + $0x480] sm:$0xff]
  %v2307 = vld [vmem:[%s7 + $0x488] sm:$0xff]
  %v2308 = vld [vmem:[%s7 + $0x490] sm:$0xff]
  %v2309 = vld [vmem:[%s7 + $0x498] sm:$0xff]
  %v2310 = vld [vmem:[%s7 + $0x4a0] sm:$0xff]
  %v2311 = vld [vmem:[%s7 + $0x4a8] sm:$0xff]
  %v2312 = vld [vmem:[%s7 + $0x4b0] sm:$0xff]
  %v2313 = vld [vmem:[%s7 + $0x4b8] sm:$0xff]
  %v2314 = vld [vmem:[%s7 + $0x4c0] sm:$0xff]
  %v2315 = vld [vmem:[%s7 + $0x4c8] sm:$0xff]
  %v2316 = vld [vmem:[%s7 + $0x4d0] sm:$0xff]
  %v2317 = vld [vmem:[%s7 + $0x4d8] sm:$0xff]
  %v2318 = vld [vmem:[%s7 + $0x4e0] sm:$0xff]
  %v2319 = vld [vmem:[%s7 + $0x4e8] sm:$0xff]
  %v2320 = vld [vmem:[%s7 + $0x4f0] sm:$0xff]
  %v2321 = vld [vmem:[%s7 + $0x4f8] sm:$0xff]
  %v2322 = vld [vmem:[%s7 + $0x500] sm:$0xff]
  %v2323 = vld [vmem:[%s7 + $0x508] sm:$0xff]
  %v2324 = vld [vmem:[%s7 + $0x510] sm:$0xff]
  %v2325 = vld [vmem:[%s7 + $0x518] sm:$0xff]
  %v2326 = vld [vmem:[%s7 + $0x520] sm:$0xff]
  %v2327 = vld [vmem:[%s7 + $0x528] sm:$0xff]
  %v2328 = vld [vmem:[%s7 + $0x530] sm:$0xff]
  %v2329 = vld [vmem:[%s7 + $0x538] sm:$0xff]
  %v2330 = vld [vmem:[%s7 + $0x540] sm:$0xff]
  %v2331 = vld [vmem:[%s7 + $0x548] sm:$0xff]
  %v2332 = vld [vmem:[%s7 + $0x550] sm:$0xff]
  %v2333 = vld [vmem:[%s7 + $0x558] sm:$0xff]
  %v2334 = vld [vmem:[%s7 + $0x560] sm:$0xff]
  %v2335 = vld [vmem:[%s7 + $0x568] sm:$0xff]
  %v2336 = vld [vmem:[%s7 + $0x570] sm:$0xff]
  %v2337 = vld [vmem:[%s7 + $0x578] sm:$0xff]
  %v2338 = vld [vmem:[%s7 + $0x580] sm:$0xff]
  %v2339 = vld [vmem:[%s7 + $0x588] sm:$0xff]
  %v2340 = vld [vmem:[%s7 + $0x590] sm:$0xff]
  %v2341 = vld [vmem:[%s7 + $0x598] sm:$0xff]
  %v2342 = vld [vmem:[%s7 + $0x5a0] sm:$0xff]
  %v2343 = vld [vmem:[%s7 + $0x5a8] sm:$0xff]
  %v2344 = vld [vmem:[%s7 + $0x5b0] sm:$0xff]
  %v2345 = vld [vmem:[%s7 + $0x5b8] sm:$0xff]
  %v2346 = vld [vmem:[%s7 + $0x5c0] sm:$0xff]
  %v2347 = vld [vmem:[%s7 + $0x5c8] sm:$0xff]
  %v2348 = vld [vmem:[%s7 + $0x5d0] sm:$0xff]
  %v2349 = vld [vmem:[%s7 + $0x5d8] sm:$0xff]
  %v2350 = vld [vmem:[%s7 + $0x5e0] sm:$0xff]
  %v2351 = vld [vmem:[%s7 + $0x5e8] sm:$0xff]
  %v2352 = vld [vmem:[%s7 + $0x5f0] sm:$0xff]
  %v2353 = vld [vmem:[%s7 + $0x5f8] sm:$0xff]
  %v2354 = vld [vmem:[%s7 + $0x600] sm:$0xff]
  %v2355 = vld [vmem:[%s7 + $0x608] sm:$0xff]
  %v2356 = vld [vmem:[%s7 + $0x610] sm:$0xff]
  %v2357 = vld [vmem:[%s7 + $0x618] sm:$0xff]
  %v2358 = vld [vmem:[%s7 + $0x620] sm:$0xff]
  %v2359 = vld [vmem:[%s7 + $0x628] sm:$0xff]
  %v2360 = vld [vmem:[%s7 + $0x630] sm:$0xff]
  %v2361 = vld [vmem:[%s7 + $0x638] sm:$0xff]
  %v2362 = vld [vmem:[%s7 + $0x640] sm:$0xff]
  %v2363 = vld [vmem:[%s7 + $0x648] sm:$0xff]
  %v2364 = vld [vmem:[%s7 + $0x650] sm:$0xff]
  %v2365 = vld [vmem:[%s7 + $0x658] sm:$0xff]
  %v2366 = vld [vmem:[%s7 + $0x660] sm:$0xff]
  %v2367 = vld [vmem:[%s7 + $0x668] sm:$0xff]
  %v2368 = vld [vmem:[%s7 + $0x670] sm:$0xff]
  %v2369 = vld [vmem:[%s7 + $0x678] sm:$0xff]
  %v2370 = vld [vmem:[%s7 + $0x680] sm:$0xff]
  %v2371 = vld [vmem:[%s7 + $0x688] sm:$0xff]
  %v2372 = vld [vmem:[%s7 + $0x690] sm:$0xff]
  %v2373 = vld [vmem:[%s7 + $0x698] sm:$0xff]
  %v2374 = vld [vmem:[%s7 + $0x6a0] sm:$0xff]
  %v2375 = vld [vmem:[%s7 + $0x6a8] sm:$0xff]
  %v2376 = vld [vmem:[%s7 + $0x6b0] sm:$0xff]
  %v2377 = vld [vmem:[%s7 + $0x6b8] sm:$0xff]
  %v2378 = vld [vmem:[%s8] sm:$0xf]
  %v2380 = vlaneseq
  %v2381 = vshrl.u32 %v2380, 7
  %v2382 = vsub.s32 0, %v2381
  %v2383 = vrot.slane %v2378, %v2382
  %v2384 = vlaneseq
  %v2385 = vshrl.u32 %v2384, 7
  %v2386 = vsub.s32 1, %v2385
  %v2387 = vrot.slane %v2378, %v2386
  %v2388 = vlaneseq
  %v2389 = vshrl.u32 %v2388, 7
  %v2390 = vsub.s32 2, %v2389
  %v2391 = vrot.slane %v2378, %v2390
  %v2392 = vlaneseq
  %v2393 = vshrl.u32 %v2392, 7
  %v2394 = vsub.s32 3, %v2393
  %v2395 = vrot.slane %v2378, %v2394
  %v2616 = vunpack.c.l.b16 %v2162
  %v2617 = vunpack.c.h.b16 %v2162
  %v2618 = vunpack.c.l.b16 %v2163
  %v2619 = vunpack.c.h.b16 %v2163
  %v2620 = vunpack.c.l.b16 %v2164
  %v2621 = vunpack.c.h.b16 %v2164
  %v2622 = vunpack.c.l.b16 %v2165
  %v2623 = vunpack.c.h.b16 %v2165
  %v2624 = vunpack.c.l.b16 %v2166
  %v2625 = vunpack.c.h.b16 %v2166
  %v2626 = vunpack.c.l.b16 %v2167
  %v2627 = vunpack.c.h.b16 %v2167
  %v2628 = vunpack.c.l.b16 %v2168
  %v2629 = vunpack.c.h.b16 %v2168
  %v2630 = vunpack.c.l.b16 %v2169
  %v2631 = vunpack.c.h.b16 %v2169
  %v2632 = vunpack.c.l.b16 %v2170
  %v2633 = vunpack.c.h.b16 %v2170
  %v2634 = vunpack.c.l.b16 %v2171
  %v2635 = vunpack.c.h.b16 %v2171
  %v2636 = vunpack.c.l.b16 %v2172
  %v2637 = vunpack.c.h.b16 %v2172
  %v2638 = vunpack.c.l.b16 %v2173
  %v2639 = vunpack.c.h.b16 %v2173
  %v2640 = vunpack.c.l.b16 %v2174
  %v2641 = vunpack.c.h.b16 %v2174
  %v2642 = vunpack.c.l.b16 %v2175
  %v2643 = vunpack.c.h.b16 %v2175
  %v2644 = vunpack.c.l.b16 %v2176
  %v2645 = vunpack.c.h.b16 %v2176
  %v2646 = vunpack.c.l.b16 %v2177
  %v2647 = vunpack.c.h.b16 %v2177
  %v2648 = vunpack.c.l.b16 %v2178
  %v2649 = vunpack.c.h.b16 %v2178
  %v2650 = vunpack.c.l.b16 %v2179
  %v2651 = vunpack.c.h.b16 %v2179
  %v2652 = vunpack.c.l.b16 %v2180
  %v2653 = vunpack.c.h.b16 %v2180
  %v2654 = vunpack.c.l.b16 %v2181
  %v2655 = vunpack.c.h.b16 %v2181
  %v2656 = vunpack.c.l.b16 %v2182
  %v2657 = vunpack.c.h.b16 %v2182
  %v2658 = vunpack.c.l.b16 %v2183
  %v2659 = vunpack.c.h.b16 %v2183
  %v2660 = vunpack.c.l.b16 %v2184
  %v2661 = vunpack.c.h.b16 %v2184
  %v2662 = vunpack.c.l.b16 %v2185
  %v2663 = vunpack.c.h.b16 %v2185
  %v2664 = vunpack.c.l.b16 %v2186
  %v2665 = vunpack.c.h.b16 %v2186
  %v2666 = vunpack.c.l.b16 %v2187
  %v2667 = vunpack.c.h.b16 %v2187
  %v2668 = vunpack.c.l.b16 %v2188
  %v2669 = vunpack.c.h.b16 %v2188
  %v2670 = vunpack.c.l.b16 %v2189
  %v2671 = vunpack.c.h.b16 %v2189
  %v2672 = vunpack.c.l.b16 %v2190
  %v2673 = vunpack.c.h.b16 %v2190
  %v2674 = vunpack.c.l.b16 %v2191
  %v2675 = vunpack.c.h.b16 %v2191
  %v2676 = vunpack.c.l.b16 %v2192
  %v2677 = vunpack.c.h.b16 %v2192
  %v2678 = vunpack.c.l.b16 %v2193
  %v2679 = vunpack.c.h.b16 %v2193
  %v2680 = vunpack.c.l.b16 %v2194
  %v2681 = vunpack.c.h.b16 %v2194
  %v2682 = vunpack.c.l.b16 %v2195
  %v2683 = vunpack.c.h.b16 %v2195
  %v2684 = vunpack.c.l.b16 %v2196
  %v2685 = vunpack.c.h.b16 %v2196
  %v2686 = vunpack.c.l.b16 %v2197
  %v2687 = vunpack.c.h.b16 %v2197
  %v2688 = vunpack.c.l.b16 %v2198
  %v2689 = vunpack.c.h.b16 %v2198
  %v2690 = vunpack.c.l.b16 %v2199
  %v2691 = vunpack.c.h.b16 %v2199
  %v2692 = vunpack.c.l.b16 %v2200
  %v2693 = vunpack.c.h.b16 %v2200
  %v2694 = vunpack.c.l.b16 %v2201
  %v2695 = vunpack.c.h.b16 %v2201
  %v2696 = vunpack.c.l.b16 %v2202
  %v2697 = vunpack.c.h.b16 %v2202
  %v2698 = vunpack.c.l.b16 %v2203
  %v2699 = vunpack.c.h.b16 %v2203
  %v2700 = vunpack.c.l.b16 %v2204
  %v2701 = vunpack.c.h.b16 %v2204
  %v2702 = vunpack.c.l.b16 %v2205
  %v2703 = vunpack.c.h.b16 %v2205
  %v2704 = vunpack.c.l.b16 %v2206
  %v2705 = vunpack.c.h.b16 %v2206
  %v2706 = vunpack.c.l.b16 %v2207
  %v2707 = vunpack.c.h.b16 %v2207
  %v2708 = vunpack.c.l.b16 %v2208
  %v2709 = vunpack.c.h.b16 %v2208
  %v2710 = vunpack.c.l.b16 %v2209
  %v2711 = vunpack.c.h.b16 %v2209
  %v2712 = vunpack.c.l.b16 %v2210
  %v2713 = vunpack.c.h.b16 %v2210
  %v2714 = vunpack.c.l.b16 %v2211
  %v2715 = vunpack.c.h.b16 %v2211
  %v2716 = vunpack.c.l.b16 %v2212
  %v2717 = vunpack.c.h.b16 %v2212
  %v2718 = vunpack.c.l.b16 %v2213
  %v2719 = vunpack.c.h.b16 %v2213
  %v2720 = vunpack.c.l.b16 %v2214
  %v2721 = vunpack.c.h.b16 %v2214
  %v2722 = vunpack.c.l.b16 %v2215
  %v2723 = vunpack.c.h.b16 %v2215
  %v2724 = vunpack.c.l.b16 %v2216
  %v2725 = vunpack.c.h.b16 %v2216
  %v2726 = vunpack.c.l.b16 %v2217
  %v2727 = vunpack.c.h.b16 %v2217
  %v2728 = vunpack.c.l.b16 %v2218
  %v2729 = vunpack.c.h.b16 %v2218
  %v2730 = vunpack.c.l.b16 %v2219
  %v2731 = vunpack.c.h.b16 %v2219
  %v2732 = vunpack.c.l.b16 %v2220
  %v2733 = vunpack.c.h.b16 %v2220
  %v2734 = vunpack.c.l.b16 %v2221
  %v2735 = vunpack.c.h.b16 %v2221
  %v2736 = vunpack.c.l.b16 %v2222
  %v2737 = vunpack.c.h.b16 %v2222
  %v2738 = vunpack.c.l.b16 %v2223
  %v2739 = vunpack.c.h.b16 %v2223
  %v2740 = vunpack.c.l.b16 %v2224
  %v2741 = vunpack.c.h.b16 %v2224
  %v2742 = vunpack.c.l.b16 %v2225
  %v2743 = vunpack.c.h.b16 %v2225
  %v2744 = vunpack.c.l.b16 %v2226
  %v2745 = vunpack.c.h.b16 %v2226
  %v2746 = vunpack.c.l.b16 %v2227
  %v2747 = vunpack.c.h.b16 %v2227
  %v2748 = vunpack.c.l.b16 %v2228
  %v2749 = vunpack.c.h.b16 %v2228
  %v2750 = vunpack.c.l.b16 %v2229
  %v2751 = vunpack.c.h.b16 %v2229
  %v2752 = vunpack.c.l.b16 %v2230
  %v2753 = vunpack.c.h.b16 %v2230
  %v2754 = vunpack.c.l.b16 %v2231
  %v2755 = vunpack.c.h.b16 %v2231
  %v2756 = vunpack.c.l.b16 %v2232
  %v2757 = vunpack.c.h.b16 %v2232
  %v2758 = vunpack.c.l.b16 %v2233
  %v2759 = vunpack.c.h.b16 %v2233
  %v2760 = vunpack.c.l.b16 %v2234
  %v2761 = vunpack.c.h.b16 %v2234
  %v2762 = vunpack.c.l.b16 %v2235
  %v2763 = vunpack.c.h.b16 %v2235
  %v2764 = vunpack.c.l.b16 %v2236
  %v2765 = vunpack.c.h.b16 %v2236
  %v2766 = vunpack.c.l.b16 %v2237
  %v2767 = vunpack.c.h.b16 %v2237
  %v2768 = vunpack.c.l.b16 %v2238
  %v2769 = vunpack.c.h.b16 %v2238
  %v2770 = vunpack.c.l.b16 %v2239
  %v2771 = vunpack.c.h.b16 %v2239
  %v2772 = vunpack.c.l.b16 %v2240
  %v2773 = vunpack.c.h.b16 %v2240
  %v2774 = vunpack.c.l.b16 %v2241
  %v2775 = vunpack.c.h.b16 %v2241
  %v2776 = vunpack.c.l.b16 %v2242
  %v2777 = vunpack.c.h.b16 %v2242
  %v2778 = vunpack.c.l.b16 %v2243
  %v2779 = vunpack.c.h.b16 %v2243
  %v2780 = vunpack.c.l.b16 %v2244
  %v2781 = vunpack.c.h.b16 %v2244
  %v2782 = vunpack.c.l.b16 %v2245
  %v2783 = vunpack.c.h.b16 %v2245
  %v2784 = vunpack.c.l.b16 %v2246
  %v2785 = vunpack.c.h.b16 %v2246
  %v2786 = vunpack.c.l.b16 %v2247
  %v2787 = vunpack.c.h.b16 %v2247
  %v2788 = vunpack.c.l.b16 %v2248
  %v2789 = vunpack.c.h.b16 %v2248
  %v2790 = vunpack.c.l.b16 %v2249
  %v2791 = vunpack.c.h.b16 %v2249
  %v2792 = vunpack.c.l.b16 %v2250
  %v2793 = vunpack.c.h.b16 %v2250
  %v2794 = vunpack.c.l.b16 %v2251
  %v2795 = vunpack.c.h.b16 %v2251
  %v2796 = vunpack.c.l.b16 %v2252
  %v2797 = vunpack.c.h.b16 %v2252
  %v2798 = vunpack.c.l.b16 %v2253
  %v2799 = vunpack.c.h.b16 %v2253
  %v2800 = vunpack.c.l.b16 %v2254
  %v2801 = vunpack.c.h.b16 %v2254
  %v2802 = vunpack.c.l.b16 %v2255
  %v2803 = vunpack.c.h.b16 %v2255
  %v2804 = vunpack.c.l.b16 %v2256
  %v2805 = vunpack.c.h.b16 %v2256
  %v2806 = vunpack.c.l.b16 %v2257
  %v2807 = vunpack.c.h.b16 %v2257
  %v2808 = vunpack.c.l.b16 %v2258
  %v2809 = vunpack.c.h.b16 %v2258
  %v2810 = vunpack.c.l.b16 %v2259
  %v2811 = vunpack.c.h.b16 %v2259
  %v2812 = vunpack.c.l.b16 %v2260
  %v2813 = vunpack.c.h.b16 %v2260
  %v2814 = vunpack.c.l.b16 %v2261
  %v2815 = vunpack.c.h.b16 %v2261
  %v2816 = vunpack.c.l.b16 %v2262
  %v2817 = vunpack.c.h.b16 %v2262
  %v2818 = vunpack.c.l.b16 %v2263
  %v2819 = vunpack.c.h.b16 %v2263
  %v2820 = vunpack.c.l.b16 %v2264
  %v2821 = vunpack.c.h.b16 %v2264
  %v2822 = vunpack.c.l.b16 %v2265
  %v2823 = vunpack.c.h.b16 %v2265
  %v2824 = vunpack.c.l.b16 %v2266
  %v2825 = vunpack.c.h.b16 %v2266
  %v2826 = vunpack.c.l.b16 %v2267
  %v2827 = vunpack.c.h.b16 %v2267
  %v2828 = vunpack.c.l.b16 %v2268
  %v2829 = vunpack.c.h.b16 %v2268
  %v2830 = vunpack.c.l.b16 %v2269
  %v2831 = vunpack.c.h.b16 %v2269
  %v2832 = vunpack.c.l.b16 %v2270
  %v2833 = vunpack.c.h.b16 %v2270
  %v2834 = vunpack.c.l.b16 %v2271
  %v2835 = vunpack.c.h.b16 %v2271
  %v2836 = vunpack.c.l.b16 %v2272
  %v2837 = vunpack.c.h.b16 %v2272
  %v2838 = vunpack.c.l.b16 %v2273
  %v2839 = vunpack.c.h.b16 %v2273
  %v2840 = vunpack.c.l.b16 %v2274
  %v2841 = vunpack.c.h.b16 %v2274
  %v2842 = vunpack.c.l.b16 %v2275
  %v2843 = vunpack.c.h.b16 %v2275
  %v2844 = vunpack.c.l.b16 %v2276
  %v2845 = vunpack.c.h.b16 %v2276
  %v2846 = vunpack.c.l.b16 %v2277
  %v2847 = vunpack.c.h.b16 %v2277
  %v2848 = vunpack.c.l.b16 %v2278
  %v2849 = vunpack.c.h.b16 %v2278
  %v2850 = vunpack.c.l.b16 %v2279
  %v2851 = vunpack.c.h.b16 %v2279
  %v2852 = vunpack.c.l.b16 %v2280
  %v2853 = vunpack.c.h.b16 %v2280
  %v2854 = vunpack.c.l.b16 %v2281
  %v2855 = vunpack.c.h.b16 %v2281
  %v2856 = vunpack.c.l.b16 %v2282
  %v2857 = vunpack.c.h.b16 %v2282
  %v2858 = vunpack.c.l.b16 %v2283
  %v2859 = vunpack.c.h.b16 %v2283
  %v2860 = vunpack.c.l.b16 %v2284
  %v2861 = vunpack.c.h.b16 %v2284
  %v2862 = vunpack.c.l.b16 %v2285
  %v2863 = vunpack.c.h.b16 %v2285
  %v2864 = vunpack.c.l.b16 %v2286
  %v2865 = vunpack.c.h.b16 %v2286
  %v2866 = vunpack.c.l.b16 %v2287
  %v2867 = vunpack.c.h.b16 %v2287
  %v2868 = vunpack.c.l.b16 %v2288
  %v2869 = vunpack.c.h.b16 %v2288
  %v2870 = vunpack.c.l.b16 %v2289
  %v2871 = vunpack.c.h.b16 %v2289
  %v2872 = vunpack.c.l.b16 %v2290
  %v2873 = vunpack.c.h.b16 %v2290
  %v2874 = vunpack.c.l.b16 %v2291
  %v2875 = vunpack.c.h.b16 %v2291
  %v2876 = vunpack.c.l.b16 %v2292
  %v2877 = vunpack.c.h.b16 %v2292
  %v2878 = vunpack.c.l.b16 %v2293
  %v2879 = vunpack.c.h.b16 %v2293
  %v2880 = vunpack.c.l.b16 %v2294
  %v2881 = vunpack.c.h.b16 %v2294
  %v2882 = vunpack.c.l.b16 %v2295
  %v2883 = vunpack.c.h.b16 %v2295
  %v2884 = vunpack.c.l.b16 %v2296
  %v2885 = vunpack.c.h.b16 %v2296
  %v2886 = vunpack.c.l.b16 %v2297
  %v2887 = vunpack.c.h.b16 %v2297
  %v2888 = vunpack.c.l.b16 %v2298
  %v2889 = vunpack.c.h.b16 %v2298
  %v2890 = vunpack.c.l.b16 %v2299
  %v2891 = vunpack.c.h.b16 %v2299
  %v2892 = vunpack.c.l.b16 %v2300
  %v2893 = vunpack.c.h.b16 %v2300
  %v2894 = vunpack.c.l.b16 %v2301
  %v2895 = vunpack.c.h.b16 %v2301
  %v2896 = vunpack.c.l.b16 %v2302
  %v2897 = vunpack.c.h.b16 %v2302
  %v2898 = vunpack.c.l.b16 %v2303
  %v2899 = vunpack.c.h.b16 %v2303
  %v2900 = vunpack.c.l.b16 %v2304
  %v2901 = vunpack.c.h.b16 %v2304
  %v2902 = vunpack.c.l.b16 %v2305
  %v2903 = vunpack.c.h.b16 %v2305
  %v2904 = vunpack.c.l.b16 %v2306
  %v2905 = vunpack.c.h.b16 %v2306
  %v2906 = vunpack.c.l.b16 %v2307
  %v2907 = vunpack.c.h.b16 %v2307
  %v2908 = vunpack.c.l.b16 %v2308
  %v2909 = vunpack.c.h.b16 %v2308
  %v2910 = vunpack.c.l.b16 %v2309
  %v2911 = vunpack.c.h.b16 %v2309
  %v2912 = vunpack.c.l.b16 %v2310
  %v2913 = vunpack.c.h.b16 %v2310
  %v2914 = vunpack.c.l.b16 %v2311
  %v2915 = vunpack.c.h.b16 %v2311
  %v2916 = vunpack.c.l.b16 %v2312
  %v2917 = vunpack.c.h.b16 %v2312
  %v2918 = vunpack.c.l.b16 %v2313
  %v2919 = vunpack.c.h.b16 %v2313
  %v2920 = vunpack.c.l.b16 %v2314
  %v2921 = vunpack.c.h.b16 %v2314
  %v2922 = vunpack.c.l.b16 %v2315
  %v2923 = vunpack.c.h.b16 %v2315
  %v2924 = vunpack.c.l.b16 %v2316
  %v2925 = vunpack.c.h.b16 %v2316
  %v2926 = vunpack.c.l.b16 %v2317
  %v2927 = vunpack.c.h.b16 %v2317
  %v2928 = vunpack.c.l.b16 %v2318
  %v2929 = vunpack.c.h.b16 %v2318
  %v2930 = vunpack.c.l.b16 %v2319
  %v2931 = vunpack.c.h.b16 %v2319
  %v2932 = vunpack.c.l.b16 %v2320
  %v2933 = vunpack.c.h.b16 %v2320
  %v2934 = vunpack.c.l.b16 %v2321
  %v2935 = vunpack.c.h.b16 %v2321
  %v2936 = vunpack.c.l.b16 %v2322
  %v2937 = vunpack.c.h.b16 %v2322
  %v2938 = vunpack.c.l.b16 %v2323
  %v2939 = vunpack.c.h.b16 %v2323
  %v2940 = vunpack.c.l.b16 %v2324
  %v2941 = vunpack.c.h.b16 %v2324
  %v2942 = vunpack.c.l.b16 %v2325
  %v2943 = vunpack.c.h.b16 %v2325
  %v2944 = vunpack.c.l.b16 %v2326
  %v2945 = vunpack.c.h.b16 %v2326
  %v2946 = vunpack.c.l.b16 %v2327
  %v2947 = vunpack.c.h.b16 %v2327
  %v2948 = vunpack.c.l.b16 %v2328
  %v2949 = vunpack.c.h.b16 %v2328
  %v2950 = vunpack.c.l.b16 %v2329
  %v2951 = vunpack.c.h.b16 %v2329
  %v2952 = vunpack.c.l.b16 %v2330
  %v2953 = vunpack.c.h.b16 %v2330
  %v2954 = vunpack.c.l.b16 %v2331
  %v2955 = vunpack.c.h.b16 %v2331
  %v2956 = vunpack.c.l.b16 %v2332
  %v2957 = vunpack.c.h.b16 %v2332
  %v2958 = vunpack.c.l.b16 %v2333
  %v2959 = vunpack.c.h.b16 %v2333
  %v2960 = vunpack.c.l.b16 %v2334
  %v2961 = vunpack.c.h.b16 %v2334
  %v2962 = vunpack.c.l.b16 %v2335
  %v2963 = vunpack.c.h.b16 %v2335
  %v2964 = vunpack.c.l.b16 %v2336
  %v2965 = vunpack.c.h.b16 %v2336
  %v2966 = vunpack.c.l.b16 %v2337
  %v2967 = vunpack.c.h.b16 %v2337
  %v2968 = vunpack.c.l.b16 %v2338
  %v2969 = vunpack.c.h.b16 %v2338
  %v2970 = vunpack.c.l.b16 %v2339
  %v2971 = vunpack.c.h.b16 %v2339
  %v2972 = vunpack.c.l.b16 %v2340
  %v2973 = vunpack.c.h.b16 %v2340
  %v2974 = vunpack.c.l.b16 %v2341
  %v2975 = vunpack.c.h.b16 %v2341
  %v2976 = vunpack.c.l.b16 %v2342
  %v2977 = vunpack.c.h.b16 %v2342
  %v2978 = vunpack.c.l.b16 %v2343
  %v2979 = vunpack.c.h.b16 %v2343
  %v2980 = vunpack.c.l.b16 %v2344
  %v2981 = vunpack.c.h.b16 %v2344
  %v2982 = vunpack.c.l.b16 %v2345
  %v2983 = vunpack.c.h.b16 %v2345
  %v2984 = vunpack.c.l.b16 %v2346
  %v2985 = vunpack.c.h.b16 %v2346
  %v2986 = vunpack.c.l.b16 %v2347
  %v2987 = vunpack.c.h.b16 %v2347
  %v2988 = vunpack.c.l.b16 %v2348
  %v2989 = vunpack.c.h.b16 %v2348
  %v2990 = vunpack.c.l.b16 %v2349
  %v2991 = vunpack.c.h.b16 %v2349
  %v2992 = vunpack.c.l.b16 %v2350
  %v2993 = vunpack.c.h.b16 %v2350
  %v2994 = vunpack.c.l.b16 %v2351
  %v2995 = vunpack.c.h.b16 %v2351
  %v2996 = vunpack.c.l.b16 %v2352
  %v2997 = vunpack.c.h.b16 %v2352
  %v2998 = vunpack.c.l.b16 %v2353
  %v2999 = vunpack.c.h.b16 %v2353
  %v3000 = vunpack.c.l.b16 %v2354
  %v3001 = vunpack.c.h.b16 %v2354
  %v3002 = vunpack.c.l.b16 %v2355
  %v3003 = vunpack.c.h.b16 %v2355
  %v3004 = vunpack.c.l.b16 %v2356
  %v3005 = vunpack.c.h.b16 %v2356
  %v3006 = vunpack.c.l.b16 %v2357
  %v3007 = vunpack.c.h.b16 %v2357
  %v3008 = vunpack.c.l.b16 %v2358
  %v3009 = vunpack.c.h.b16 %v2358
  %v3010 = vunpack.c.l.b16 %v2359
  %v3011 = vunpack.c.h.b16 %v2359
  %v3012 = vunpack.c.l.b16 %v2360
  %v3013 = vunpack.c.h.b16 %v2360
  %v3014 = vunpack.c.l.b16 %v2361
  %v3015 = vunpack.c.h.b16 %v2361
  %v3016 = vunpack.c.l.b16 %v2362
  %v3017 = vunpack.c.h.b16 %v2362
  %v3018 = vunpack.c.l.b16 %v2363
  %v3019 = vunpack.c.h.b16 %v2363
  %v3020 = vunpack.c.l.b16 %v2364
  %v3021 = vunpack.c.h.b16 %v2364
  %v3022 = vunpack.c.l.b16 %v2365
  %v3023 = vunpack.c.h.b16 %v2365
  %v3024 = vunpack.c.l.b16 %v2366
  %v3025 = vunpack.c.h.b16 %v2366
  %v3026 = vunpack.c.l.b16 %v2367
  %v3027 = vunpack.c.h.b16 %v2367
  %v3028 = vunpack.c.l.b16 %v2368
  %v3029 = vunpack.c.h.b16 %v2368
  %v3030 = vunpack.c.l.b16 %v2369
  %v3031 = vunpack.c.h.b16 %v2369
  %v3032 = vunpack.c.l.b16 %v2370
  %v3033 = vunpack.c.h.b16 %v2370
  %v3034 = vunpack.c.l.b16 %v2371
  %v3035 = vunpack.c.h.b16 %v2371
  %v3036 = vunpack.c.l.b16 %v2372
  %v3037 = vunpack.c.h.b16 %v2372
  %v3038 = vunpack.c.l.b16 %v2373
  %v3039 = vunpack.c.h.b16 %v2373
  %v3040 = vunpack.c.l.b16 %v2374
  %v3041 = vunpack.c.h.b16 %v2374
  %v3042 = vunpack.c.l.b16 %v2375
  %v3043 = vunpack.c.h.b16 %v2375
  %v3044 = vunpack.c.l.b16 %v2376
  %v3045 = vunpack.c.h.b16 %v2376
  %v3046 = vunpack.c.l.b16 %v2377
  %v3047 = vunpack.c.h.b16 %v2377
  %v3048 = vpack.c.b16 %v2620, %v2616
  %v3049 = vpack.c.b16 %v2621, %v2617
  %v3050 = vpack.c.b16 %v2622, %v2618
  %v3051 = vpack.c.b16 %v2623, %v2619
  %v3052 = vpack.c.b16 %v2628, %v2624
  %v3053 = vpack.c.b16 %v2629, %v2625
  %v3054 = vpack.c.b16 %v2630, %v2626
  %v3055 = vpack.c.b16 %v2631, %v2627
  %v3056 = vpack.c.b16 %v2636, %v2632
  %v3057 = vpack.c.b16 %v2637, %v2633
  %v3058 = vpack.c.b16 %v2638, %v2634
  %v3059 = vpack.c.b16 %v2639, %v2635
  %v3060 = vpack.c.b16 %v2644, %v2640
  %v3061 = vpack.c.b16 %v2645, %v2641
  %v3062 = vpack.c.b16 %v2646, %v2642
  %v3063 = vpack.c.b16 %v2647, %v2643
  %v3064 = vpack.c.b16 %v2652, %v2648
  %v3065 = vpack.c.b16 %v2653, %v2649
  %v3066 = vpack.c.b16 %v2654, %v2650
  %v3067 = vpack.c.b16 %v2655, %v2651
  %v3068 = vpack.c.b16 %v2660, %v2656
  %v3069 = vpack.c.b16 %v2661, %v2657
  %v3070 = vpack.c.b16 %v2662, %v2658
  %v3071 = vpack.c.b16 %v2663, %v2659
  %v3072 = vpack.c.b16 %v2668, %v2664
  %v3073 = vpack.c.b16 %v2669, %v2665
  %v3074 = vpack.c.b16 %v2670, %v2666
  %v3075 = vpack.c.b16 %v2671, %v2667
  %v3076 = vpack.c.b16 %v2676, %v2672
  %v3077 = vpack.c.b16 %v2677, %v2673
  %v3078 = vpack.c.b16 %v2678, %v2674
  %v3079 = vpack.c.b16 %v2679, %v2675
  %v3080 = vpack.c.b16 %v2684, %v2680
  %v3081 = vpack.c.b16 %v2685, %v2681
  %v3082 = vpack.c.b16 %v2686, %v2682
  %v3083 = vpack.c.b16 %v2687, %v2683
  %v3084 = vpack.c.b16 %v2692, %v2688
  %v3085 = vpack.c.b16 %v2693, %v2689
  %v3086 = vpack.c.b16 %v2694, %v2690
  %v3087 = vpack.c.b16 %v2695, %v2691
  %v3088 = vpack.c.b16 %v2700, %v2696
  %v3089 = vpack.c.b16 %v2701, %v2697
  %v3090 = vpack.c.b16 %v2702, %v2698
  %v3091 = vpack.c.b16 %v2703, %v2699
  %v3092 = vpack.c.b16 %v2708, %v2704
  %v3093 = vpack.c.b16 %v2709, %v2705
  %v3094 = vpack.c.b16 %v2710, %v2706
  %v3095 = vpack.c.b16 %v2711, %v2707
  %v3096 = vpack.c.b16 %v2716, %v2712
  %v3097 = vpack.c.b16 %v2717, %v2713
  %v3098 = vpack.c.b16 %v2718, %v2714
  %v3099 = vpack.c.b16 %v2719, %v2715
  %v3100 = vpack.c.b16 %v2724, %v2720
  %v3101 = vpack.c.b16 %v2725, %v2721
  %v3102 = vpack.c.b16 %v2726, %v2722
  %v3103 = vpack.c.b16 %v2727, %v2723
  %v3104 = vpack.c.b16 %v2732, %v2728
  %v3105 = vpack.c.b16 %v2733, %v2729
  %v3106 = vpack.c.b16 %v2734, %v2730
  %v3107 = vpack.c.b16 %v2735, %v2731
  %v3108 = vpack.c.b16 %v2740, %v2736
  %v3109 = vpack.c.b16 %v2741, %v2737
  %v3110 = vpack.c.b16 %v2742, %v2738
  %v3111 = vpack.c.b16 %v2743, %v2739
  %v3112 = vpack.c.b16 %v2748, %v2744
  %v3113 = vpack.c.b16 %v2749, %v2745
  %v3114 = vpack.c.b16 %v2750, %v2746
  %v3115 = vpack.c.b16 %v2751, %v2747
  %v3116 = vpack.c.b16 %v2756, %v2752
  %v3117 = vpack.c.b16 %v2757, %v2753
  %v3118 = vpack.c.b16 %v2758, %v2754
  %v3119 = vpack.c.b16 %v2759, %v2755
  %v3120 = vpack.c.b16 %v2764, %v2760
  %v3121 = vpack.c.b16 %v2765, %v2761
  %v3122 = vpack.c.b16 %v2766, %v2762
  %v3123 = vpack.c.b16 %v2767, %v2763
  %v3124 = vpack.c.b16 %v2772, %v2768
  %v3125 = vpack.c.b16 %v2773, %v2769
  %v3126 = vpack.c.b16 %v2774, %v2770
  %v3127 = vpack.c.b16 %v2775, %v2771
  %v3128 = vpack.c.b16 %v2780, %v2776
  %v3129 = vpack.c.b16 %v2781, %v2777
  %v3130 = vpack.c.b16 %v2782, %v2778
  %v3131 = vpack.c.b16 %v2783, %v2779
  %v3132 = vpack.c.b16 %v2788, %v2784
  %v3133 = vpack.c.b16 %v2789, %v2785
  %v3134 = vpack.c.b16 %v2790, %v2786
  %v3135 = vpack.c.b16 %v2791, %v2787
  %v3136 = vpack.c.b16 %v2796, %v2792
  %v3137 = vpack.c.b16 %v2797, %v2793
  %v3138 = vpack.c.b16 %v2798, %v2794
  %v3139 = vpack.c.b16 %v2799, %v2795
  %v3140 = vpack.c.b16 %v2804, %v2800
  %v3141 = vpack.c.b16 %v2805, %v2801
  %v3142 = vpack.c.b16 %v2806, %v2802
  %v3143 = vpack.c.b16 %v2807, %v2803
  %v3144 = vpack.c.b16 %v2812, %v2808
  %v3145 = vpack.c.b16 %v2813, %v2809
  %v3146 = vpack.c.b16 %v2814, %v2810
  %v3147 = vpack.c.b16 %v2815, %v2811
  %v3148 = vpack.c.b16 %v2820, %v2816
  %v3149 = vpack.c.b16 %v2821, %v2817
  %v3150 = vpack.c.b16 %v2822, %v2818
  %v3151 = vpack.c.b16 %v2823, %v2819
  %v3152 = vpack.c.b16 %v2828, %v2824
  %v3153 = vpack.c.b16 %v2829, %v2825
  %v3154 = vpack.c.b16 %v2830, %v2826
  %v3155 = vpack.c.b16 %v2831, %v2827
  %v3156 = vpack.c.b16 %v2836, %v2832
  %v3157 = vpack.c.b16 %v2837, %v2833
  %v3158 = vpack.c.b16 %v2838, %v2834
  %v3159 = vpack.c.b16 %v2839, %v2835
  %v3160 = vpack.c.b16 %v2844, %v2840
  %v3161 = vpack.c.b16 %v2845, %v2841
  %v3162 = vpack.c.b16 %v2846, %v2842
  %v3163 = vpack.c.b16 %v2847, %v2843
  %v3164 = vpack.c.b16 %v2852, %v2848
  %v3165 = vpack.c.b16 %v2853, %v2849
  %v3166 = vpack.c.b16 %v2854, %v2850
  %v3167 = vpack.c.b16 %v2855, %v2851
  %v3168 = vpack.c.b16 %v2860, %v2856
  %v3169 = vpack.c.b16 %v2861, %v2857
  %v3170 = vpack.c.b16 %v2862, %v2858
  %v3171 = vpack.c.b16 %v2863, %v2859
  %v3172 = vpack.c.b16 %v2868, %v2864
  %v3173 = vpack.c.b16 %v2869, %v2865
  %v3174 = vpack.c.b16 %v2870, %v2866
  %v3175 = vpack.c.b16 %v2871, %v2867
  %v3176 = vpack.c.b16 %v2876, %v2872
  %v3177 = vpack.c.b16 %v2877, %v2873
  %v3178 = vpack.c.b16 %v2878, %v2874
  %v3179 = vpack.c.b16 %v2879, %v2875
  %v3180 = vpack.c.b16 %v2884, %v2880
  %v3181 = vpack.c.b16 %v2885, %v2881
  %v3182 = vpack.c.b16 %v2886, %v2882
  %v3183 = vpack.c.b16 %v2887, %v2883
  %v3184 = vpack.c.b16 %v2892, %v2888
  %v3185 = vpack.c.b16 %v2893, %v2889
  %v3186 = vpack.c.b16 %v2894, %v2890
  %v3187 = vpack.c.b16 %v2895, %v2891
  %v3188 = vpack.c.b16 %v2900, %v2896
  %v3189 = vpack.c.b16 %v2901, %v2897
  %v3190 = vpack.c.b16 %v2902, %v2898
  %v3191 = vpack.c.b16 %v2903, %v2899
  %v3192 = vpack.c.b16 %v2908, %v2904
  %v3193 = vpack.c.b16 %v2909, %v2905
  %v3194 = vpack.c.b16 %v2910, %v2906
  %v3195 = vpack.c.b16 %v2911, %v2907
  %v3196 = vpack.c.b16 %v2916, %v2912
  %v3197 = vpack.c.b16 %v2917, %v2913
  %v3198 = vpack.c.b16 %v2918, %v2914
  %v3199 = vpack.c.b16 %v2919, %v2915
  %v3200 = vpack.c.b16 %v2924, %v2920
  %v3201 = vpack.c.b16 %v2925, %v2921
  %v3202 = vpack.c.b16 %v2926, %v2922
  %v3203 = vpack.c.b16 %v2927, %v2923
  %v3204 = vpack.c.b16 %v2932, %v2928
  %v3205 = vpack.c.b16 %v2933, %v2929
  %v3206 = vpack.c.b16 %v2934, %v2930
  %v3207 = vpack.c.b16 %v2935, %v2931
  %v3208 = vpack.c.b16 %v2940, %v2936
  %v3209 = vpack.c.b16 %v2941, %v2937
  %v3210 = vpack.c.b16 %v2942, %v2938
  %v3211 = vpack.c.b16 %v2943, %v2939
  %v3212 = vpack.c.b16 %v2948, %v2944
  %v3213 = vpack.c.b16 %v2949, %v2945
  %v3214 = vpack.c.b16 %v2950, %v2946
  %v3215 = vpack.c.b16 %v2951, %v2947
  %v3216 = vpack.c.b16 %v2956, %v2952
  %v3217 = vpack.c.b16 %v2957, %v2953
  %v3218 = vpack.c.b16 %v2958, %v2954
  %v3219 = vpack.c.b16 %v2959, %v2955
  %v3220 = vpack.c.b16 %v2964, %v2960
  %v3221 = vpack.c.b16 %v2965, %v2961
  %v3222 = vpack.c.b16 %v2966, %v2962
  %v3223 = vpack.c.b16 %v2967, %v2963
  %v3224 = vpack.c.b16 %v2972, %v2968
  %v3225 = vpack.c.b16 %v2973, %v2969
  %v3226 = vpack.c.b16 %v2974, %v2970
  %v3227 = vpack.c.b16 %v2975, %v2971
  %v3228 = vpack.c.b16 %v2980, %v2976
  %v3229 = vpack.c.b16 %v2981, %v2977
  %v3230 = vpack.c.b16 %v2982, %v2978
  %v3231 = vpack.c.b16 %v2983, %v2979
  %v3232 = vpack.c.b16 %v2988, %v2984
  %v3233 = vpack.c.b16 %v2989, %v2985
  %v3234 = vpack.c.b16 %v2990, %v2986
  %v3235 = vpack.c.b16 %v2991, %v2987
  %v3236 = vpack.c.b16 %v2996, %v2992
  %v3237 = vpack.c.b16 %v2997, %v2993
  %v3238 = vpack.c.b16 %v2998, %v2994
  %v3239 = vpack.c.b16 %v2999, %v2995
  %v3240 = vpack.c.b16 %v3004, %v3000
  %v3241 = vpack.c.b16 %v3005, %v3001
  %v3242 = vpack.c.b16 %v3006, %v3002
  %v3243 = vpack.c.b16 %v3007, %v3003
  %v3244 = vpack.c.b16 %v3012, %v3008
  %v3245 = vpack.c.b16 %v3013, %v3009
  %v3246 = vpack.c.b16 %v3014, %v3010
  %v3247 = vpack.c.b16 %v3015, %v3011
  %v3248 = vpack.c.b16 %v3020, %v3016
  %v3249 = vpack.c.b16 %v3021, %v3017
  %v3250 = vpack.c.b16 %v3022, %v3018
  %v3251 = vpack.c.b16 %v3023, %v3019
  %v3252 = vpack.c.b16 %v3028, %v3024
  %v3253 = vpack.c.b16 %v3029, %v3025
  %v3254 = vpack.c.b16 %v3030, %v3026
  %v3255 = vpack.c.b16 %v3031, %v3027
  %v3256 = vpack.c.b16 %v3036, %v3032
  %v3257 = vpack.c.b16 %v3037, %v3033
  %v3258 = vpack.c.b16 %v3038, %v3034
  %v3259 = vpack.c.b16 %v3039, %v3035
  %v3260 = vpack.c.b16 %v3044, %v3040
  %v3261 = vpack.c.b16 %v3045, %v3041
  %v3262 = vpack.c.b16 %v3046, %v3042
  %v3263 = vpack.c.b16 %v3047, %v3043
  %vm3480 = vcmask 785408
  %v3482 = vsel %vm3480, %v2161, 0
  %3484 = vmatprep.subr.bf16.mxu0 %v3077
  %3485 = vmatpush1.bf16.msra.mxu0 %v3076
  %3486 = vmatprep.subr.bf16.mxu0 %v3073
  %3487 = vmatpush1.bf16.msra.mxu0 %v3072
  %3488 = vmatprep.subr.bf16.mxu0 %v3069
  %3489 = vmatpush1.bf16.msra.mxu0 %v3068
  %3490 = vmatprep.subr.bf16.mxu0 %v3065
  %3491 = vmatpush1.bf16.msra.mxu0 %v3064
  %3492 = vmatprep.subr.bf16.mxu0 %v3061
  %3493 = vmatpush1.bf16.msra.mxu0 %v3060
  %3494 = vmatprep.subr.bf16.mxu0 %v3057
  %3495 = vmatpush1.bf16.msra.mxu0 %v3056
  %3496 = vmatprep.subr.bf16.mxu0 %v3053
  %3497 = vmatpush1.bf16.msra.mxu0 %v3052
  %3498 = vmatprep.subr.bf16.mxu0 %v3049
  %3499 = vmatpush1.bf16.msra.mxu0 %v3048
  %3500 = vmatprep.subr.bf16.mxu0 %v3109
  %3501 = vmatpush2.bf16.msra.mxu0 %v3108
  %3502 = vmatprep.subr.bf16.mxu0 %v3105
  %3503 = vmatpush2.bf16.msra.mxu0 %v3104
  %3504 = vmatprep.subr.bf16.mxu0 %v3101
  %3505 = vmatpush2.bf16.msra.mxu0 %v3100
  %3506 = vmatprep.subr.bf16.mxu0 %v3097
  %3507 = vmatpush2.bf16.msra.mxu0 %v3096
  %3508 = vmatprep.subr.bf16.mxu0 %v3093
  %3509 = vmatpush2.bf16.msra.mxu0 %v3092
  %3510 = vmatprep.subr.bf16.mxu0 %v3089
  %3511 = vmatpush2.bf16.msra.mxu0 %v3088
  %3512 = vmatprep.subr.bf16.mxu0 %v3085
  %3513 = vmatpush2.bf16.msra.mxu0 %v3084
  %3514 = vmatprep.subr.bf16.mxu0 %v3081
  %3515 = vmatpush2.bf16.msra.mxu0 %v3080
  %3516 = vmatprep.mubr.bf16.mxu0 %v2156
  %3517 = vmatmul.mubr.bf16.gmra.mxu0 %v2155
  %v3518 = vpop.f32.mrf.mxu0
  %v3519 = vadd.f32 %v2383, %v3518
  %v3520 = vpop.f32.mrf.mxu0
  %v3521 = vadd.f32 %v2387, %v3520
  %v3522 = vpop.f32.mrf.mxu0
  %v3523 = vpop.f32.mrf.mxu0
  %3524 = vdwg.mxu0
  %3525 = vmatprep.subr.bf16.mxu0 %v3141
  %3526 = vmatpush1.bf16.msra.mxu0 %v3140
  %3527 = vmatprep.subr.bf16.mxu0 %v3137
  %3528 = vmatpush1.bf16.msra.mxu0 %v3136
  %3529 = vmatprep.subr.bf16.mxu0 %v3133
  %3530 = vmatpush1.bf16.msra.mxu0 %v3132
  %3531 = vmatprep.subr.bf16.mxu0 %v3129
  %3532 = vmatpush1.bf16.msra.mxu0 %v3128
  %3533 = vmatprep.subr.bf16.mxu0 %v3125
  %3534 = vmatpush1.bf16.msra.mxu0 %v3124
  %3535 = vmatprep.subr.bf16.mxu0 %v3121
  %3536 = vmatpush1.bf16.msra.mxu0 %v3120
  %3537 = vmatprep.subr.bf16.mxu0 %v3117
  %3538 = vmatpush1.bf16.msra.mxu0 %v3116
  %3539 = vmatprep.subr.bf16.mxu0 %v3113
  %3540 = vmatpush1.bf16.msra.mxu0 %v3112
  %3541 = vmatprep.subr.bf16.mxu0 %v3173
  %3542 = vmatpush2.bf16.msra.mxu0 %v3172
  %3543 = vmatprep.subr.bf16.mxu0 %v3169
  %3544 = vmatpush2.bf16.msra.mxu0 %v3168
  %3545 = vmatprep.subr.bf16.mxu0 %v3165
  %3546 = vmatpush2.bf16.msra.mxu0 %v3164
  %3547 = vmatprep.subr.bf16.mxu0 %v3161
  %3548 = vmatpush2.bf16.msra.mxu0 %v3160
  %3549 = vmatprep.subr.bf16.mxu0 %v3157
  %3550 = vmatpush2.bf16.msra.mxu0 %v3156
  %3551 = vmatprep.subr.bf16.mxu0 %v3153
  %3552 = vmatpush2.bf16.msra.mxu0 %v3152
  %3553 = vmatprep.subr.bf16.mxu0 %v3149
  %3554 = vmatpush2.bf16.msra.mxu0 %v3148
  %3555 = vmatprep.subr.bf16.mxu0 %v3145
  %3556 = vmatpush2.bf16.msra.mxu0 %v3144
  %3557 = vmatprep.mubr.bf16.mxu0 %v2158
  %3558 = vmatmul.mubr.bf16.gmra.mxu0 %v2157
  %v3559 = vpop.f32.mrf.mxu0
  %v3560 = vadd.f32 %v3519, %v3559
  %v3561 = vpop.f32.mrf.mxu0
  %v3562 = vadd.f32 %v3521, %v3561
  %v3563 = vpop.f32.mrf.mxu0
  %v3564 = vpop.f32.mrf.mxu0
  %3565 = vdwg.mxu0
  %3566 = vmatprep.subr.bf16.mxu0 %v3205
  %3567 = vmatpush1.bf16.msra.mxu0 %v3204
  %3568 = vmatprep.subr.bf16.mxu0 %v3201
  %3569 = vmatpush1.bf16.msra.mxu0 %v3200
  %3570 = vmatprep.subr.bf16.mxu0 %v3197
  %3571 = vmatpush1.bf16.msra.mxu0 %v3196
  %3572 = vmatprep.subr.bf16.mxu0 %v3193
  %3573 = vmatpush1.bf16.msra.mxu0 %v3192
  %3574 = vmatprep.subr.bf16.mxu0 %v3189
  %3575 = vmatpush1.bf16.msra.mxu0 %v3188
  %3576 = vmatprep.subr.bf16.mxu0 %v3185
  %3577 = vmatpush1.bf16.msra.mxu0 %v3184
  %3578 = vmatprep.subr.bf16.mxu0 %v3181
  %3579 = vmatpush1.bf16.msra.mxu0 %v3180
  %3580 = vmatprep.subr.bf16.mxu0 %v3177
  %3581 = vmatpush1.bf16.msra.mxu0 %v3176
  %3582 = vmatprep.subr.bf16.mxu0 %v3237
  %3583 = vmatpush2.bf16.msra.mxu0 %v3236
  %3584 = vmatprep.subr.bf16.mxu0 %v3233
  %3585 = vmatpush2.bf16.msra.mxu0 %v3232
  %3586 = vmatprep.subr.bf16.mxu0 %v3229
  %3587 = vmatpush2.bf16.msra.mxu0 %v3228
  %3588 = vmatprep.subr.bf16.mxu0 %v3225
  %3589 = vmatpush2.bf16.msra.mxu0 %v3224
  %3590 = vmatprep.subr.bf16.mxu0 %v3221
  %3591 = vmatpush2.bf16.msra.mxu0 %v3220
  %3592 = vmatprep.subr.bf16.mxu0 %v3217
  %3593 = vmatpush2.bf16.msra.mxu0 %v3216
  %3594 = vmatprep.subr.bf16.mxu0 %v3213
  %3595 = vmatpush2.bf16.msra.mxu0 %v3212
  %3596 = vmatprep.subr.bf16.mxu0 %v3209
  %3597 = vmatpush2.bf16.msra.mxu0 %v3208
  %3598 = vmatprep.mubr.bf16.mxu0 %v2160
  %3599 = vmatmul.mubr.bf16.gmra.mxu0 %v2159
  %v3600 = vpop.f32.mrf.mxu0
  %v3601 = vadd.f32 %v3560, %v3600
  %v3602 = vpop.f32.mrf.mxu0
  %v3603 = vadd.f32 %v3562, %v3602
  %v3604 = vpop.f32.mrf.mxu0
  %v3605 = vpop.f32.mrf.mxu0
  %3606 = vdwg.mxu0
  %3607 = vmatprep.subr.bf16.mxu0 0
  %3608 = vmatpush1.bf16.msra.mxu0 0
  %3609 = vmatprep.subr.bf16.mxu0 0
  %3610 = vmatpush1.bf16.msra.mxu0 0
  %3611 = vmatprep.subr.bf16.mxu0 %v3261
  %3612 = vmatpush1.bf16.msra.mxu0 %v3260
  %3613 = vmatprep.subr.bf16.mxu0 %v3257
  %3614 = vmatpush1.bf16.msra.mxu0 %v3256
  %3615 = vmatprep.subr.bf16.mxu0 %v3253
  %3616 = vmatpush1.bf16.msra.mxu0 %v3252
  %3617 = vmatprep.subr.bf16.mxu0 %v3249
  %3618 = vmatpush1.bf16.msra.mxu0 %v3248
  %3619 = vmatprep.subr.bf16.mxu0 %v3245
  %3620 = vmatpush1.bf16.msra.mxu0 %v3244
  %3621 = vmatprep.subr.bf16.mxu0 %v3241
  %3622 = vmatpush1.bf16.msra.mxu0 %v3240
  %3623 = vmatprep.subr.bf16.mxu0 0
  %3624 = vmatpush2.bf16.msra.mxu0 0
  %3625 = vmatprep.subr.bf16.mxu0 0
  %3626 = vmatpush2.bf16.msra.mxu0 0
  %3627 = vmatprep.subr.bf16.mxu0 0
  %3628 = vmatpush2.bf16.msra.mxu0 0
  %3629 = vmatprep.subr.bf16.mxu0 0
  %3630 = vmatpush2.bf16.msra.mxu0 0
  %3631 = vmatprep.subr.bf16.mxu0 0
  %3632 = vmatpush2.bf16.msra.mxu0 0
  %3633 = vmatprep.subr.bf16.mxu0 0
  %3634 = vmatpush2.bf16.msra.mxu0 0
  %3635 = vmatprep.subr.bf16.mxu0 0
  %3636 = vmatpush2.bf16.msra.mxu0 0
  %3637 = vmatprep.subr.bf16.mxu0 0
  %3638 = vmatpush2.bf16.msra.mxu0 0
  %3639 = vmatprep.mubr.bf16.mxu0 0
  %3640 = vmatmul.mubr.bf16.gmra.mxu0 %v3482
  %v3641 = vpop.f32.mrf.mxu0
  %v3642 = vadd.f32 %v3601, %v3641
  %v3643 = vpop.f32.mrf.mxu0
  %v3644 = vadd.f32 %v3603, %v3643
  %v3645 = vpop.f32.mrf.mxu0
  %v3646 = vpop.f32.mrf.mxu0
  %3647 = vdwg.mxu0
  %3648 = vmatprep.subr.bf16.mxu0 %v3079
  %3649 = vmatpush1.bf16.msra.mxu0 %v3078
  %3650 = vmatprep.subr.bf16.mxu0 %v3075
  %3651 = vmatpush1.bf16.msra.mxu0 %v3074
  %3652 = vmatprep.subr.bf16.mxu0 %v3071
  %3653 = vmatpush1.bf16.msra.mxu0 %v3070
  %3654 = vmatprep.subr.bf16.mxu0 %v3067
  %3655 = vmatpush1.bf16.msra.mxu0 %v3066
  %3656 = vmatprep.subr.bf16.mxu0 %v3063
  %3657 = vmatpush1.bf16.msra.mxu0 %v3062
  %3658 = vmatprep.subr.bf16.mxu0 %v3059
  %3659 = vmatpush1.bf16.msra.mxu0 %v3058
  %3660 = vmatprep.subr.bf16.mxu0 %v3055
  %3661 = vmatpush1.bf16.msra.mxu0 %v3054
  %3662 = vmatprep.subr.bf16.mxu0 %v3051
  %3663 = vmatpush1.bf16.msra.mxu0 %v3050
  %3664 = vmatprep.subr.bf16.mxu0 %v3111
  %3665 = vmatpush2.bf16.msra.mxu0 %v3110
  %3666 = vmatprep.subr.bf16.mxu0 %v3107
  %3667 = vmatpush2.bf16.msra.mxu0 %v3106
  %3668 = vmatprep.subr.bf16.mxu0 %v3103
  %3669 = vmatpush2.bf16.msra.mxu0 %v3102
  %3670 = vmatprep.subr.bf16.mxu0 %v3099
  %3671 = vmatpush2.bf16.msra.mxu0 %v3098
  %3672 = vmatprep.subr.bf16.mxu0 %v3095
  %3673 = vmatpush2.bf16.msra.mxu0 %v3094
  %3674 = vmatprep.subr.bf16.mxu0 %v3091
  %3675 = vmatpush2.bf16.msra.mxu0 %v3090
  %3676 = vmatprep.subr.bf16.mxu0 %v3087
  %3677 = vmatpush2.bf16.msra.mxu0 %v3086
  %3678 = vmatprep.subr.bf16.mxu0 %v3083
  %3679 = vmatpush2.bf16.msra.mxu0 %v3082
  %3680 = vmatprep.mubr.bf16.mxu0 %v2156
  %3681 = vmatmul.mubr.bf16.gmra.mxu0 %v2155
  %v3682 = vpop.f32.mrf.mxu0
  %v3683 = vadd.f32 %v2391, %v3682
  %v3684 = vpop.f32.mrf.mxu0
  %v3685 = vadd.f32 %v2395, %v3684
  %v3686 = vpop.f32.mrf.mxu0
  %v3687 = vpop.f32.mrf.mxu0
  %3688 = vdwg.mxu0
  %3689 = vmatprep.subr.bf16.mxu0 %v3143
  %3690 = vmatpush1.bf16.msra.mxu0 %v3142
  %3691 = vmatprep.subr.bf16.mxu0 %v3139
  %3692 = vmatpush1.bf16.msra.mxu0 %v3138
  %3693 = vmatprep.subr.bf16.mxu0 %v3135
  %3694 = vmatpush1.bf16.msra.mxu0 %v3134
  %3695 = vmatprep.subr.bf16.mxu0 %v3131
  %3696 = vmatpush1.bf16.msra.mxu0 %v3130
  %3697 = vmatprep.subr.bf16.mxu0 %v3127
  %3698 = vmatpush1.bf16.msra.mxu0 %v3126
  %3699 = vmatprep.subr.bf16.mxu0 %v3123
  %3700 = vmatpush1.bf16.msra.mxu0 %v3122
  %3701 = vmatprep.subr.bf16.mxu0 %v3119
  %3702 = vmatpush1.bf16.msra.mxu0 %v3118
  %3703 = vmatprep.subr.bf16.mxu0 %v3115
  %3704 = vmatpush1.bf16.msra.mxu0 %v3114
  %3705 = vmatprep.subr.bf16.mxu0 %v3175
  %3706 = vmatpush2.bf16.msra.mxu0 %v3174
  %3707 = vmatprep.subr.bf16.mxu0 %v3171
  %3708 = vmatpush2.bf16.msra.mxu0 %v3170
  %3709 = vmatprep.subr.bf16.mxu0 %v3167
  %3710 = vmatpush2.bf16.msra.mxu0 %v3166
  %3711 = vmatprep.subr.bf16.mxu0 %v3163
  %3712 = vmatpush2.bf16.msra.mxu0 %v3162
  %3713 = vmatprep.subr.bf16.mxu0 %v3159
  %3714 = vmatpush2.bf16.msra.mxu0 %v3158
  %3715 = vmatprep.subr.bf16.mxu0 %v3155
  %3716 = vmatpush2.bf16.msra.mxu0 %v3154
  %3717 = vmatprep.subr.bf16.mxu0 %v3151
  %3718 = vmatpush2.bf16.msra.mxu0 %v3150
  %3719 = vmatprep.subr.bf16.mxu0 %v3147
  %3720 = vmatpush2.bf16.msra.mxu0 %v3146
  %3721 = vmatprep.mubr.bf16.mxu0 %v2158
  %3722 = vmatmul.mubr.bf16.gmra.mxu0 %v2157
  %v3723 = vpop.f32.mrf.mxu0
  %v3724 = vadd.f32 %v3683, %v3723
  %v3725 = vpop.f32.mrf.mxu0
  %v3726 = vadd.f32 %v3685, %v3725
  %v3727 = vpop.f32.mrf.mxu0
  %v3728 = vpop.f32.mrf.mxu0
  %3729 = vdwg.mxu0
  %3730 = vmatprep.subr.bf16.mxu0 %v3207
  %3731 = vmatpush1.bf16.msra.mxu0 %v3206
  %3732 = vmatprep.subr.bf16.mxu0 %v3203
  %3733 = vmatpush1.bf16.msra.mxu0 %v3202
  %3734 = vmatprep.subr.bf16.mxu0 %v3199
  %3735 = vmatpush1.bf16.msra.mxu0 %v3198
  %3736 = vmatprep.subr.bf16.mxu0 %v3195
  %3737 = vmatpush1.bf16.msra.mxu0 %v3194
  %3738 = vmatprep.subr.bf16.mxu0 %v3191
  %3739 = vmatpush1.bf16.msra.mxu0 %v3190
  %3740 = vmatprep.subr.bf16.mxu0 %v3187
  %3741 = vmatpush1.bf16.msra.mxu0 %v3186
  %3742 = vmatprep.subr.bf16.mxu0 %v3183
  %3743 = vmatpush1.bf16.msra.mxu0 %v3182
  %3744 = vmatprep.subr.bf16.mxu0 %v3179
  %3745 = vmatpush1.bf16.msra.mxu0 %v3178
  %3746 = vmatprep.subr.bf16.mxu0 %v3239
  %3747 = vmatpush2.bf16.msra.mxu0 %v3238
  %3748 = vmatprep.subr.bf16.mxu0 %v3235
  %3749 = vmatpush2.bf16.msra.mxu0 %v3234
  %3750 = vmatprep.subr.bf16.mxu0 %v3231
  %3751 = vmatpush2.bf16.msra.mxu0 %v3230
  %3752 = vmatprep.subr.bf16.mxu0 %v3227
  %3753 = vmatpush2.bf16.msra.mxu0 %v3226
  %3754 = vmatprep.subr.bf16.mxu0 %v3223
  %3755 = vmatpush2.bf16.msra.mxu0 %v3222
  %3756 = vmatprep.subr.bf16.mxu0 %v3219
  %3757 = vmatpush2.bf16.msra.mxu0 %v3218
  %3758 = vmatprep.subr.bf16.mxu0 %v3215
  %3759 = vmatpush2.bf16.msra.mxu0 %v3214
  %3760 = vmatprep.subr.bf16.mxu0 %v3211
  %3761 = vmatpush2.bf16.msra.mxu0 %v3210
  %3762 = vmatprep.mubr.bf16.mxu0 %v2160
  %3763 = vmatmul.mubr.bf16.gmra.mxu0 %v2159
  %v3764 = vpop.f32.mrf.mxu0
  %v3765 = vadd.f32 %v3724, %v3764
  %v3766 = vpop.f32.mrf.mxu0
  %v3767 = vadd.f32 %v3726, %v3766
  %v3768 = vpop.f32.mrf.mxu0
  %v3769 = vpop.f32.mrf.mxu0
  %3770 = vdwg.mxu0
  %3771 = vmatprep.subr.bf16.mxu0 0
  %3772 = vmatpush1.bf16.msra.mxu0 0
  %3773 = vmatprep.subr.bf16.mxu0 0
  %3774 = vmatpush1.bf16.msra.mxu0 0
  %3775 = vmatprep.subr.bf16.mxu0 %v3263
  %3776 = vmatpush1.bf16.msra.mxu0 %v3262
  %3777 = vmatprep.subr.bf16.mxu0 %v3259
  %3778 = vmatpush1.bf16.msra.mxu0 %v3258
  %3779 = vmatprep.subr.bf16.mxu0 %v3255
  %3780 = vmatpush1.bf16.msra.mxu0 %v3254
  %3781 = vmatprep.subr.bf16.mxu0 %v3251
  %3782 = vmatpush1.bf16.msra.mxu0 %v3250
  %3783 = vmatprep.subr.bf16.mxu0 %v3247
  %3784 = vmatpush1.bf16.msra.mxu0 %v3246
  %3785 = vmatprep.subr.bf16.mxu0 %v3243
  %3786 = vmatpush1.bf16.msra.mxu0 %v3242
  %3787 = vmatprep.subr.bf16.mxu0 0
  %3788 = vmatpush2.bf16.msra.mxu0 0
  %3789 = vmatprep.subr.bf16.mxu0 0
  %3790 = vmatpush2.bf16.msra.mxu0 0
  %3791 = vmatprep.subr.bf16.mxu0 0
  %3792 = vmatpush2.bf16.msra.mxu0 0
  %3793 = vmatprep.subr.bf16.mxu0 0
  %3794 = vmatpush2.bf16.msra.mxu0 0
  %3795 = vmatprep.subr.bf16.mxu0 0
  %3796 = vmatpush2.bf16.msra.mxu0 0
  %3797 = vmatprep.subr.bf16.mxu0 0
  %3798 = vmatpush2.bf16.msra.mxu0 0
  %3799 = vmatprep.subr.bf16.mxu0 0
  %3800 = vmatpush2.bf16.msra.mxu0 0
  %3801 = vmatprep.subr.bf16.mxu0 0
  %3802 = vmatpush2.bf16.msra.mxu0 0
  %3803 = vmatprep.mubr.bf16.mxu0 0
  %3804 = vmatmul.mubr.bf16.gmra.mxu0 %v3482
  %v3805 = vpop.f32.mrf.mxu0
  %v3806 = vadd.f32 %v3765, %v3805
  %v3807 = vpop.f32.mrf.mxu0
  %v3808 = vadd.f32 %v3767, %v3807
  %v3809 = vpop.f32.mrf.mxu0
  %v3810 = vpop.f32.mrf.mxu0
  %3811 = vdwg.mxu0
  %v3812 = vmax.f32 %v3642, 0.0
  %v3813 = vmax.f32 %v3644, 0.0
  %v3814 = vmax.f32 %v3806, 0.0
  %v3815 = vmax.f32 %v3808, 0.0
  %v3816 = vpack.c.bf16 %v3812, %v3812
  %v3817 = vpack.c.bf16 %v3813, %v3813
  %v3818 = vpack.c.bf16 %v3814, %v3814
  %v3819 = vpack.c.bf16 %v3815, %v3815
  %v3820 = vld [vmem:[%s9] sm:$0xff]
  %v3821 = vld [vmem:[%s9 + $0x8] sm:$0xff]
  %v3822 = vld [vmem:[%s9 + $0x10] sm:$0xff]
  %v3823 = vld [vmem:[%s9 + $0x18] sm:$0xff]
  %v3824 = vld [vmem:[%s9 + $0x20] sm:$0xff]
  %v3825 = vld [vmem:[%s9 + $0x28] sm:$0xff]
  %v3826 = vld [vmem:[%s9 + $0x30] sm:$0xff]
  %v3827 = vld [vmem:[%s9 + $0x38] sm:$0xff]
  %v3828 = vld [vmem:[%s9 + $0x40] sm:$0xff]
  %v3829 = vld [vmem:[%s9 + $0x48] sm:$0xff]
  %v3830 = vld [vmem:[%s9 + $0x50] sm:$0xff]
  %v3831 = vld [vmem:[%s9 + $0x58] sm:$0xff]
  %v3832 = vld [vmem:[%s9 + $0x60] sm:$0xff]
  %v3833 = vld [vmem:[%s9 + $0x68] sm:$0xff]
  %v3834 = vld [vmem:[%s9 + $0x70] sm:$0xff]
  %v3835 = vld [vmem:[%s9 + $0x78] sm:$0xff]
  %v3836 = vld [vmem:[%s9 + $0x80] sm:$0xff]
  %v3837 = vld [vmem:[%s9 + $0x88] sm:$0xff]
  %v3838 = vld [vmem:[%s9 + $0x90] sm:$0xff]
  %v3839 = vld [vmem:[%s9 + $0x98] sm:$0xff]
  %v3840 = vld [vmem:[%s9 + $0xa0] sm:$0xff]
  %v3841 = vld [vmem:[%s9 + $0xa8] sm:$0xff]
  %v3842 = vld [vmem:[%s9 + $0xb0] sm:$0xff]
  %v3843 = vld [vmem:[%s9 + $0xb8] sm:$0xff]
  %v3844 = vld [vmem:[%s9 + $0xc0] sm:$0xff]
  %v3845 = vld [vmem:[%s9 + $0xc8] sm:$0xff]
  %v3846 = vld [vmem:[%s9 + $0xd0] sm:$0xff]
  %v3847 = vld [vmem:[%s9 + $0xd8] sm:$0xff]
  %v3848 = vld [vmem:[%s9 + $0xe0] sm:$0xff]
  %v3849 = vld [vmem:[%s9 + $0xe8] sm:$0xff]
  %v3850 = vld [vmem:[%s9 + $0xf0] sm:$0xff]
  %v3851 = vld [vmem:[%s9 + $0xf8] sm:$0xff]
  %v3852 = vld [vmem:[%s9 + $0x100] sm:$0xff]
  %v3853 = vld [vmem:[%s9 + $0x108] sm:$0xff]
  %v3854 = vld [vmem:[%s9 + $0x110] sm:$0xff]
  %v3855 = vld [vmem:[%s9 + $0x118] sm:$0xff]
  %v3856 = vld [vmem:[%s9 + $0x120] sm:$0xff]
  %v3857 = vld [vmem:[%s9 + $0x128] sm:$0xff]
  %v3858 = vld [vmem:[%s9 + $0x130] sm:$0xff]
  %v3859 = vld [vmem:[%s9 + $0x138] sm:$0xff]
  %v3860 = vld [vmem:[%s9 + $0x140] sm:$0xff]
  %v3861 = vld [vmem:[%s9 + $0x148] sm:$0xff]
  %v3862 = vld [vmem:[%s9 + $0x150] sm:$0xff]
  %v3863 = vld [vmem:[%s9 + $0x158] sm:$0xff]
  %v3864 = vld [vmem:[%s9 + $0x160] sm:$0xff]
  %v3865 = vld [vmem:[%s9 + $0x168] sm:$0xff]
  %v3866 = vld [vmem:[%s9 + $0x170] sm:$0xff]
  %v3867 = vld [vmem:[%s9 + $0x178] sm:$0xff]
  %v3868 = vld [vmem:[%s9 + $0x180] sm:$0xff]
  %v3869 = vld [vmem:[%s9 + $0x188] sm:$0xff]
  %v3870 = vld [vmem:[%s9 + $0x190] sm:$0xff]
  %v3871 = vld [vmem:[%s9 + $0x198] sm:$0xff]
  %v3872 = vld [vmem:[%s9 + $0x1a0] sm:$0xff]
  %v3873 = vld [vmem:[%s9 + $0x1a8] sm:$0xff]
  %v3874 = vld [vmem:[%s9 + $0x1b0] sm:$0xff]
  %v3875 = vld [vmem:[%s9 + $0x1b8] sm:$0xff]
  %v3876 = vld [vmem:[%s9 + $0x1c0] sm:$0xff]
  %v3877 = vld [vmem:[%s9 + $0x1c8] sm:$0xff]
  %v3878 = vld [vmem:[%s9 + $0x1d0] sm:$0xff]
  %v3879 = vld [vmem:[%s9 + $0x1d8] sm:$0xff]
  %v3880 = vld [vmem:[%s9 + $0x1e0] sm:$0xff]
  %v3881 = vld [vmem:[%s9 + $0x1e8] sm:$0xff]
  %v3882 = vld [vmem:[%s9 + $0x1f0] sm:$0xff]
  %v3883 = vld [vmem:[%s9 + $0x1f8] sm:$0xff]
  %v3884 = vld [vmem:[%s9 + $0x200] sm:$0xff]
  %v3885 = vld [vmem:[%s9 + $0x208] sm:$0xff]
  %v3886 = vld [vmem:[%s9 + $0x210] sm:$0xff]
  %v3887 = vld [vmem:[%s9 + $0x218] sm:$0xff]
  %v3888 = vld [vmem:[%s9 + $0x220] sm:$0xff]
  %v3889 = vld [vmem:[%s9 + $0x228] sm:$0xff]
  %v3890 = vld [vmem:[%s9 + $0x230] sm:$0xff]
  %v3891 = vld [vmem:[%s9 + $0x238] sm:$0xff]
  %v3892 = vld [vmem:[%s9 + $0x240] sm:$0xff]
  %v3893 = vld [vmem:[%s9 + $0x248] sm:$0xff]
  %v3894 = vld [vmem:[%s9 + $0x250] sm:$0xff]
  %v3895 = vld [vmem:[%s9 + $0x258] sm:$0xff]
  %v3896 = vld [vmem:[%s9 + $0x260] sm:$0xff]
  %v3897 = vld [vmem:[%s9 + $0x268] sm:$0xff]
  %v3898 = vld [vmem:[%s9 + $0x270] sm:$0xff]
  %v3899 = vld [vmem:[%s9 + $0x278] sm:$0xff]
  %v3900 = vld [vmem:[%s9 + $0x280] sm:$0xff]
  %v3901 = vld [vmem:[%s9 + $0x288] sm:$0xff]
  %v3902 = vld [vmem:[%s9 + $0x290] sm:$0xff]
  %v3903 = vld [vmem:[%s9 + $0x298] sm:$0xff]
  %v3904 = vld [vmem:[%s9 + $0x2a0] sm:$0xff]
  %v3905 = vld [vmem:[%s9 + $0x2a8] sm:$0xff]
  %v3906 = vld [vmem:[%s9 + $0x2b0] sm:$0xff]
  %v3907 = vld [vmem:[%s9 + $0x2b8] sm:$0xff]
  %v3908 = vld [vmem:[%s9 + $0x2c0] sm:$0xff]
  %v3909 = vld [vmem:[%s9 + $0x2c8] sm:$0xff]
  %v3910 = vld [vmem:[%s9 + $0x2d0] sm:$0xff]
  %v3911 = vld [vmem:[%s9 + $0x2d8] sm:$0xff]
  %v3912 = vld [vmem:[%s9 + $0x2e0] sm:$0xff]
  %v3913 = vld [vmem:[%s9 + $0x2e8] sm:$0xff]
  %v3914 = vld [vmem:[%s9 + $0x2f0] sm:$0xff]
  %v3915 = vld [vmem:[%s9 + $0x2f8] sm:$0xff]
  %v3916 = vld [vmem:[%s9 + $0x300] sm:$0xff]
  %v3917 = vld [vmem:[%s9 + $0x308] sm:$0xff]
  %v3918 = vld [vmem:[%s9 + $0x310] sm:$0xff]
  %v3919 = vld [vmem:[%s9 + $0x318] sm:$0xff]
  %v3920 = vld [vmem:[%s9 + $0x320] sm:$0xff]
  %v3921 = vld [vmem:[%s9 + $0x328] sm:$0xff]
  %v3922 = vld [vmem:[%s9 + $0x330] sm:$0xff]
  %v3923 = vld [vmem:[%s9 + $0x338] sm:$0xff]
  %v3924 = vld [vmem:[%s9 + $0x340] sm:$0xff]
  %v3925 = vld [vmem:[%s9 + $0x348] sm:$0xff]
  %v3926 = vld [vmem:[%s9 + $0x350] sm:$0xff]
  %v3927 = vld [vmem:[%s9 + $0x358] sm:$0xff]
  %v3928 = vld [vmem:[%s9 + $0x360] sm:$0xff]
  %v3929 = vld [vmem:[%s9 + $0x368] sm:$0xff]
  %v3930 = vld [vmem:[%s9 + $0x370] sm:$0xff]
  %v3931 = vld [vmem:[%s9 + $0x378] sm:$0xff]
  %v3932 = vld [vmem:[%s9 + $0x380] sm:$0xff]
  %v3933 = vld [vmem:[%s9 + $0x388] sm:$0xff]
  %v3934 = vld [vmem:[%s9 + $0x390] sm:$0xff]
  %v3935 = vld [vmem:[%s9 + $0x398] sm:$0xff]
  %v3936 = vld [vmem:[%s9 + $0x3a0] sm:$0xff]
  %v3937 = vld [vmem:[%s9 + $0x3a8] sm:$0xff]
  %v3938 = vld [vmem:[%s9 + $0x3b0] sm:$0xff]
  %v3939 = vld [vmem:[%s9 + $0x3b8] sm:$0xff]
  %v3940 = vld [vmem:[%s9 + $0x3c0] sm:$0xff]
  %v3941 = vld [vmem:[%s9 + $0x3c8] sm:$0xff]
  %v3942 = vld [vmem:[%s9 + $0x3d0] sm:$0xff]
  %v3943 = vld [vmem:[%s9 + $0x3d8] sm:$0xff]
  %v3944 = vld [vmem:[%s9 + $0x3e0] sm:$0xff]
  %v3945 = vld [vmem:[%s9 + $0x3e8] sm:$0xff]
  %v3946 = vld [vmem:[%s9 + $0x3f0] sm:$0xff]
  %v3947 = vld [vmem:[%s9 + $0x3f8] sm:$0xff]
  %v3948 = vld [vmem:[%s10] sm:$0xf]
  %v3950 = vlaneseq
  %v3951 = vshrl.u32 %v3950, 7
  %v3952 = vsub.s32 0, %v3951
  %v3953 = vrot.slane %v3948, %v3952
  %v3954 = vlaneseq
  %v3955 = vshrl.u32 %v3954, 7
  %v3956 = vsub.s32 1, %v3955
  %v3957 = vrot.slane %v3948, %v3956
  %v3958 = vlaneseq
  %v3959 = vshrl.u32 %v3958, 7
  %v3960 = vsub.s32 2, %v3959
  %v3961 = vrot.slane %v3948, %v3960
  %v3962 = vlaneseq
  %v3963 = vshrl.u32 %v3962, 7
  %v3964 = vsub.s32 3, %v3963
  %v3965 = vrot.slane %v3948, %v3964
  %v4098 = vunpack.c.l.b16 %v3820
  %v4099 = vunpack.c.h.b16 %v3820
  %v4100 = vunpack.c.l.b16 %v3821
  %v4101 = vunpack.c.h.b16 %v3821
  %v4102 = vunpack.c.l.b16 %v3822
  %v4103 = vunpack.c.h.b16 %v3822
  %v4104 = vunpack.c.l.b16 %v3823
  %v4105 = vunpack.c.h.b16 %v3823
  %v4106 = vunpack.c.l.b16 %v3824
  %v4107 = vunpack.c.h.b16 %v3824
  %v4108 = vunpack.c.l.b16 %v3825
  %v4109 = vunpack.c.h.b16 %v3825
  %v4110 = vunpack.c.l.b16 %v3826
  %v4111 = vunpack.c.h.b16 %v3826
  %v4112 = vunpack.c.l.b16 %v3827
  %v4113 = vunpack.c.h.b16 %v3827
  %v4114 = vunpack.c.l.b16 %v3828
  %v4115 = vunpack.c.h.b16 %v3828
  %v4116 = vunpack.c.l.b16 %v3829
  %v4117 = vunpack.c.h.b16 %v3829
  %v4118 = vunpack.c.l.b16 %v3830
  %v4119 = vunpack.c.h.b16 %v3830
  %v4120 = vunpack.c.l.b16 %v3831
  %v4121 = vunpack.c.h.b16 %v3831
  %v4122 = vunpack.c.l.b16 %v3832
  %v4123 = vunpack.c.h.b16 %v3832
  %v4124 = vunpack.c.l.b16 %v3833
  %v4125 = vunpack.c.h.b16 %v3833
  %v4126 = vunpack.c.l.b16 %v3834
  %v4127 = vunpack.c.h.b16 %v3834
  %v4128 = vunpack.c.l.b16 %v3835
  %v4129 = vunpack.c.h.b16 %v3835
  %v4130 = vunpack.c.l.b16 %v3836
  %v4131 = vunpack.c.h.b16 %v3836
  %v4132 = vunpack.c.l.b16 %v3837
  %v4133 = vunpack.c.h.b16 %v3837
  %v4134 = vunpack.c.l.b16 %v3838
  %v4135 = vunpack.c.h.b16 %v3838
  %v4136 = vunpack.c.l.b16 %v3839
  %v4137 = vunpack.c.h.b16 %v3839
  %v4138 = vunpack.c.l.b16 %v3840
  %v4139 = vunpack.c.h.b16 %v3840
  %v4140 = vunpack.c.l.b16 %v3841
  %v4141 = vunpack.c.h.b16 %v3841
  %v4142 = vunpack.c.l.b16 %v3842
  %v4143 = vunpack.c.h.b16 %v3842
  %v4144 = vunpack.c.l.b16 %v3843
  %v4145 = vunpack.c.h.b16 %v3843
  %v4146 = vunpack.c.l.b16 %v3844
  %v4147 = vunpack.c.h.b16 %v3844
  %v4148 = vunpack.c.l.b16 %v3845
  %v4149 = vunpack.c.h.b16 %v3845
  %v4150 = vunpack.c.l.b16 %v3846
  %v4151 = vunpack.c.h.b16 %v3846
  %v4152 = vunpack.c.l.b16 %v3847
  %v4153 = vunpack.c.h.b16 %v3847
  %v4154 = vunpack.c.l.b16 %v3848
  %v4155 = vunpack.c.h.b16 %v3848
  %v4156 = vunpack.c.l.b16 %v3849
  %v4157 = vunpack.c.h.b16 %v3849
  %v4158 = vunpack.c.l.b16 %v3850
  %v4159 = vunpack.c.h.b16 %v3850
  %v4160 = vunpack.c.l.b16 %v3851
  %v4161 = vunpack.c.h.b16 %v3851
  %v4162 = vunpack.c.l.b16 %v3852
  %v4163 = vunpack.c.h.b16 %v3852
  %v4164 = vunpack.c.l.b16 %v3853
  %v4165 = vunpack.c.h.b16 %v3853
  %v4166 = vunpack.c.l.b16 %v3854
  %v4167 = vunpack.c.h.b16 %v3854
  %v4168 = vunpack.c.l.b16 %v3855
  %v4169 = vunpack.c.h.b16 %v3855
  %v4170 = vunpack.c.l.b16 %v3856
  %v4171 = vunpack.c.h.b16 %v3856
  %v4172 = vunpack.c.l.b16 %v3857
  %v4173 = vunpack.c.h.b16 %v3857
  %v4174 = vunpack.c.l.b16 %v3858
  %v4175 = vunpack.c.h.b16 %v3858
  %v4176 = vunpack.c.l.b16 %v3859
  %v4177 = vunpack.c.h.b16 %v3859
  %v4178 = vunpack.c.l.b16 %v3860
  %v4179 = vunpack.c.h.b16 %v3860
  %v4180 = vunpack.c.l.b16 %v3861
  %v4181 = vunpack.c.h.b16 %v3861
  %v4182 = vunpack.c.l.b16 %v3862
  %v4183 = vunpack.c.h.b16 %v3862
  %v4184 = vunpack.c.l.b16 %v3863
  %v4185 = vunpack.c.h.b16 %v3863
  %v4186 = vunpack.c.l.b16 %v3864
  %v4187 = vunpack.c.h.b16 %v3864
  %v4188 = vunpack.c.l.b16 %v3865
  %v4189 = vunpack.c.h.b16 %v3865
  %v4190 = vunpack.c.l.b16 %v3866
  %v4191 = vunpack.c.h.b16 %v3866
  %v4192 = vunpack.c.l.b16 %v3867
  %v4193 = vunpack.c.h.b16 %v3867
  %v4194 = vunpack.c.l.b16 %v3868
  %v4195 = vunpack.c.h.b16 %v3868
  %v4196 = vunpack.c.l.b16 %v3869
  %v4197 = vunpack.c.h.b16 %v3869
  %v4198 = vunpack.c.l.b16 %v3870
  %v4199 = vunpack.c.h.b16 %v3870
  %v4200 = vunpack.c.l.b16 %v3871
  %v4201 = vunpack.c.h.b16 %v3871
  %v4202 = vunpack.c.l.b16 %v3872
  %v4203 = vunpack.c.h.b16 %v3872
  %v4204 = vunpack.c.l.b16 %v3873
  %v4205 = vunpack.c.h.b16 %v3873
  %v4206 = vunpack.c.l.b16 %v3874
  %v4207 = vunpack.c.h.b16 %v3874
  %v4208 = vunpack.c.l.b16 %v3875
  %v4209 = vunpack.c.h.b16 %v3875
  %v4210 = vunpack.c.l.b16 %v3876
  %v4211 = vunpack.c.h.b16 %v3876
  %v4212 = vunpack.c.l.b16 %v3877
  %v4213 = vunpack.c.h.b16 %v3877
  %v4214 = vunpack.c.l.b16 %v3878
  %v4215 = vunpack.c.h.b16 %v3878
  %v4216 = vunpack.c.l.b16 %v3879
  %v4217 = vunpack.c.h.b16 %v3879
  %v4218 = vunpack.c.l.b16 %v3880
  %v4219 = vunpack.c.h.b16 %v3880
  %v4220 = vunpack.c.l.b16 %v3881
  %v4221 = vunpack.c.h.b16 %v3881
  %v4222 = vunpack.c.l.b16 %v3882
  %v4223 = vunpack.c.h.b16 %v3882
  %v4224 = vunpack.c.l.b16 %v3883
  %v4225 = vunpack.c.h.b16 %v3883
  %v4226 = vunpack.c.l.b16 %v3884
  %v4227 = vunpack.c.h.b16 %v3884
  %v4228 = vunpack.c.l.b16 %v3885
  %v4229 = vunpack.c.h.b16 %v3885
  %v4230 = vunpack.c.l.b16 %v3886
  %v4231 = vunpack.c.h.b16 %v3886
  %v4232 = vunpack.c.l.b16 %v3887
  %v4233 = vunpack.c.h.b16 %v3887
  %v4234 = vunpack.c.l.b16 %v3888
  %v4235 = vunpack.c.h.b16 %v3888
  %v4236 = vunpack.c.l.b16 %v3889
  %v4237 = vunpack.c.h.b16 %v3889
  %v4238 = vunpack.c.l.b16 %v3890
  %v4239 = vunpack.c.h.b16 %v3890
  %v4240 = vunpack.c.l.b16 %v3891
  %v4241 = vunpack.c.h.b16 %v3891
  %v4242 = vunpack.c.l.b16 %v3892
  %v4243 = vunpack.c.h.b16 %v3892
  %v4244 = vunpack.c.l.b16 %v3893
  %v4245 = vunpack.c.h.b16 %v3893
  %v4246 = vunpack.c.l.b16 %v3894
  %v4247 = vunpack.c.h.b16 %v3894
  %v4248 = vunpack.c.l.b16 %v3895
  %v4249 = vunpack.c.h.b16 %v3895
  %v4250 = vunpack.c.l.b16 %v3896
  %v4251 = vunpack.c.h.b16 %v3896
  %v4252 = vunpack.c.l.b16 %v3897
  %v4253 = vunpack.c.h.b16 %v3897
  %v4254 = vunpack.c.l.b16 %v3898
  %v4255 = vunpack.c.h.b16 %v3898
  %v4256 = vunpack.c.l.b16 %v3899
  %v4257 = vunpack.c.h.b16 %v3899
  %v4258 = vunpack.c.l.b16 %v3900
  %v4259 = vunpack.c.h.b16 %v3900
  %v4260 = vunpack.c.l.b16 %v3901
  %v4261 = vunpack.c.h.b16 %v3901
  %v4262 = vunpack.c.l.b16 %v3902
  %v4263 = vunpack.c.h.b16 %v3902
  %v4264 = vunpack.c.l.b16 %v3903
  %v4265 = vunpack.c.h.b16 %v3903
  %v4266 = vunpack.c.l.b16 %v3904
  %v4267 = vunpack.c.h.b16 %v3904
  %v4268 = vunpack.c.l.b16 %v3905
  %v4269 = vunpack.c.h.b16 %v3905
  %v4270 = vunpack.c.l.b16 %v3906
  %v4271 = vunpack.c.h.b16 %v3906
  %v4272 = vunpack.c.l.b16 %v3907
  %v4273 = vunpack.c.h.b16 %v3907
  %v4274 = vunpack.c.l.b16 %v3908
  %v4275 = vunpack.c.h.b16 %v3908
  %v4276 = vunpack.c.l.b16 %v3909
  %v4277 = vunpack.c.h.b16 %v3909
  %v4278 = vunpack.c.l.b16 %v3910
  %v4279 = vunpack.c.h.b16 %v3910
  %v4280 = vunpack.c.l.b16 %v3911
  %v4281 = vunpack.c.h.b16 %v3911
  %v4282 = vunpack.c.l.b16 %v3912
  %v4283 = vunpack.c.h.b16 %v3912
  %v4284 = vunpack.c.l.b16 %v3913
  %v4285 = vunpack.c.h.b16 %v3913
  %v4286 = vunpack.c.l.b16 %v3914
  %v4287 = vunpack.c.h.b16 %v3914
  %v4288 = vunpack.c.l.b16 %v3915
  %v4289 = vunpack.c.h.b16 %v3915
  %v4290 = vunpack.c.l.b16 %v3916
  %v4291 = vunpack.c.h.b16 %v3916
  %v4292 = vunpack.c.l.b16 %v3917
  %v4293 = vunpack.c.h.b16 %v3917
  %v4294 = vunpack.c.l.b16 %v3918
  %v4295 = vunpack.c.h.b16 %v3918
  %v4296 = vunpack.c.l.b16 %v3919
  %v4297 = vunpack.c.h.b16 %v3919
  %v4298 = vunpack.c.l.b16 %v3920
  %v4299 = vunpack.c.h.b16 %v3920
  %v4300 = vunpack.c.l.b16 %v3921
  %v4301 = vunpack.c.h.b16 %v3921
  %v4302 = vunpack.c.l.b16 %v3922
  %v4303 = vunpack.c.h.b16 %v3922
  %v4304 = vunpack.c.l.b16 %v3923
  %v4305 = vunpack.c.h.b16 %v3923
  %v4306 = vunpack.c.l.b16 %v3924
  %v4307 = vunpack.c.h.b16 %v3924
  %v4308 = vunpack.c.l.b16 %v3925
  %v4309 = vunpack.c.h.b16 %v3925
  %v4310 = vunpack.c.l.b16 %v3926
  %v4311 = vunpack.c.h.b16 %v3926
  %v4312 = vunpack.c.l.b16 %v3927
  %v4313 = vunpack.c.h.b16 %v3927
  %v4314 = vunpack.c.l.b16 %v3928
  %v4315 = vunpack.c.h.b16 %v3928
  %v4316 = vunpack.c.l.b16 %v3929
  %v4317 = vunpack.c.h.b16 %v3929
  %v4318 = vunpack.c.l.b16 %v3930
  %v4319 = vunpack.c.h.b16 %v3930
  %v4320 = vunpack.c.l.b16 %v3931
  %v4321 = vunpack.c.h.b16 %v3931
  %v4322 = vunpack.c.l.b16 %v3932
  %v4323 = vunpack.c.h.b16 %v3932
  %v4324 = vunpack.c.l.b16 %v3933
  %v4325 = vunpack.c.h.b16 %v3933
  %v4326 = vunpack.c.l.b16 %v3934
  %v4327 = vunpack.c.h.b16 %v3934
  %v4328 = vunpack.c.l.b16 %v3935
  %v4329 = vunpack.c.h.b16 %v3935
  %v4330 = vunpack.c.l.b16 %v3936
  %v4331 = vunpack.c.h.b16 %v3936
  %v4332 = vunpack.c.l.b16 %v3937
  %v4333 = vunpack.c.h.b16 %v3937
  %v4334 = vunpack.c.l.b16 %v3938
  %v4335 = vunpack.c.h.b16 %v3938
  %v4336 = vunpack.c.l.b16 %v3939
  %v4337 = vunpack.c.h.b16 %v3939
  %v4338 = vunpack.c.l.b16 %v3940
  %v4339 = vunpack.c.h.b16 %v3940
  %v4340 = vunpack.c.l.b16 %v3941
  %v4341 = vunpack.c.h.b16 %v3941
  %v4342 = vunpack.c.l.b16 %v3942
  %v4343 = vunpack.c.h.b16 %v3942
  %v4344 = vunpack.c.l.b16 %v3943
  %v4345 = vunpack.c.h.b16 %v3943
  %v4346 = vunpack.c.l.b16 %v3944
  %v4347 = vunpack.c.h.b16 %v3944
  %v4348 = vunpack.c.l.b16 %v3945
  %v4349 = vunpack.c.h.b16 %v3945
  %v4350 = vunpack.c.l.b16 %v3946
  %v4351 = vunpack.c.h.b16 %v3946
  %v4352 = vunpack.c.l.b16 %v3947
  %v4353 = vunpack.c.h.b16 %v3947
  %v4354 = vpack.c.b16 %v4102, %v4098
  %v4355 = vpack.c.b16 %v4103, %v4099
  %v4356 = vpack.c.b16 %v4104, %v4100
  %v4357 = vpack.c.b16 %v4105, %v4101
  %v4358 = vpack.c.b16 %v4110, %v4106
  %v4359 = vpack.c.b16 %v4111, %v4107
  %v4360 = vpack.c.b16 %v4112, %v4108
  %v4361 = vpack.c.b16 %v4113, %v4109
  %v4362 = vpack.c.b16 %v4118, %v4114
  %v4363 = vpack.c.b16 %v4119, %v4115
  %v4364 = vpack.c.b16 %v4120, %v4116
  %v4365 = vpack.c.b16 %v4121, %v4117
  %v4366 = vpack.c.b16 %v4126, %v4122
  %v4367 = vpack.c.b16 %v4127, %v4123
  %v4368 = vpack.c.b16 %v4128, %v4124
  %v4369 = vpack.c.b16 %v4129, %v4125
  %v4370 = vpack.c.b16 %v4134, %v4130
  %v4371 = vpack.c.b16 %v4135, %v4131
  %v4372 = vpack.c.b16 %v4136, %v4132
  %v4373 = vpack.c.b16 %v4137, %v4133
  %v4374 = vpack.c.b16 %v4142, %v4138
  %v4375 = vpack.c.b16 %v4143, %v4139
  %v4376 = vpack.c.b16 %v4144, %v4140
  %v4377 = vpack.c.b16 %v4145, %v4141
  %v4378 = vpack.c.b16 %v4150, %v4146
  %v4379 = vpack.c.b16 %v4151, %v4147
  %v4380 = vpack.c.b16 %v4152, %v4148
  %v4381 = vpack.c.b16 %v4153, %v4149
  %v4382 = vpack.c.b16 %v4158, %v4154
  %v4383 = vpack.c.b16 %v4159, %v4155
  %v4384 = vpack.c.b16 %v4160, %v4156
  %v4385 = vpack.c.b16 %v4161, %v4157
  %v4386 = vpack.c.b16 %v4166, %v4162
  %v4387 = vpack.c.b16 %v4167, %v4163
  %v4388 = vpack.c.b16 %v4168, %v4164
  %v4389 = vpack.c.b16 %v4169, %v4165
  %v4390 = vpack.c.b16 %v4174, %v4170
  %v4391 = vpack.c.b16 %v4175, %v4171
  %v4392 = vpack.c.b16 %v4176, %v4172
  %v4393 = vpack.c.b16 %v4177, %v4173
  %v4394 = vpack.c.b16 %v4182, %v4178
  %v4395 = vpack.c.b16 %v4183, %v4179
  %v4396 = vpack.c.b16 %v4184, %v4180
  %v4397 = vpack.c.b16 %v4185, %v4181
  %v4398 = vpack.c.b16 %v4190, %v4186
  %v4399 = vpack.c.b16 %v4191, %v4187
  %v4400 = vpack.c.b16 %v4192, %v4188
  %v4401 = vpack.c.b16 %v4193, %v4189
  %v4402 = vpack.c.b16 %v4198, %v4194
  %v4403 = vpack.c.b16 %v4199, %v4195
  %v4404 = vpack.c.b16 %v4200, %v4196
  %v4405 = vpack.c.b16 %v4201, %v4197
  %v4406 = vpack.c.b16 %v4206, %v4202
  %v4407 = vpack.c.b16 %v4207, %v4203
  %v4408 = vpack.c.b16 %v4208, %v4204
  %v4409 = vpack.c.b16 %v4209, %v4205
  %v4410 = vpack.c.b16 %v4214, %v4210
  %v4411 = vpack.c.b16 %v4215, %v4211
  %v4412 = vpack.c.b16 %v4216, %v4212
  %v4413 = vpack.c.b16 %v4217, %v4213
  %v4414 = vpack.c.b16 %v4222, %v4218
  %v4415 = vpack.c.b16 %v4223, %v4219
  %v4416 = vpack.c.b16 %v4224, %v4220
  %v4417 = vpack.c.b16 %v4225, %v4221
  %v4418 = vpack.c.b16 %v4230, %v4226
  %v4419 = vpack.c.b16 %v4231, %v4227
  %v4420 = vpack.c.b16 %v4232, %v4228
  %v4421 = vpack.c.b16 %v4233, %v4229
  %v4422 = vpack.c.b16 %v4238, %v4234
  %v4423 = vpack.c.b16 %v4239, %v4235
  %v4424 = vpack.c.b16 %v4240, %v4236
  %v4425 = vpack.c.b16 %v4241, %v4237
  %v4426 = vpack.c.b16 %v4246, %v4242
  %v4427 = vpack.c.b16 %v4247, %v4243
  %v4428 = vpack.c.b16 %v4248, %v4244
  %v4429 = vpack.c.b16 %v4249, %v4245
  %v4430 = vpack.c.b16 %v4254, %v4250
  %v4431 = vpack.c.b16 %v4255, %v4251
  %v4432 = vpack.c.b16 %v4256, %v4252
  %v4433 = vpack.c.b16 %v4257, %v4253
  %v4434 = vpack.c.b16 %v4262, %v4258
  %v4435 = vpack.c.b16 %v4263, %v4259
  %v4436 = vpack.c.b16 %v4264, %v4260
  %v4437 = vpack.c.b16 %v4265, %v4261
  %v4438 = vpack.c.b16 %v4270, %v4266
  %v4439 = vpack.c.b16 %v4271, %v4267
  %v4440 = vpack.c.b16 %v4272, %v4268
  %v4441 = vpack.c.b16 %v4273, %v4269
  %v4442 = vpack.c.b16 %v4278, %v4274
  %v4443 = vpack.c.b16 %v4279, %v4275
  %v4444 = vpack.c.b16 %v4280, %v4276
  %v4445 = vpack.c.b16 %v4281, %v4277
  %v4446 = vpack.c.b16 %v4286, %v4282
  %v4447 = vpack.c.b16 %v4287, %v4283
  %v4448 = vpack.c.b16 %v4288, %v4284
  %v4449 = vpack.c.b16 %v4289, %v4285
  %v4450 = vpack.c.b16 %v4294, %v4290
  %v4451 = vpack.c.b16 %v4295, %v4291
  %v4452 = vpack.c.b16 %v4296, %v4292
  %v4453 = vpack.c.b16 %v4297, %v4293
  %v4454 = vpack.c.b16 %v4302, %v4298
  %v4455 = vpack.c.b16 %v4303, %v4299
  %v4456 = vpack.c.b16 %v4304, %v4300
  %v4457 = vpack.c.b16 %v4305, %v4301
  %v4458 = vpack.c.b16 %v4310, %v4306
  %v4459 = vpack.c.b16 %v4311, %v4307
  %v4460 = vpack.c.b16 %v4312, %v4308
  %v4461 = vpack.c.b16 %v4313, %v4309
  %v4462 = vpack.c.b16 %v4318, %v4314
  %v4463 = vpack.c.b16 %v4319, %v4315
  %v4464 = vpack.c.b16 %v4320, %v4316
  %v4465 = vpack.c.b16 %v4321, %v4317
  %v4466 = vpack.c.b16 %v4326, %v4322
  %v4467 = vpack.c.b16 %v4327, %v4323
  %v4468 = vpack.c.b16 %v4328, %v4324
  %v4469 = vpack.c.b16 %v4329, %v4325
  %v4470 = vpack.c.b16 %v4334, %v4330
  %v4471 = vpack.c.b16 %v4335, %v4331
  %v4472 = vpack.c.b16 %v4336, %v4332
  %v4473 = vpack.c.b16 %v4337, %v4333
  %v4474 = vpack.c.b16 %v4342, %v4338
  %v4475 = vpack.c.b16 %v4343, %v4339
  %v4476 = vpack.c.b16 %v4344, %v4340
  %v4477 = vpack.c.b16 %v4345, %v4341
  %v4478 = vpack.c.b16 %v4350, %v4346
  %v4479 = vpack.c.b16 %v4351, %v4347
  %v4480 = vpack.c.b16 %v4352, %v4348
  %v4481 = vpack.c.b16 %v4353, %v4349
  %4610 = vmatprep.subr.bf16.mxu0 %v4383
  %4611 = vmatpush1.bf16.msra.mxu0 %v4382
  %4612 = vmatprep.subr.bf16.mxu0 %v4379
  %4613 = vmatpush1.bf16.msra.mxu0 %v4378
  %4614 = vmatprep.subr.bf16.mxu0 %v4375
  %4615 = vmatpush1.bf16.msra.mxu0 %v4374
  %4616 = vmatprep.subr.bf16.mxu0 %v4371
  %4617 = vmatpush1.bf16.msra.mxu0 %v4370
  %4618 = vmatprep.subr.bf16.mxu0 %v4367
  %4619 = vmatpush1.bf16.msra.mxu0 %v4366
  %4620 = vmatprep.subr.bf16.mxu0 %v4363
  %4621 = vmatpush1.bf16.msra.mxu0 %v4362
  %4622 = vmatprep.subr.bf16.mxu0 %v4359
  %4623 = vmatpush1.bf16.msra.mxu0 %v4358
  %4624 = vmatprep.subr.bf16.mxu0 %v4355
  %4625 = vmatpush1.bf16.msra.mxu0 %v4354
  %4626 = vmatprep.subr.bf16.mxu0 %v4415
  %4627 = vmatpush2.bf16.msra.mxu0 %v4414
  %4628 = vmatprep.subr.bf16.mxu0 %v4411
  %4629 = vmatpush2.bf16.msra.mxu0 %v4410
  %4630 = vmatprep.subr.bf16.mxu0 %v4407
  %4631 = vmatpush2.bf16.msra.mxu0 %v4406
  %4632 = vmatprep.subr.bf16.mxu0 %v4403
  %4633 = vmatpush2.bf16.msra.mxu0 %v4402
  %4634 = vmatprep.subr.bf16.mxu0 %v4399
  %4635 = vmatpush2.bf16.msra.mxu0 %v4398
  %4636 = vmatprep.subr.bf16.mxu0 %v4395
  %4637 = vmatpush2.bf16.msra.mxu0 %v4394
  %4638 = vmatprep.subr.bf16.mxu0 %v4391
  %4639 = vmatpush2.bf16.msra.mxu0 %v4390
  %4640 = vmatprep.subr.bf16.mxu0 %v4387
  %4641 = vmatpush2.bf16.msra.mxu0 %v4386
  %4642 = vmatprep.mubr.bf16.mxu0 %v3817
  %4643 = vmatmul.mubr.bf16.gmra.mxu0 %v3816
  %v4644 = vpop.f32.mrf.mxu0
  %v4645 = vadd.f32 %v3953, %v4644
  %v4646 = vpop.f32.mrf.mxu0
  %v4647 = vadd.f32 %v3957, %v4646
  %v4648 = vpop.f32.mrf.mxu0
  %v4649 = vpop.f32.mrf.mxu0
  %4650 = vdwg.mxu0
  %4651 = vmatprep.subr.bf16.mxu0 %v4447
  %4652 = vmatpush1.bf16.msra.mxu0 %v4446
  %4653 = vmatprep.subr.bf16.mxu0 %v4443
  %4654 = vmatpush1.bf16.msra.mxu0 %v4442
  %4655 = vmatprep.subr.bf16.mxu0 %v4439
  %4656 = vmatpush1.bf16.msra.mxu0 %v4438
  %4657 = vmatprep.subr.bf16.mxu0 %v4435
  %4658 = vmatpush1.bf16.msra.mxu0 %v4434
  %4659 = vmatprep.subr.bf16.mxu0 %v4431
  %4660 = vmatpush1.bf16.msra.mxu0 %v4430
  %4661 = vmatprep.subr.bf16.mxu0 %v4427
  %4662 = vmatpush1.bf16.msra.mxu0 %v4426
  %4663 = vmatprep.subr.bf16.mxu0 %v4423
  %4664 = vmatpush1.bf16.msra.mxu0 %v4422
  %4665 = vmatprep.subr.bf16.mxu0 %v4419
  %4666 = vmatpush1.bf16.msra.mxu0 %v4418
  %4667 = vmatprep.subr.bf16.mxu0 %v4479
  %4668 = vmatpush2.bf16.msra.mxu0 %v4478
  %4669 = vmatprep.subr.bf16.mxu0 %v4475
  %4670 = vmatpush2.bf16.msra.mxu0 %v4474
  %4671 = vmatprep.subr.bf16.mxu0 %v4471
  %4672 = vmatpush2.bf16.msra.mxu0 %v4470
  %4673 = vmatprep.subr.bf16.mxu0 %v4467
  %4674 = vmatpush2.bf16.msra.mxu0 %v4466
  %4675 = vmatprep.subr.bf16.mxu0 %v4463
  %4676 = vmatpush2.bf16.msra.mxu0 %v4462
  %4677 = vmatprep.subr.bf16.mxu0 %v4459
  %4678 = vmatpush2.bf16.msra.mxu0 %v4458
  %4679 = vmatprep.subr.bf16.mxu0 %v4455
  %4680 = vmatpush2.bf16.msra.mxu0 %v4454
  %4681 = vmatprep.subr.bf16.mxu0 %v4451
  %4682 = vmatpush2.bf16.msra.mxu0 %v4450
  %4683 = vmatprep.mubr.bf16.mxu0 %v3819
  %4684 = vmatmul.mubr.bf16.gmra.mxu0 %v3818
  %v4685 = vpop.f32.mrf.mxu0
  %v4686 = vadd.f32 %v4645, %v4685
  %v4687 = vpop.f32.mrf.mxu0
  %v4688 = vadd.f32 %v4647, %v4687
  %v4689 = vpop.f32.mrf.mxu0
  %v4690 = vpop.f32.mrf.mxu0
  %4691 = vdwg.mxu0
  %4692 = vmatprep.subr.bf16.mxu0 %v4385
  %4693 = vmatpush1.bf16.msra.mxu0 %v4384
  %4694 = vmatprep.subr.bf16.mxu0 %v4381
  %4695 = vmatpush1.bf16.msra.mxu0 %v4380
  %4696 = vmatprep.subr.bf16.mxu0 %v4377
  %4697 = vmatpush1.bf16.msra.mxu0 %v4376
  %4698 = vmatprep.subr.bf16.mxu0 %v4373
  %4699 = vmatpush1.bf16.msra.mxu0 %v4372
  %4700 = vmatprep.subr.bf16.mxu0 %v4369
  %4701 = vmatpush1.bf16.msra.mxu0 %v4368
  %4702 = vmatprep.subr.bf16.mxu0 %v4365
  %4703 = vmatpush1.bf16.msra.mxu0 %v4364
  %4704 = vmatprep.subr.bf16.mxu0 %v4361
  %4705 = vmatpush1.bf16.msra.mxu0 %v4360
  %4706 = vmatprep.subr.bf16.mxu0 %v4357
  %4707 = vmatpush1.bf16.msra.mxu0 %v4356
  %4708 = vmatprep.subr.bf16.mxu0 %v4417
  %4709 = vmatpush2.bf16.msra.mxu0 %v4416
  %4710 = vmatprep.subr.bf16.mxu0 %v4413
  %4711 = vmatpush2.bf16.msra.mxu0 %v4412
  %4712 = vmatprep.subr.bf16.mxu0 %v4409
  %4713 = vmatpush2.bf16.msra.mxu0 %v4408
  %4714 = vmatprep.subr.bf16.mxu0 %v4405
  %4715 = vmatpush2.bf16.msra.mxu0 %v4404
  %4716 = vmatprep.subr.bf16.mxu0 %v4401
  %4717 = vmatpush2.bf16.msra.mxu0 %v4400
  %4718 = vmatprep.subr.bf16.mxu0 %v4397
  %4719 = vmatpush2.bf16.msra.mxu0 %v4396
  %4720 = vmatprep.subr.bf16.mxu0 %v4393
  %4721 = vmatpush2.bf16.msra.mxu0 %v4392
  %4722 = vmatprep.subr.bf16.mxu0 %v4389
  %4723 = vmatpush2.bf16.msra.mxu0 %v4388
  %4724 = vmatprep.mubr.bf16.mxu0 %v3817
  %4725 = vmatmul.mubr.bf16.gmra.mxu0 %v3816
  %v4726 = vpop.f32.mrf.mxu0
  %v4727 = vadd.f32 %v3961, %v4726
  %v4728 = vpop.f32.mrf.mxu0
  %v4729 = vadd.f32 %v3965, %v4728
  %v4730 = vpop.f32.mrf.mxu0
  %v4731 = vpop.f32.mrf.mxu0
  %4732 = vdwg.mxu0
  %4733 = vmatprep.subr.bf16.mxu0 %v4449
  %4734 = vmatpush1.bf16.msra.mxu0 %v4448
  %4735 = vmatprep.subr.bf16.mxu0 %v4445
  %4736 = vmatpush1.bf16.msra.mxu0 %v4444
  %4737 = vmatprep.subr.bf16.mxu0 %v4441
  %4738 = vmatpush1.bf16.msra.mxu0 %v4440
  %4739 = vmatprep.subr.bf16.mxu0 %v4437
  %4740 = vmatpush1.bf16.msra.mxu0 %v4436
  %4741 = vmatprep.subr.bf16.mxu0 %v4433
  %4742 = vmatpush1.bf16.msra.mxu0 %v4432
  %4743 = vmatprep.subr.bf16.mxu0 %v4429
  %4744 = vmatpush1.bf16.msra.mxu0 %v4428
  %4745 = vmatprep.subr.bf16.mxu0 %v4425
  %4746 = vmatpush1.bf16.msra.mxu0 %v4424
  %4747 = vmatprep.subr.bf16.mxu0 %v4421
  %4748 = vmatpush1.bf16.msra.mxu0 %v4420
  %4749 = vmatprep.subr.bf16.mxu0 %v4481
  %4750 = vmatpush2.bf16.msra.mxu0 %v4480
  %4751 = vmatprep.subr.bf16.mxu0 %v4477
  %4752 = vmatpush2.bf16.msra.mxu0 %v4476
  %4753 = vmatprep.subr.bf16.mxu0 %v4473
  %4754 = vmatpush2.bf16.msra.mxu0 %v4472
  %4755 = vmatprep.subr.bf16.mxu0 %v4469
  %4756 = vmatpush2.bf16.msra.mxu0 %v4468
  %4757 = vmatprep.subr.bf16.mxu0 %v4465
  %4758 = vmatpush2.bf16.msra.mxu0 %v4464
  %4759 = vmatprep.subr.bf16.mxu0 %v4461
  %4760 = vmatpush2.bf16.msra.mxu0 %v4460
  %4761 = vmatprep.subr.bf16.mxu0 %v4457
  %4762 = vmatpush2.bf16.msra.mxu0 %v4456
  %4763 = vmatprep.subr.bf16.mxu0 %v4453
  %4764 = vmatpush2.bf16.msra.mxu0 %v4452
  %4765 = vmatprep.mubr.bf16.mxu0 %v3819
  %4766 = vmatmul.mubr.bf16.gmra.mxu0 %v3818
  %v4767 = vpop.f32.mrf.mxu0
  %v4768 = vadd.f32 %v4727, %v4767
  %v4769 = vpop.f32.mrf.mxu0
  %v4770 = vadd.f32 %v4729, %v4769
  %v4771 = vpop.f32.mrf.mxu0
  %v4772 = vpop.f32.mrf.mxu0
  %4773 = vdwg.mxu0
  %v4774 = vmax.f32 %v4686, 0.0
  %v4775 = vmax.f32 %v4688, 0.0
  %v4776 = vmax.f32 %v4768, 0.0
  %v4777 = vmax.f32 %v4770, 0.0
  %v4778 = vpack.c.bf16 %v4774, %v4774
  %v4779 = vpack.c.bf16 %v4775, %v4775
  %v4780 = vpack.c.bf16 %v4776, %v4776
  %v4781 = vpack.c.bf16 %v4777, %v4777
  %v4782 = vld [vmem:[%s11] sm:$0xf]
  %v4783 = vld [vmem:[%s11 + $0x4] sm:$0xf]
  %v4784 = vld [vmem:[%s11 + $0x8] sm:$0xf]
  %v4785 = vld [vmem:[%s11 + $0xc] sm:$0xf]
  %v4786 = vld [vmem:[%s11 + $0x10] sm:$0xf]
  %v4787 = vld [vmem:[%s11 + $0x14] sm:$0xf]
  %v4788 = vld [vmem:[%s11 + $0x18] sm:$0xf]
  %v4789 = vld [vmem:[%s11 + $0x1c] sm:$0xf]
  %v4790 = vld [vmem:[%s11 + $0x20] sm:$0xf]
  %v4791 = vld [vmem:[%s11 + $0x24] sm:$0xf]
  %v4792 = vld [vmem:[%s11 + $0x28] sm:$0xf]
  %v4793 = vld [vmem:[%s11 + $0x2c] sm:$0xf]
  %v4794 = vld [vmem:[%s11 + $0x30] sm:$0xf]
  %v4795 = vld [vmem:[%s11 + $0x34] sm:$0xf]
  %v4796 = vld [vmem:[%s11 + $0x38] sm:$0xf]
  %v4797 = vld [vmem:[%s11 + $0x3c] sm:$0xf]
  %v4798 = vld [vmem:[%s11 + $0x40] sm:$0xf]
  %v4799 = vld [vmem:[%s11 + $0x44] sm:$0xf]
  %v4800 = vld [vmem:[%s11 + $0x48] sm:$0xf]
  %v4801 = vld [vmem:[%s11 + $0x4c] sm:$0xf]
  %v4802 = vld [vmem:[%s11 + $0x50] sm:$0xf]
  %v4803 = vld [vmem:[%s11 + $0x54] sm:$0xf]
  %v4804 = vld [vmem:[%s11 + $0x58] sm:$0xf]
  %v4805 = vld [vmem:[%s11 + $0x5c] sm:$0xf]
  %v4806 = vld [vmem:[%s11 + $0x60] sm:$0xf]
  %v4807 = vld [vmem:[%s11 + $0x64] sm:$0xf]
  %v4808 = vld [vmem:[%s11 + $0x68] sm:$0xf]
  %v4809 = vld [vmem:[%s11 + $0x6c] sm:$0xf]
  %v4810 = vld [vmem:[%s11 + $0x70] sm:$0xf]
  %v4811 = vld [vmem:[%s11 + $0x74] sm:$0xf]
  %v4812 = vld [vmem:[%s11 + $0x78] sm:$0xf]
  %v4813 = vld [vmem:[%s11 + $0x7c] sm:$0xf]
  %v4814 = vld [vmem:[%s11 + $0x80] sm:$0xf]
  %v4815 = vld [vmem:[%s11 + $0x84] sm:$0xf]
  %v4816 = vld [vmem:[%s11 + $0x88] sm:$0xf]
  %v4817 = vld [vmem:[%s11 + $0x8c] sm:$0xf]
  %v4818 = vld [vmem:[%s11 + $0x90] sm:$0xf]
  %v4819 = vld [vmem:[%s11 + $0x94] sm:$0xf]
  %v4820 = vld [vmem:[%s11 + $0x98] sm:$0xf]
  %v4821 = vld [vmem:[%s11 + $0x9c] sm:$0xf]
  %v4822 = vld [vmem:[%s11 + $0xa0] sm:$0xf]
  %v4823 = vld [vmem:[%s11 + $0xa4] sm:$0xf]
  %v4824 = vld [vmem:[%s11 + $0xa8] sm:$0xf]
  %v4825 = vld [vmem:[%s11 + $0xac] sm:$0xf]
  %v4826 = vld [vmem:[%s11 + $0xb0] sm:$0xf]
  %v4827 = vld [vmem:[%s11 + $0xb4] sm:$0xf]
  %v4828 = vld [vmem:[%s11 + $0xb8] sm:$0xf]
  %v4829 = vld [vmem:[%s11 + $0xbc] sm:$0xf]
  %v4830 = vld [vmem:[%s11 + $0xc0] sm:$0xf]
  %v4831 = vld [vmem:[%s11 + $0xc4] sm:$0xf]
  %v4832 = vld [vmem:[%s11 + $0xc8] sm:$0xf]
  %v4833 = vld [vmem:[%s11 + $0xcc] sm:$0xf]
  %v4834 = vld [vmem:[%s11 + $0xd0] sm:$0xf]
  %v4835 = vld [vmem:[%s11 + $0xd4] sm:$0xf]
  %v4836 = vld [vmem:[%s11 + $0xd8] sm:$0xf]
  %v4837 = vld [vmem:[%s11 + $0xdc] sm:$0xf]
  %v4838 = vld [vmem:[%s11 + $0xe0] sm:$0xf]
  %v4839 = vld [vmem:[%s11 + $0xe4] sm:$0xf]
  %v4840 = vld [vmem:[%s11 + $0xe8] sm:$0xf]
  %v4841 = vld [vmem:[%s11 + $0xec] sm:$0xf]
  %v4842 = vld [vmem:[%s11 + $0xf0] sm:$0xf]
  %v4843 = vld [vmem:[%s11 + $0xf4] sm:$0xf]
  %v4844 = vld [vmem:[%s11 + $0xf8] sm:$0xf]
  %v4845 = vld [vmem:[%s11 + $0xfc] sm:$0xf]
  %v4846 = vld [vmem:[%s12] sm:$0x1]
  %v4848 = vlaneseq
  %v4849 = vshrl.u32 %v4848, 7
  %v4850 = vsub.s32 0, %v4849
  %v4851 = vrot.slane %v4846, %v4850
  %v4917 = vunpack.c.l.b16 %v4782
  %v4918 = vunpack.c.l.b16 %v4783
  %v4919 = vunpack.c.l.b16 %v4784
  %v4920 = vunpack.c.l.b16 %v4785
  %v4921 = vunpack.c.l.b16 %v4786
  %v4922 = vunpack.c.l.b16 %v4787
  %v4923 = vunpack.c.l.b16 %v4788
  %v4924 = vunpack.c.l.b16 %v4789
  %v4925 = vunpack.c.l.b16 %v4790
  %v4926 = vunpack.c.l.b16 %v4791
  %v4927 = vunpack.c.l.b16 %v4792
  %v4928 = vunpack.c.l.b16 %v4793
  %v4929 = vunpack.c.l.b16 %v4794
  %v4930 = vunpack.c.l.b16 %v4795
  %v4931 = vunpack.c.l.b16 %v4796
  %v4932 = vunpack.c.l.b16 %v4797
  %v4933 = vunpack.c.l.b16 %v4798
  %v4934 = vunpack.c.l.b16 %v4799
  %v4935 = vunpack.c.l.b16 %v4800
  %v4936 = vunpack.c.l.b16 %v4801
  %v4937 = vunpack.c.l.b16 %v4802
  %v4938 = vunpack.c.l.b16 %v4803
  %v4939 = vunpack.c.l.b16 %v4804
  %v4940 = vunpack.c.l.b16 %v4805
  %v4941 = vunpack.c.l.b16 %v4806
  %v4942 = vunpack.c.l.b16 %v4807
  %v4943 = vunpack.c.l.b16 %v4808
  %v4944 = vunpack.c.l.b16 %v4809
  %v4945 = vunpack.c.l.b16 %v4810
  %v4946 = vunpack.c.l.b16 %v4811
  %v4947 = vunpack.c.l.b16 %v4812
  %v4948 = vunpack.c.l.b16 %v4813
  %v4949 = vunpack.c.l.b16 %v4814
  %v4950 = vunpack.c.l.b16 %v4815
  %v4951 = vunpack.c.l.b16 %v4816
  %v4952 = vunpack.c.l.b16 %v4817
  %v4953 = vunpack.c.l.b16 %v4818
  %v4954 = vunpack.c.l.b16 %v4819
  %v4955 = vunpack.c.l.b16 %v4820
  %v4956 = vunpack.c.l.b16 %v4821
  %v4957 = vunpack.c.l.b16 %v4822
  %v4958 = vunpack.c.l.b16 %v4823
  %v4959 = vunpack.c.l.b16 %v4824
  %v4960 = vunpack.c.l.b16 %v4825
  %v4961 = vunpack.c.l.b16 %v4826
  %v4962 = vunpack.c.l.b16 %v4827
  %v4963 = vunpack.c.l.b16 %v4828
  %v4964 = vunpack.c.l.b16 %v4829
  %v4965 = vunpack.c.l.b16 %v4830
  %v4966 = vunpack.c.l.b16 %v4831
  %v4967 = vunpack.c.l.b16 %v4832
  %v4968 = vunpack.c.l.b16 %v4833
  %v4969 = vunpack.c.l.b16 %v4834
  %v4970 = vunpack.c.l.b16 %v4835
  %v4971 = vunpack.c.l.b16 %v4836
  %v4972 = vunpack.c.l.b16 %v4837
  %v4973 = vunpack.c.l.b16 %v4838
  %v4974 = vunpack.c.l.b16 %v4839
  %v4975 = vunpack.c.l.b16 %v4840
  %v4976 = vunpack.c.l.b16 %v4841
  %v4977 = vunpack.c.l.b16 %v4842
  %v4978 = vunpack.c.l.b16 %v4843
  %v4979 = vunpack.c.l.b16 %v4844
  %v4980 = vunpack.c.l.b16 %v4845
  %v4981 = vpack.c.b16 %v4918, %v4917
  %v4982 = vpack.c.b16 %v4920, %v4919
  %v4983 = vpack.c.b16 %v4922, %v4921
  %v4984 = vpack.c.b16 %v4924, %v4923
  %v4985 = vpack.c.b16 %v4926, %v4925
  %v4986 = vpack.c.b16 %v4928, %v4927
  %v4987 = vpack.c.b16 %v4930, %v4929
  %v4988 = vpack.c.b16 %v4932, %v4931
  %v4989 = vpack.c.b16 %v4934, %v4933
  %v4990 = vpack.c.b16 %v4936, %v4935
  %v4991 = vpack.c.b16 %v4938, %v4937
  %v4992 = vpack.c.b16 %v4940, %v4939
  %v4993 = vpack.c.b16 %v4942, %v4941
  %v4994 = vpack.c.b16 %v4944, %v4943
  %v4995 = vpack.c.b16 %v4946, %v4945
  %v4996 = vpack.c.b16 %v4948, %v4947
  %v4997 = vpack.c.b16 %v4950, %v4949
  %v4998 = vpack.c.b16 %v4952, %v4951
  %v4999 = vpack.c.b16 %v4954, %v4953
  %v5000 = vpack.c.b16 %v4956, %v4955
  %v5001 = vpack.c.b16 %v4958, %v4957
  %v5002 = vpack.c.b16 %v4960, %v4959
  %v5003 = vpack.c.b16 %v4962, %v4961
  %v5004 = vpack.c.b16 %v4964, %v4963
  %v5005 = vpack.c.b16 %v4966, %v4965
  %v5006 = vpack.c.b16 %v4968, %v4967
  %v5007 = vpack.c.b16 %v4970, %v4969
  %v5008 = vpack.c.b16 %v4972, %v4971
  %v5009 = vpack.c.b16 %v4974, %v4973
  %v5010 = vpack.c.b16 %v4976, %v4975
  %v5011 = vpack.c.b16 %v4978, %v4977
  %v5012 = vpack.c.b16 %v4980, %v4979
  %5045 = vmatprep.subr.bf16.mxu0 0
  %5046 = vmatpush1.bf16.msra.mxu0 %v4988
  %5047 = vmatprep.subr.bf16.mxu0 0
  %5048 = vmatpush1.bf16.msra.mxu0 %v4987
  %5049 = vmatprep.subr.bf16.mxu0 0
  %5050 = vmatpush1.bf16.msra.mxu0 %v4986
  %5051 = vmatprep.subr.bf16.mxu0 0
  %5052 = vmatpush1.bf16.msra.mxu0 %v4985
  %5053 = vmatprep.subr.bf16.mxu0 0
  %5054 = vmatpush1.bf16.msra.mxu0 %v4984
  %5055 = vmatprep.subr.bf16.mxu0 0
  %5056 = vmatpush1.bf16.msra.mxu0 %v4983
  %5057 = vmatprep.subr.bf16.mxu0 0
  %5058 = vmatpush1.bf16.msra.mxu0 %v4982
  %5059 = vmatprep.subr.bf16.mxu0 0
  %5060 = vmatpush1.bf16.msra.mxu0 %v4981
  %5061 = vmatprep.subr.bf16.mxu0 0
  %5062 = vmatpush2.bf16.msra.mxu0 %v4996
  %5063 = vmatprep.subr.bf16.mxu0 0
  %5064 = vmatpush2.bf16.msra.mxu0 %v4995
  %5065 = vmatprep.subr.bf16.mxu0 0
  %5066 = vmatpush2.bf16.msra.mxu0 %v4994
  %5067 = vmatprep.subr.bf16.mxu0 0
  %5068 = vmatpush2.bf16.msra.mxu0 %v4993
  %5069 = vmatprep.subr.bf16.mxu0 0
  %5070 = vmatpush2.bf16.msra.mxu0 %v4992
  %5071 = vmatprep.subr.bf16.mxu0 0
  %5072 = vmatpush2.bf16.msra.mxu0 %v4991
  %5073 = vmatprep.subr.bf16.mxu0 0
  %5074 = vmatpush2.bf16.msra.mxu0 %v4990
  %5075 = vmatprep.subr.bf16.mxu0 0
  %5076 = vmatpush2.bf16.msra.mxu0 %v4989
  %5077 = vmatprep.mubr.bf16.mxu0 %v4779
  %5078 = vmatmul.mubr.bf16.gmra.mxu0 %v4778
  %v5079 = vpop.f32.mrf.mxu0
  %v5080 = vadd.f32 %v4851, %v5079
  %v5081 = vpop.f32.mrf.mxu0
  %v5082 = vpop.f32.mrf.mxu0
  %v5083 = vpop.f32.mrf.mxu0
  %5084 = vdwg.mxu0
  %5085 = vmatprep.subr.bf16.mxu0 0
  %5086 = vmatpush1.bf16.msra.mxu0 %v5004
  %5087 = vmatprep.subr.bf16.mxu0 0
  %5088 = vmatpush1.bf16.msra.mxu0 %v5003
  %5089 = vmatprep.subr.bf16.mxu0 0
  %5090 = vmatpush1.bf16.msra.mxu0 %v5002
  %5091 = vmatprep.subr.bf16.mxu0 0
  %5092 = vmatpush1.bf16.msra.mxu0 %v5001
  %5093 = vmatprep.subr.bf16.mxu0 0
  %5094 = vmatpush1.bf16.msra.mxu0 %v5000
  %5095 = vmatprep.subr.bf16.mxu0 0
  %5096 = vmatpush1.bf16.msra.mxu0 %v4999
  %5097 = vmatprep.subr.bf16.mxu0 0
  %5098 = vmatpush1.bf16.msra.mxu0 %v4998
  %5099 = vmatprep.subr.bf16.mxu0 0
  %5100 = vmatpush1.bf16.msra.mxu0 %v4997
  %5101 = vmatprep.subr.bf16.mxu0 0
  %5102 = vmatpush2.bf16.msra.mxu0 %v5012
  %5103 = vmatprep.subr.bf16.mxu0 0
  %5104 = vmatpush2.bf16.msra.mxu0 %v5011
  %5105 = vmatprep.subr.bf16.mxu0 0
  %5106 = vmatpush2.bf16.msra.mxu0 %v5010
  %5107 = vmatprep.subr.bf16.mxu0 0
  %5108 = vmatpush2.bf16.msra.mxu0 %v5009
  %5109 = vmatprep.subr.bf16.mxu0 0
  %5110 = vmatpush2.bf16.msra.mxu0 %v5008
  %5111 = vmatprep.subr.bf16.mxu0 0
  %5112 = vmatpush2.bf16.msra.mxu0 %v5007
  %5113 = vmatprep.subr.bf16.mxu0 0
  %5114 = vmatpush2.bf16.msra.mxu0 %v5006
  %5115 = vmatprep.subr.bf16.mxu0 0
  %5116 = vmatpush2.bf16.msra.mxu0 %v5005
  %5117 = vmatprep.mubr.bf16.mxu0 %v4781
  %5118 = vmatmul.mubr.bf16.gmra.mxu0 %v4780
  %v5119 = vpop.f32.mrf.mxu0
  %v5120 = vadd.f32 %v5080, %v5119
  %v5121 = vpop.f32.mrf.mxu0
  %v5122 = vpop.f32.mrf.mxu0
  %v5123 = vpop.f32.mrf.mxu0
  %5124 = vdwg.mxu0
  %v5125 = vmax.f32 %v5120, 0.0
  %5126 = vst [vmem:[%s13] sm:$0xff] %v5125
  // Predicated region
  $region54: #{_cnn_forward_impl.1} parent=0 // pred_check
    _
  $region55: #{_cnn_forward_impl.1} parent=0 // pred_check_branch
    %5128 = sbr.rel (0) target = $region57
  $region56: #{_cnn_forward_impl.1} parent=0 // pred_region
    _
  $region57: #{_cnn_forward_impl.1} parent=0 // pred_fallthru
    _
  // Predicated region
  $region58: #{_cnn_forward_impl.1} parent=0 // pred_check
    _
  $region59: #{_cnn_forward_impl.1} parent=0 // pred_check_branch
    %5130 = sbr.rel (0) target = $region61
  $region60: #{_cnn_forward_impl.1} parent=0 // pred_region
    _
  $region61: #{_cnn_forward_impl.1} parent=0 // pred_fallthru
    _

</llo_original>
